<compile_context>
chip_gen: v7x
topology: tpu7x:2x2x1
jax: 0.10.0
libtpu: 0.0.40
codegen_flags: <defaults>
</compile_context>

<pallas_src>
import math
import functools

import jax
import jax.numpy as jnp
from jax import lax
from jax.experimental import pallas as pl
from jax.experimental.pallas import tpu as pltpu

NUM_TOKENS = 10
HIDDEN_DIM = 128          # module default
MAX_ROW_TILE = 512        # rows per grid step (multiple of 8)
LANE = 128


def _round_up(a: int, m: int) -> int:
    return ((a + m - 1) // m) * m


TOK_PAD = _round_up(NUM_TOKENS, LANE)   # padded one-hot / embedding-table rows
NT_PAD = _round_up(NUM_TOKENS, LANE)    # padded logits lane width


def _denoiser_kernel(slab_ref, consts_ref, etok_ref, w1_ref, w2_ref, b2_ref,
                     out_ref, *, tok_pad):
    # slab_ref:   (T, 8)       f32  lanes: [token_id, t, clue, 0, 0, 0, 0, 0]
    # consts_ref: (8, H)       rows: [freqs, phase, e_clue, b1, 0, 0, 0, 0]
    # etok_ref:   (tok_pad, H) token embedding table (zero-padded rows)
    # w1_ref:     (H, H)
    # w2_ref:     (H, NT_PAD)  (zero-padded cols)
    # b2_ref:     (1, NT_PAD)
    # out_ref:    (T, NT_PAD)  lane-dense logits
    slab = slab_ref[...]
    x_f = slab[:, 0:1]                       # (T, 1) token id as f32 (exact)
    t_v = slab[:, 1:2]                       # (T, 1) timestep
    clue = slab[:, 2:3]                      # (T, 1) clue mask

    n = slab.shape[0]

    consts = consts_ref[...]                 # (8, H)
    freqs = consts[0:1, :]                   # (1, H) sinusoid frequencies
    phase = consts[1:2, :]                   # (1, H) 0 for sin lanes, pi/2 for cos lanes
    eclue = consts[2:3, :]                   # (1, H)
    b1 = consts[3:4, :]                      # (1, H)

    # --- token embedding via lane-dense one-hot matmul (MXU) ---
    tok_iota = lax.broadcasted_iota(jnp.int32, (n, tok_pad), 1).astype(jnp.float32)
    one_hot = (x_f == tok_iota).astype(jnp.float32)               # (T, TOK_PAD)
    tok_emb = jnp.dot(one_hot, etok_ref[...],
                      preferred_element_type=jnp.float32)          # (T, H)

    # --- sinusoidal time embedding: cos(x) = sin(x + pi/2), one EUP op/elem ---
    t_emb = jnp.sin(t_v * freqs + phase)                           # (T, H)

    # --- clue contribution + fuse ---
    h = tok_emb + t_emb + clue * eclue                             # (T, H)

    # --- MLP head ---
    h1 = jnp.maximum(
        jnp.dot(h, w1_ref[...], preferred_element_type=jnp.float32) + b1,
        0.0)                                                       # (T, H)
    logits = jnp.dot(h1, w2_ref[...],
                     preferred_element_type=jnp.float32) + b2_ref[...]
    out_ref[...] = logits.astype(out_ref.dtype)                    # (T, NT_PAD)


def init_params(key, num_tokens=NUM_TOKENS, hidden_dim=HIDDEN_DIM):
    ks = jax.random.split(key, 4)
    scale = 1.0 / math.sqrt(hidden_dim)
    return {
        "etok": jax.random.normal(ks[0], (num_tokens, hidden_dim), jnp.float32) * scale,
        "eclue": jax.random.normal(ks[1], (1, hidden_dim), jnp.float32) * scale,
        "w1": jax.random.normal(ks[2], (hidden_dim, hidden_dim), jnp.float32) * scale,
        "b1": jnp.zeros((1, hidden_dim), jnp.float32),
        "w2": jax.random.normal(ks[3], (hidden_dim, num_tokens), jnp.float32) * scale,
        "b2": jnp.zeros((1, num_tokens), jnp.float32),
    }


def _sinusoid_tables(hidden_dim):
    """Compile-time (1, H) frequency table + (1, H) phase table (0 / pi/2)."""
    half = hidden_dim // 2
    idx = jnp.arange(hidden_dim)
    k = jnp.where(idx < half, idx, idx - half).astype(jnp.float32)
    freqs = jnp.exp(-(math.log(10000.0) / half) * k)[None, :]      # (1, H)
    phase = jnp.where(idx < half, 0.0, 0.5 * math.pi)[None, :].astype(jnp.float32)
    return freqs, phase


@functools.partial(jax.jit, static_argnames=("num_tokens", "hidden_dim"))
def base_denoiser_forward(x, t, clue_mask, params,
                          num_tokens=NUM_TOKENS, hidden_dim=HIDDEN_DIM):
    """x: (B,9,9) int, t: (B,1) float, clue_mask: (B,9,9) -> (B,9,9,num_tokens)."""
    B = x.shape[0]
    N = B * 81
    row_tile = min(MAX_ROW_TILE, _round_up(N, 8))   # no 3x pad waste at small B
    n_pad = _round_up(N, row_tile)
    grid = (n_pad // row_tile,)

    # --- pack per-cell inputs into one (N_pad, 8) f32 slab ---
    x_f = x.reshape(N, 1).astype(jnp.float32)
    t_f = jnp.broadcast_to(t.reshape(B, 1, 1).astype(jnp.float32),
                           (B, 81, 1)).reshape(N, 1)
    c_f = clue_mask.reshape(N, 1).astype(jnp.float32)
    slab = jnp.concatenate(
        [x_f, t_f, c_f, jnp.zeros((N, 5), jnp.float32)], axis=1)   # (N, 8)
    slab = jnp.pad(slab, ((0, n_pad - N), (0, 0)))                  # (N_pad, 8)

    # --- hoisted sinusoid tables + stacked (8, H) constant slab ---
    freqs, phase = _sinusoid_tables(hidden_dim)
    consts = jnp.concatenate(
        [freqs, phase, params["eclue"], params["b1"],
         jnp.zeros((4, hidden_dim), jnp.float32)], axis=0)          # (8, H)

    # --- lane-dense padded weights ---
    etok_pad = jnp.pad(params["etok"], ((0, TOK_PAD - num_tokens), (0, 0)))
    w2_pad = jnp.pad(params["w2"], ((0, 0), (0, NT_PAD - num_tokens)))
    b2_pad = jnp.pad(params["b2"], ((0, 0), (0, NT_PAD - num_tokens)))

    row_spec = lambda shape: pl.BlockSpec(shape, lambda i: (i, 0))
    full = lambda shape: pl.BlockSpec(shape, lambda i: (0, 0))

    kernel = functools.partial(_denoiser_kernel, tok_pad=TOK_PAD)

    flops = 2 * n_pad * (TOK_PAD * hidden_dim
                         + hidden_dim * hidden_dim
                         + hidden_dim * NT_PAD)
    transcendentals = n_pad * hidden_dim
    bytes_accessed = (n_pad * 8 * 4 + n_pad * NT_PAD * 4
                      + (TOK_PAD + hidden_dim + 8) * hidden_dim * 4
                      + (hidden_dim + 1) * NT_PAD * 4)

    logits_pad = pl.pallas_call(
        kernel,
        out_shape=jax.ShapeDtypeStruct((n_pad, NT_PAD), jnp.float32),
        grid=grid,
        in_specs=[
            row_spec((row_tile, 8)),          # packed slab (tiled over rows)
            full((8, hidden_dim)),            # [freqs, phase, eclue, b1]
            full((TOK_PAD, hidden_dim)),      # etok (padded)
            full((hidden_dim, hidden_dim)),   # w1
            full((hidden_dim, NT_PAD)),       # w2 (padded)
            full((1, NT_PAD)),                # b2 (padded)
        ],
        out_specs=row_spec((row_tile, NT_PAD)),
        compiler_params=pltpu.CompilerParams(
            dimension_semantics=("parallel",)),
        cost_estimate=pl.CostEstimate(
            flops=flops, transcendentals=transcendentals,
            bytes_accessed=bytes_accessed),
    )(slab, consts, etok_pad, params["w1"], w2_pad, b2_pad)

    return logits_pad[:N, :num_tokens].reshape(B, 9, 9, num_tokens)


def _reference_forward(x, t, clue_mask, params,
                       num_tokens=NUM_TOKENS, hidden_dim=HIDDEN_DIM):
    """Pure-JAX reference for correctness checking."""
    B = x.shape[0]
    N = B * 81
    tok_emb = params["etok"][x.reshape(N)]
    half = hidden_dim // 2
    idx = jnp.arange(hidden_dim)
    k = jnp.where(idx < half, idx, idx - half).astype(jnp.float32)
    freqs = jnp.exp(-(math.log(10000.0) / half) * k)
    t_row = jnp.broadcast_to(t.reshape(B, 1, 1).astype(jnp.float32),
                             (B, 81, 1)).reshape(N, 1)
    arg = t_row * freqs[None, :]
    t_emb = jnp.where(idx[None, :] < half, jnp.sin(arg), jnp.cos(arg))
    clue = clue_mask.reshape(N, 1).astype(jnp.float32)
    h = tok_emb + t_emb + clue * params["eclue"]
    h1 = jnp.maximum(h @ params["w1"] + params["b1"], 0.0)
    logits = h1 @ params["w2"] + params["b2"]
    return logits.reshape(B, 9, 9, num_tokens)


# TODO(synk): configure_optimizer (AdamW) is training glue, not a kernel; omitted.


if __name__ == "__main__":
    key = jax.random.PRNGKey(0)
    k_param, k_x, k_t, k_mask = jax.random.split(key, 4)

    B = 2
    params = init_params(k_param)
    x = jax.random.randint(k_x, (B, 9, 9), 0, NUM_TOKENS, dtype=jnp.int32)
    t = jax.random.uniform(k_t, (B, 1), jnp.float32, 0.0, 100.0)
    clue_mask = (jax.random.uniform(k_mask, (B, 9, 9)) > 0.5).astype(jnp.float32)

    logits = base_denoiser_forward(x, t, clue_mask, params)
    logits = jax.block_until_ready(logits)

    assert logits.shape == (B, 9, 9, NUM_TOKENS), logits.shape
    assert bool(jnp.all(jnp.isfinite(logits)))

    ref = _reference_forward(x, t, clue_mask, params)
    assert bool(jnp.allclose(logits, ref, rtol=2e-2, atol=2e-2))

    print("KERNEL_OK")
</pallas_src>

<mosaic_0001>
module attributes {stable_mosaic.version = 11 : i64} {
  func.func @_denoiser_kernel(%arg0: i32, %arg1: memref<168x8xf32, #tpu.memory_space<vmem>>, %arg2: memref<8x128xf32, #tpu.memory_space<vmem>>, %arg3: memref<128x128xf32, #tpu.memory_space<vmem>>, %arg4: memref<128x128xf32, #tpu.memory_space<vmem>>, %arg5: memref<128x128xf32, #tpu.memory_space<vmem>>, %arg6: memref<1x128xf32, #tpu.memory_space<vmem>>, %arg7: memref<168x128xf32, #tpu.memory_space<vmem>>) attributes {dimension_semantics = [#tpu.dimension_semantics<parallel>], iteration_bounds = array<i64: 1>, scalar_prefetch = 0 : i64, scratch_operands = 0 : i64, tpu.core_type = #tpu.core_type<tc>, window_params = [{transform_indices = @transform_0, window_bounds = array<i64: 168, 8>}, {pipeline_mode = #tpu.pipeline_mode<synchronous>, transform_indices = @transform_1, window_bounds = array<i64: 8, 128>}, {pipeline_mode = #tpu.pipeline_mode<synchronous>, transform_indices = @transform_2, window_bounds = array<i64: 128, 128>}, {pipeline_mode = #tpu.pipeline_mode<synchronous>, transform_indices = @transform_3, window_bounds = array<i64: 128, 128>}, {pipeline_mode = #tpu.pipeline_mode<synchronous>, transform_indices = @transform_4, window_bounds = array<i64: 128, 128>}, {pipeline_mode = #tpu.pipeline_mode<synchronous>, transform_indices = @transform_5, window_bounds = array<i64: 1, 128>}, {transform_indices = @transform_6, window_bounds = array<i64: 168, 128>}]} {
    %c0 = arith.constant 0 : index
    %c0_0 = arith.constant 0 : index
    %0 = vector.load %arg1[%c0, %c0_0] : memref<168x8xf32, #tpu.memory_space<vmem>>, vector<168x8xf32>
    %1 = vector.extract_strided_slice %0 {offsets = [0, 0], sizes = [168, 1], strides = [1, 1]} : vector<168x8xf32> to vector<168x1xf32>
    %2 = vector.extract_strided_slice %0 {offsets = [0, 1], sizes = [168, 1], strides = [1, 1]} : vector<168x8xf32> to vector<168x1xf32>
    %3 = vector.extract_strided_slice %0 {offsets = [0, 2], sizes = [168, 1], strides = [1, 1]} : vector<168x8xf32> to vector<168x1xf32>
    %c0_1 = arith.constant 0 : index
    %c0_2 = arith.constant 0 : index
    %4 = vector.load %arg2[%c0_1, %c0_2] : memref<8x128xf32, #tpu.memory_space<vmem>>, vector<8x128xf32>
    %5 = vector.extract_strided_slice %4 {offsets = [0, 0], sizes = [1, 128], strides = [1, 1]} : vector<8x128xf32> to vector<1x128xf32>
    %6 = vector.extract_strided_slice %4 {offsets = [1, 0], sizes = [1, 128], strides = [1, 1]} : vector<8x128xf32> to vector<1x128xf32>
    %7 = vector.extract_strided_slice %4 {offsets = [2, 0], sizes = [1, 128], strides = [1, 1]} : vector<8x128xf32> to vector<1x128xf32>
    %8 = vector.extract_strided_slice %4 {offsets = [3, 0], sizes = [1, 128], strides = [1, 1]} : vector<8x128xf32> to vector<1x128xf32>
    %9 = tpu.iota {dimensions = array<i32: 1>} : vector<168x128xi32>
    %10 = arith.sitofp %9 : vector<168x128xi32> to vector<168x128xf32>
    %11 = vector.broadcast %1 : vector<168x1xf32> to vector<168x128xf32>
    %12 = arith.cmpf oeq, %11, %10 : vector<168x128xf32>
    %13 = arith.extui %12 : vector<168x128xi1> to vector<168x128xi32>
    %14 = arith.sitofp %13 : vector<168x128xi32> to vector<168x128xf32>
    %c0_3 = arith.constant 0 : index
    %c0_4 = arith.constant 0 : index
    %15 = vector.load %arg3[%c0_3, %c0_4] : memref<128x128xf32, #tpu.memory_space<vmem>>, vector<128x128xf32>
    %cst = arith.constant dense<0.000000e+00> : vector<168x128xf32>
    %16 = tpu.matmul %14, %15, %cst {dimension_numbers = #tpu.dot_dimension_numbers<[1], [0], [0], [1], [0, 0, 1, 1], [], []>} : vector<168x128xf32>, vector<128x128xf32>, vector<168x128xf32> -> vector<168x128xf32>
    %17 = vector.broadcast %2 : vector<168x1xf32> to vector<168x128xf32>
    %18 = vector.broadcast %5 : vector<1x128xf32> to vector<168x128xf32>
    %19 = arith.mulf %17, %18 : vector<168x128xf32>
    %20 = vector.broadcast %6 : vector<1x128xf32> to vector<168x128xf32>
    %21 = arith.addf %19, %20 : vector<168x128xf32>
    %22 = math.sin %21 : vector<168x128xf32>
    %23 = arith.addf %16, %22 : vector<168x128xf32>
    %24 = vector.broadcast %3 : vector<168x1xf32> to vector<168x128xf32>
    %25 = vector.broadcast %7 : vector<1x128xf32> to vector<168x128xf32>
    %26 = arith.mulf %24, %25 : vector<168x128xf32>
    %27 = arith.addf %23, %26 : vector<168x128xf32>
    %c0_5 = arith.constant 0 : index
    %c0_6 = arith.constant 0 : index
    %28 = vector.load %arg4[%c0_5, %c0_6] : memref<128x128xf32, #tpu.memory_space<vmem>>, vector<128x128xf32>
    %cst_7 = arith.constant dense<0.000000e+00> : vector<168x128xf32>
    %29 = tpu.matmul %27, %28, %cst_7 {dimension_numbers = #tpu.dot_dimension_numbers<[1], [0], [0], [1], [0, 0, 1, 1], [], []>} : vector<168x128xf32>, vector<128x128xf32>, vector<168x128xf32> -> vector<168x128xf32>
    %30 = vector.broadcast %8 : vector<1x128xf32> to vector<168x128xf32>
    %31 = arith.addf %29, %30 : vector<168x128xf32>
    %cst_8 = arith.constant 0.000000e+00 : f32
    %32 = vector.broadcast %cst_8 : f32 to vector<168x128xf32>
    %33 = arith.maximumf %31, %32 : vector<168x128xf32>
    %c0_9 = arith.constant 0 : index
    %c0_10 = arith.constant 0 : index
    %34 = vector.load %arg5[%c0_9, %c0_10] : memref<128x128xf32, #tpu.memory_space<vmem>>, vector<128x128xf32>
    %cst_11 = arith.constant dense<0.000000e+00> : vector<168x128xf32>
    %35 = tpu.matmul %33, %34, %cst_11 {dimension_numbers = #tpu.dot_dimension_numbers<[1], [0], [0], [1], [0, 0, 1, 1], [], []>} : vector<168x128xf32>, vector<128x128xf32>, vector<168x128xf32> -> vector<168x128xf32>
    %c0_12 = arith.constant 0 : index
    %c0_13 = arith.constant 0 : index
    %36 = vector.load %arg6[%c0_12, %c0_13] : memref<1x128xf32, #tpu.memory_space<vmem>>, vector<1x128xf32>
    %37 = vector.broadcast %36 : vector<1x128xf32> to vector<168x128xf32>
    %38 = arith.addf %35, %37 : vector<168x128xf32>
    %c0_14 = arith.constant 0 : index
    %c0_15 = arith.constant 0 : index
    %39 = vector.load %arg7[%c0_14, %c0_15] : memref<168x128xf32, #tpu.memory_space<vmem>>, vector<168x128xf32>
    tpu.vector_store %arg7[%c0_14, %c0_15], %38 {strides = array<i32>} : memref<168x128xf32, #tpu.memory_space<vmem>>, vector<168x128xf32>,
    return
  }
  func.func @transform_0(%arg0: i32) -> (i32, i32) {
    %c0_i32 = arith.constant 0 : i32
    %c0_i32_0 = arith.constant 0 : i32
    return %arg0, %c0_i32 : i32, i32
  }
  func.func @transform_1(%arg0: i32) -> (i32, i32) {
    %c0_i32 = arith.constant 0 : i32
    %c0_i32_0 = arith.constant 0 : i32
    %c0_i32_1 = arith.constant 0 : i32
    return %c0_i32, %c0_i32_0 : i32, i32
  }
  func.func @transform_2(%arg0: i32) -> (i32, i32) {
    %c0_i32 = arith.constant 0 : i32
    %c0_i32_0 = arith.constant 0 : i32
    %c0_i32_1 = arith.constant 0 : i32
    return %c0_i32, %c0_i32_0 : i32, i32
  }
  func.func @transform_3(%arg0: i32) -> (i32, i32) {
    %c0_i32 = arith.constant 0 : i32
    %c0_i32_0 = arith.constant 0 : i32
    %c0_i32_1 = arith.constant 0 : i32
    return %c0_i32, %c0_i32_0 : i32, i32
  }
  func.func @transform_4(%arg0: i32) -> (i32, i32) {
    %c0_i32 = arith.constant 0 : i32
    %c0_i32_0 = arith.constant 0 : i32
    %c0_i32_1 = arith.constant 0 : i32
    return %c0_i32, %c0_i32_0 : i32, i32
  }
  func.func @transform_5(%arg0: i32) -> (i32, i32) {
    %c0_i32 = arith.constant 0 : i32
    %c0_i32_0 = arith.constant 0 : i32
    %c0_i32_1 = arith.constant 0 : i32
    return %c0_i32, %c0_i32_0 : i32, i32
  }
  func.func @transform_6(%arg0: i32) -> (i32, i32) {
    %c0_i32 = arith.constant 0 : i32
    %c0_i32_0 = arith.constant 0 : i32
    return %arg0, %c0_i32 : i32, i32
  }
}

</mosaic_0001>

<llo_original>
// kernel: base_denoiser_forward.1
$region0: #{base_denoiser_forward.1}
  #allocation0 [shape = 'u32[]', space=smem, size = 0x4, offset = 0x4, fixed_abs, tag = 'smem constant byte address 0x4 - core index']
  #allocation1 [shape = 'u32[144,128]{1,0:T(1,128)}', space=vmem, size = 0x12000, scoped, tag = 'internal scratch']
  %s0 = inlined_call_operand.vmem [shape: f32[168,8], index: 0, kind: input, shape index: {}]
  %s1 = inlined_call_operand.vmem [shape: f32[8,128], index: 1, kind: input, shape index: {}]
  %s2 = inlined_call_operand.vmem [shape: f32[128,128], index: 2, kind: input, shape index: {}]
  %s3 = inlined_call_operand.vmem [shape: f32[128,128], index: 3, kind: input, shape index: {}]
  %s4 = inlined_call_operand.vmem [shape: f32[128,128], index: 4, kind: input, shape index: {}]
  %s5 = inlined_call_operand.vmem [shape: f32[1,128], index: 5, kind: input, shape index: {}]
  %s6 = inlined_call_operand.vmem [shape: f32[168,128], index: 6, kind: output, shape index: {}]
  %s7 = sld [smem:[#allocation0]]
  $region34: #{base_denoiser_forward.1} parent=0
    _
  %s9 = ssub.s32 1, %s7
  %s10 = scalar_select 0, %s9, %s7
  // Predicated region
  $region2: #{base_denoiser_forward.1} parent=0 // pred_check
    _
  $region3: #{base_denoiser_forward.1} parent=0 // pred_check_branch
    %12 = sbr.rel (0) target = $region5
  $region4: #{base_denoiser_forward.1} parent=0 // pred_region
    _
  $region5: #{base_denoiser_forward.1} parent=0 // pred_fallthru
    _
  // Predicated region
  $region6: #{base_denoiser_forward.1} parent=0 // pred_check
    _
  $region7: #{base_denoiser_forward.1} parent=0 // pred_check_branch
    %14 = sbr.rel (0) target = $region9
  $region8: #{base_denoiser_forward.1} parent=0 // pred_region
    _
  $region9: #{base_denoiser_forward.1} parent=0 // pred_fallthru
    _
  // Predicated region
  $region10: #{base_denoiser_forward.1} parent=0 // pred_check
    _
  $region11: #{base_denoiser_forward.1} parent=0 // pred_check_branch
    %16 = sbr.rel (0) target = $region13
  $region12: #{base_denoiser_forward.1} parent=0 // pred_region
    _
  $region13: #{base_denoiser_forward.1} parent=0 // pred_fallthru
    _
  // Predicated region
  $region14: #{base_denoiser_forward.1} parent=0 // pred_check
    _
  $region15: #{base_denoiser_forward.1} parent=0 // pred_check_branch
    %18 = sbr.rel (0) target = $region17
  $region16: #{base_denoiser_forward.1} parent=0 // pred_region
    _
  $region17: #{base_denoiser_forward.1} parent=0 // pred_fallthru
    _
  // Predicated region
  $region18: #{base_denoiser_forward.1} parent=0 // pred_check
    _
  $region19: #{base_denoiser_forward.1} parent=0 // pred_check_branch
    %20 = sbr.rel (0) target = $region21
  $region20: #{base_denoiser_forward.1} parent=0 // pred_region
    _
  $region21: #{base_denoiser_forward.1} parent=0 // pred_fallthru
    _
  // Predicated region
  $region22: #{base_denoiser_forward.1} parent=0 // pred_check
    _
  $region23: #{base_denoiser_forward.1} parent=0 // pred_check_branch
    %22 = sbr.rel (0) target = $region25
  $region24: #{base_denoiser_forward.1} parent=0 // pred_region
    _
  $region25: #{base_denoiser_forward.1} parent=0 // pred_fallthru
    _
  %v23 = vld [vmem:[%s0] sm:$0xff]
  %v24 = vld [vmem:[%s0 + $0x8] sm:$0xff]
  %v25 = vld [vmem:[%s0 + $0x10] sm:$0xff]
  %v26 = vld [vmem:[%s0 + $0x18] sm:$0xff]
  %v27 = vld [vmem:[%s0 + $0x20] sm:$0xff]
  %v28 = vld [vmem:[%s0 + $0x28] sm:$0xff]
  %v29 = vld [vmem:[%s0 + $0x30] sm:$0xff]
  %v30 = vld [vmem:[%s0 + $0x38] sm:$0xff]
  %v31 = vld [vmem:[%s0 + $0x40] sm:$0xff]
  %v32 = vld [vmem:[%s0 + $0x48] sm:$0xff]
  %v33 = vld [vmem:[%s0 + $0x50] sm:$0xff]
  %v34 = vld [vmem:[%s0 + $0x58] sm:$0xff]
  %v35 = vld [vmem:[%s0 + $0x60] sm:$0xff]
  %v36 = vld [vmem:[%s0 + $0x68] sm:$0xff]
  %v37 = vld [vmem:[%s0 + $0x70] sm:$0xff]
  %v38 = vld [vmem:[%s0 + $0x78] sm:$0xff]
  %v39 = vld [vmem:[%s0 + $0x80] sm:$0xff]
  %v40 = vld [vmem:[%s0 + $0x88] sm:$0xff]
  %v41 = vld [vmem:[%s0 + $0x90] sm:$0xff]
  %v42 = vld [vmem:[%s0 + $0x98] sm:$0xff]
  %v43 = vld [vmem:[%s0 + $0xa0] sm:$0xff]
  %v44 = vld [vmem:[%s1] sm:$0xff]
  %v45 = vlaneseq
  %v46 = vand.u32 %v45, 127
  %v47 = vcvt.s32.f32 %v46
  %49 = vset.pattern.permute.xlu0 0
  %50 = vperm.xlu0 %49, %v23
  %v51 = vpop.permute.xlu0 %50
  %54 = vset.pattern.permute.xlu0 0
  %55 = vperm.xlu0 %54, %v24
  %v56 = vpop.permute.xlu0 %55
  %59 = vset.pattern.permute.xlu0 0
  %60 = vperm.xlu0 %59, %v25
  %v61 = vpop.permute.xlu0 %60
  %64 = vset.pattern.permute.xlu0 0
  %65 = vperm.xlu0 %64, %v26
  %v66 = vpop.permute.xlu0 %65
  %69 = vset.pattern.permute.xlu0 0
  %70 = vperm.xlu0 %69, %v27
  %v71 = vpop.permute.xlu0 %70
  %74 = vset.pattern.permute.xlu0 0
  %75 = vperm.xlu0 %74, %v28
  %v76 = vpop.permute.xlu0 %75
  %79 = vset.pattern.permute.xlu0 0
  %80 = vperm.xlu0 %79, %v29
  %v81 = vpop.permute.xlu0 %80
  %84 = vset.pattern.permute.xlu0 0
  %85 = vperm.xlu0 %84, %v30
  %v86 = vpop.permute.xlu0 %85
  %89 = vset.pattern.permute.xlu0 0
  %90 = vperm.xlu0 %89, %v31
  %v91 = vpop.permute.xlu0 %90
  %94 = vset.pattern.permute.xlu0 0
  %95 = vperm.xlu0 %94, %v32
  %v96 = vpop.permute.xlu0 %95
  %99 = vset.pattern.permute.xlu0 0
  %100 = vperm.xlu0 %99, %v33
  %v101 = vpop.permute.xlu0 %100
  %104 = vset.pattern.permute.xlu0 0
  %105 = vperm.xlu0 %104, %v34
  %v106 = vpop.permute.xlu0 %105
  %109 = vset.pattern.permute.xlu0 0
  %110 = vperm.xlu0 %109, %v35
  %v111 = vpop.permute.xlu0 %110
  %114 = vset.pattern.permute.xlu0 0
  %115 = vperm.xlu0 %114, %v36
  %v116 = vpop.permute.xlu0 %115
  %119 = vset.pattern.permute.xlu0 0
  %120 = vperm.xlu0 %119, %v37
  %v121 = vpop.permute.xlu0 %120
  %124 = vset.pattern.permute.xlu0 0
  %125 = vperm.xlu0 %124, %v38
  %v126 = vpop.permute.xlu0 %125
  %129 = vset.pattern.permute.xlu0 0
  %130 = vperm.xlu0 %129, %v39
  %v131 = vpop.permute.xlu0 %130
  %134 = vset.pattern.permute.xlu0 0
  %135 = vperm.xlu0 %134, %v40
  %v136 = vpop.permute.xlu0 %135
  %139 = vset.pattern.permute.xlu0 0
  %140 = vperm.xlu0 %139, %v41
  %v141 = vpop.permute.xlu0 %140
  %144 = vset.pattern.permute.xlu0 0
  %145 = vperm.xlu0 %144, %v42
  %v146 = vpop.permute.xlu0 %145
  %149 = vset.pattern.permute.xlu0 0
  %150 = vperm.xlu0 %149, %v43
  %v151 = vpop.permute.xlu0 %150
  %vm153 = vcmp.eq.f32.partialorder %v51, %v47
  %vm154 = vcmp.eq.f32.partialorder %v56, %v47
  %vm155 = vcmp.eq.f32.partialorder %v61, %v47
  %vm156 = vcmp.eq.f32.partialorder %v66, %v47
  %vm157 = vcmp.eq.f32.partialorder %v71, %v47
  %vm158 = vcmp.eq.f32.partialorder %v76, %v47
  %vm159 = vcmp.eq.f32.partialorder %v81, %v47
  %vm160 = vcmp.eq.f32.partialorder %v86, %v47
  %vm161 = vcmp.eq.f32.partialorder %v91, %v47
  %vm162 = vcmp.eq.f32.partialorder %v96, %v47
  %vm163 = vcmp.eq.f32.partialorder %v101, %v47
  %vm164 = vcmp.eq.f32.partialorder %v106, %v47
  %vm165 = vcmp.eq.f32.partialorder %v111, %v47
  %vm166 = vcmp.eq.f32.partialorder %v116, %v47
  %vm167 = vcmp.eq.f32.partialorder %v121, %v47
  %vm168 = vcmp.eq.f32.partialorder %v126, %v47
  %vm169 = vcmp.eq.f32.partialorder %v131, %v47
  %vm170 = vcmp.eq.f32.partialorder %v136, %v47
  %vm171 = vcmp.eq.f32.partialorder %v141, %v47
  %vm172 = vcmp.eq.f32.partialorder %v146, %v47
  %vm173 = vcmp.eq.f32.partialorder %v151, %v47
  %v174 = vsel %vm153, 1, 0
  %v175 = vsel %vm154, 1, 0
  %v176 = vsel %vm155, 1, 0
  %v177 = vsel %vm156, 1, 0
  %v178 = vsel %vm157, 1, 0
  %v179 = vsel %vm158, 1, 0
  %v180 = vsel %vm159, 1, 0
  %v181 = vsel %vm160, 1, 0
  %v182 = vsel %vm161, 1, 0
  %v183 = vsel %vm162, 1, 0
  %v184 = vsel %vm163, 1, 0
  %v185 = vsel %vm164, 1, 0
  %v186 = vsel %vm165, 1, 0
  %v187 = vsel %vm166, 1, 0
  %v188 = vsel %vm167, 1, 0
  %v189 = vsel %vm168, 1, 0
  %v190 = vsel %vm169, 1, 0
  %v191 = vsel %vm170, 1, 0
  %v192 = vsel %vm171, 1, 0
  %v193 = vsel %vm172, 1, 0
  %v194 = vsel %vm173, 1, 0
  %v195 = vcvt.s32.f32 %v174
  %v196 = vcvt.s32.f32 %v175
  %v197 = vcvt.s32.f32 %v176
  %v198 = vcvt.s32.f32 %v177
  %v199 = vcvt.s32.f32 %v178
  %v200 = vcvt.s32.f32 %v179
  %v201 = vcvt.s32.f32 %v180
  %v202 = vcvt.s32.f32 %v181
  %v203 = vcvt.s32.f32 %v182
  %v204 = vcvt.s32.f32 %v183
  %v205 = vcvt.s32.f32 %v184
  %v206 = vcvt.s32.f32 %v185
  %v207 = vcvt.s32.f32 %v186
  %v208 = vcvt.s32.f32 %v187
  %v209 = vcvt.s32.f32 %v188
  %v210 = vcvt.s32.f32 %v189
  %v211 = vcvt.s32.f32 %v190
  %v212 = vcvt.s32.f32 %v191
  %v213 = vcvt.s32.f32 %v192
  %v214 = vcvt.s32.f32 %v193
  %v215 = vcvt.s32.f32 %v194
  %v216 = vld [vmem:[%s2] sm:$0xff]
  %v217 = vld [vmem:[%s2 + $0x8] sm:$0xff]
  %v218 = vld [vmem:[%s2 + $0x10] sm:$0xff]
  %v219 = vld [vmem:[%s2 + $0x18] sm:$0xff]
  %v220 = vld [vmem:[%s2 + $0x20] sm:$0xff]
  %v221 = vld [vmem:[%s2 + $0x28] sm:$0xff]
  %v222 = vld [vmem:[%s2 + $0x30] sm:$0xff]
  %v223 = vld [vmem:[%s2 + $0x38] sm:$0xff]
  %v224 = vld [vmem:[%s2 + $0x40] sm:$0xff]
  %v225 = vld [vmem:[%s2 + $0x48] sm:$0xff]
  %v226 = vld [vmem:[%s2 + $0x50] sm:$0xff]
  %v227 = vld [vmem:[%s2 + $0x58] sm:$0xff]
  %v228 = vld [vmem:[%s2 + $0x60] sm:$0xff]
  %v229 = vld [vmem:[%s2 + $0x68] sm:$0xff]
  %v230 = vld [vmem:[%s2 + $0x70] sm:$0xff]
  %v231 = vld [vmem:[%s2 + $0x78] sm:$0xff]
  %232 = vset.pattern.permute.xlu0 1
  %233 = vperm.xlu0 %232, %v23
  %v234 = vpop.permute.xlu0 %233
  %236 = vset.pattern.permute.xlu0 1
  %237 = vperm.xlu0 %236, %v24
  %v238 = vpop.permute.xlu0 %237
  %240 = vset.pattern.permute.xlu0 1
  %241 = vperm.xlu0 %240, %v25
  %v242 = vpop.permute.xlu0 %241
  %244 = vset.pattern.permute.xlu0 1
  %245 = vperm.xlu0 %244, %v26
  %v246 = vpop.permute.xlu0 %245
  %248 = vset.pattern.permute.xlu0 1
  %249 = vperm.xlu0 %248, %v27
  %v250 = vpop.permute.xlu0 %249
  %252 = vset.pattern.permute.xlu0 1
  %253 = vperm.xlu0 %252, %v28
  %v254 = vpop.permute.xlu0 %253
  %256 = vset.pattern.permute.xlu0 1
  %257 = vperm.xlu0 %256, %v29
  %v258 = vpop.permute.xlu0 %257
  %260 = vset.pattern.permute.xlu0 1
  %261 = vperm.xlu0 %260, %v30
  %v262 = vpop.permute.xlu0 %261
  %264 = vset.pattern.permute.xlu0 1
  %265 = vperm.xlu0 %264, %v31
  %v266 = vpop.permute.xlu0 %265
  %268 = vset.pattern.permute.xlu0 1
  %269 = vperm.xlu0 %268, %v32
  %v270 = vpop.permute.xlu0 %269
  %272 = vset.pattern.permute.xlu0 1
  %273 = vperm.xlu0 %272, %v33
  %v274 = vpop.permute.xlu0 %273
  %276 = vset.pattern.permute.xlu0 1
  %277 = vperm.xlu0 %276, %v34
  %v278 = vpop.permute.xlu0 %277
  %280 = vset.pattern.permute.xlu0 1
  %281 = vperm.xlu0 %280, %v35
  %v282 = vpop.permute.xlu0 %281
  %284 = vset.pattern.permute.xlu0 1
  %285 = vperm.xlu0 %284, %v36
  %v286 = vpop.permute.xlu0 %285
  %288 = vset.pattern.permute.xlu0 1
  %289 = vperm.xlu0 %288, %v37
  %v290 = vpop.permute.xlu0 %289
  %292 = vset.pattern.permute.xlu0 1
  %293 = vperm.xlu0 %292, %v38
  %v294 = vpop.permute.xlu0 %293
  %296 = vset.pattern.permute.xlu0 1
  %297 = vperm.xlu0 %296, %v39
  %v298 = vpop.permute.xlu0 %297
  %300 = vset.pattern.permute.xlu0 1
  %301 = vperm.xlu0 %300, %v40
  %v302 = vpop.permute.xlu0 %301
  %304 = vset.pattern.permute.xlu0 1
  %305 = vperm.xlu0 %304, %v41
  %v306 = vpop.permute.xlu0 %305
  %308 = vset.pattern.permute.xlu0 1
  %309 = vperm.xlu0 %308, %v42
  %v310 = vpop.permute.xlu0 %309
  %312 = vset.pattern.permute.xlu0 1
  %313 = vperm.xlu0 %312, %v43
  %v314 = vpop.permute.xlu0 %313
  %v316 = vlaneseq
  %v317 = vshrl.u32 %v316, 7
  %v318 = vsub.s32 0, %v317
  %v319 = vrot.slane %v44, %v318
  %v320 = vmul.f32 %v234, %v319
  %v321 = vmul.f32 %v238, %v319
  %v322 = vmul.f32 %v242, %v319
  %v323 = vmul.f32 %v246, %v319
  %v324 = vmul.f32 %v250, %v319
  %v325 = vmul.f32 %v254, %v319
  %v326 = vmul.f32 %v258, %v319
  %v327 = vmul.f32 %v262, %v319
  %v328 = vmul.f32 %v266, %v319
  %v329 = vmul.f32 %v270, %v319
  %v330 = vmul.f32 %v274, %v319
  %v331 = vmul.f32 %v278, %v319
  %v332 = vmul.f32 %v282, %v319
  %v333 = vmul.f32 %v286, %v319
  %v334 = vmul.f32 %v290, %v319
  %v335 = vmul.f32 %v294, %v319
  %v336 = vmul.f32 %v298, %v319
  %v337 = vmul.f32 %v302, %v319
  %v338 = vmul.f32 %v306, %v319
  %v339 = vmul.f32 %v310, %v319
  %v340 = vmul.f32 %v314, %v319
  %v341 = vlaneseq
  %v342 = vshrl.u32 %v341, 7
  %v343 = vsub.s32 1, %v342
  %v344 = vrot.slane %v44, %v343
  %v345 = vadd.f32 %v320, %v344
  %v346 = vadd.f32 %v321, %v344
  %v347 = vadd.f32 %v322, %v344
  %v348 = vadd.f32 %v323, %v344
  %v349 = vadd.f32 %v324, %v344
  %v350 = vadd.f32 %v325, %v344
  %v351 = vadd.f32 %v326, %v344
  %v352 = vadd.f32 %v327, %v344
  %v353 = vadd.f32 %v328, %v344
  %v354 = vadd.f32 %v329, %v344
  %v355 = vadd.f32 %v330, %v344
  %v356 = vadd.f32 %v331, %v344
  %v357 = vadd.f32 %v332, %v344
  %v358 = vadd.f32 %v333, %v344
  %v359 = vadd.f32 %v334, %v344
  %v360 = vadd.f32 %v335, %v344
  %v361 = vadd.f32 %v336, %v344
  %v362 = vadd.f32 %v337, %v344
  %v363 = vadd.f32 %v338, %v344
  %v364 = vadd.f32 %v339, %v344
  %v365 = vadd.f32 %v340, %v344
  %v366 = vand.u32 2147483647, %v345
  %vm367 = vcmp.le.f32.partialorder %v366, 0.7853982
  %vm368 = vcmp.lt.s32.totalorder %v345, 0
  %v369 = vand.u32 %v345, 2139095040
  %v370 = vshrl.u32 %v369, 23
  %v371 = vsub.s32 %v370, 127
  %v372 = vand.u32 2147483647, %v345
  %v373 = vand.u32 %v372, 8388607
  %v374 = vor.u32 %v373, 8388608
  %v375 = vsub.s32 0, %v374
  %v376 = vadd.s32 %v371, 1
  %vm377 = vcmp.gt.s32.totalorder %v376, 0
  %v378 = vsel %vm377, %v376, 0
  %v379 = vshrl.u32 %v378, 5
  %v380 = vand.u32 %v378, 31
  %v381 = vsub.s32 32, %v380
  %v382 = vshrl.u32 683565275, %v381
  %v383 = vshll.u32 683565275, %v380
  %v384 = vshrl.u32 2475754826, %v381
  %v385 = vor.u32 %v383, %v384
  %v386 = vshll.u32 2475754826, %v380
  %v387 = vshrl.u32 2131351028, %v381
  %v388 = vor.u32 %v386, %v387
  %v389 = vshll.u32 2131351028, %v380
  %v390 = vshrl.u32 2102212464, %v381
  %v391 = vor.u32 %v389, %v390
  %v392 = vshll.u32 2102212464, %v380
  %v393 = vshrl.u32 920167782, %v381
  %v394 = vor.u32 %v392, %v393
  %v395 = vshll.u32 920167782, %v380
  %v396 = vshrl.u32 1326507024, %v381
  %v397 = vor.u32 %v395, %v396
  %vm398 = vcmp.lt.s32.totalorder %v379, 1
  %vm399 = vcmp.lt.s32.totalorder %v379, 2
  %vm400 = vcmp.lt.s32.totalorder %v379, 3
  %vm401 = vcmp.lt.s32.totalorder %v379, 4
  %v402 = vsel %vm398, %v382, %v385
  %v403 = vsel %vm401, %v391, 2102212464
  %v404 = vsel %vm400, %v388, %v403
  %v405 = vsel %vm399, %v402, %v404
  %v406 = vsel %vm398, %v385, %v388
  %v407 = vsel %vm401, %v394, 920167782
  %v408 = vsel %vm400, %v391, %v407
  %v409 = vsel %vm399, %v406, %v408
  %v410 = vsel %vm398, %v388, %v391
  %v411 = vsel %vm401, %v397, 1326507024
  %v412 = vsel %vm400, %v394, %v411
  %v413 = vsel %vm399, %v410, %v412
  %v414 = vshll.u32 %v374, 8
  %v415 = vmul.u32.u64.compose %v414, %v413
  %v416 = vextract.low.u32 %v415
  %v417 = vextract.high.u32 %v415
  %v418 = vmul.u32.u64.compose %v414, %v409
  %v419 = vextract.low.u32 %v418
  %v420 = vextract.high.u32 %v418
  %v421 = vmul.u32 %v414, %v405
  %v422 = vadd.s32 %v417, %v419
  %vm423 = vc.u32 %v417, %v419
  %v424 = vadd.s32 %v420, 1
  %v425 = vsel %vm423, %v424, %v420
  %v426 = vadd.s32 %v421, %v425
  %v427 = vadd.s32 %v426, 536870912
  %v428 = vshrl.u32 %v427, 30
  %v429 = vshll.u32 %v428, 30
  %v430 = vsub.s32 %v426, %v429
  %vm431 = vcmp.lt.s32.totalorder %v430, 0
  %v432 = vsub.s32 0, %v430
  %v433 = vsel %vm431, %v432, %v430
  %v434 = vclz %v433
  %v435 = vsub.s32 %v434, 2
  %vm436 = vcmp.gt.s32.totalorder 0, %v435
  %v437 = vsel %vm436, 0, %v435
  %v438 = vsub.s32 32, %v437
  %v439 = vshll.u32 %v430, %v437
  %v440 = vshrl.u32 %v422, %v438
  %v441 = vor.u32 %v439, %v440
  %v442 = vsub.s32 4294967266, %v437
  %v443 = vadd.s32 %v442, 127
  %v444 = vshll.u32 %v443, 23
  %v445 = vor.u32 4788187, %v444
  %v446 = vand.u32 2147483647, %v445
  %v448 = vcvt.s32.f32 %v441
  %v449 = vmul.f32 %v448, %v446
  %v450 = vxor.u32 %v449, 2147483648
  %v451 = vsel %vm368, %v450, %v449
  %v452 = vsub.s32 4, %v428
  %v453 = vsel %vm368, %v452, %v428
  %v454 = vsel %vm367, %v345, %v451
  %v455 = vsel %vm367, 0, %v453
  %v456 = vcosq.f32.pop %v454
  %v457 = vsinq.f32.pop %v454
  %vm458 = vweird.f32 %v345
  %v459 = vadd.s32 %v455, 3
  %v460 = vand.u32 %v459, 3
  %vm461 = vcmp.lt.s32.totalorder %v460, 2
  %vm462 = vcmp.eq.s32.totalorder %v460, 0
  %v463 = vxor.u32 %v457, 2147483648
  %v464 = vsel %vm462, %v456, %v463
  %vm465 = vcmp.eq.s32.totalorder %v460, 2
  %v466 = vxor.u32 %v456, 2147483648
  %v467 = vsel %vm465, %v466, %v457
  %v468 = vsel %vm461, %v464, %v467
  %v469 = vsel %vm458, nan, %v468
  %v470 = vand.u32 2147483647, %v346
  %vm471 = vcmp.le.f32.partialorder %v470, 0.7853982
  %vm472 = vcmp.lt.s32.totalorder %v346, 0
  %v473 = vand.u32 %v346, 2139095040
  %v474 = vshrl.u32 %v473, 23
  %v475 = vsub.s32 %v474, 127
  %v476 = vand.u32 2147483647, %v346
  %v477 = vand.u32 %v476, 8388607
  %v478 = vor.u32 %v477, 8388608
  %v479 = vsub.s32 0, %v478
  %v480 = vadd.s32 %v475, 1
  %vm481 = vcmp.gt.s32.totalorder %v480, 0
  %v482 = vsel %vm481, %v480, 0
  %v483 = vshrl.u32 %v482, 5
  %v484 = vand.u32 %v482, 31
  %v485 = vsub.s32 32, %v484
  %v486 = vshrl.u32 683565275, %v485
  %v487 = vshll.u32 683565275, %v484
  %v488 = vshrl.u32 2475754826, %v485
  %v489 = vor.u32 %v487, %v488
  %v490 = vshll.u32 2475754826, %v484
  %v491 = vshrl.u32 2131351028, %v485
  %v492 = vor.u32 %v490, %v491
  %v493 = vshll.u32 2131351028, %v484
  %v494 = vshrl.u32 2102212464, %v485
  %v495 = vor.u32 %v493, %v494
  %v496 = vshll.u32 2102212464, %v484
  %v497 = vshrl.u32 920167782, %v485
  %v498 = vor.u32 %v496, %v497
  %v499 = vshll.u32 920167782, %v484
  %v500 = vshrl.u32 1326507024, %v485
  %v501 = vor.u32 %v499, %v500
  %vm502 = vcmp.lt.s32.totalorder %v483, 1
  %vm503 = vcmp.lt.s32.totalorder %v483, 2
  %vm504 = vcmp.lt.s32.totalorder %v483, 3
  %vm505 = vcmp.lt.s32.totalorder %v483, 4
  %v506 = vsel %vm502, %v486, %v489
  %v507 = vsel %vm505, %v495, 2102212464
  %v508 = vsel %vm504, %v492, %v507
  %v509 = vsel %vm503, %v506, %v508
  %v510 = vsel %vm502, %v489, %v492
  %v511 = vsel %vm505, %v498, 920167782
  %v512 = vsel %vm504, %v495, %v511
  %v513 = vsel %vm503, %v510, %v512
  %v514 = vsel %vm502, %v492, %v495
  %v515 = vsel %vm505, %v501, 1326507024
  %v516 = vsel %vm504, %v498, %v515
  %v517 = vsel %vm503, %v514, %v516
  %v518 = vshll.u32 %v478, 8
  %v519 = vmul.u32.u64.compose %v518, %v517
  %v520 = vextract.low.u32 %v519
  %v521 = vextract.high.u32 %v519
  %v522 = vmul.u32.u64.compose %v518, %v513
  %v523 = vextract.low.u32 %v522
  %v524 = vextract.high.u32 %v522
  %v525 = vmul.u32 %v518, %v509
  %v526 = vadd.s32 %v521, %v523
  %vm527 = vc.u32 %v521, %v523
  %v528 = vadd.s32 %v524, 1
  %v529 = vsel %vm527, %v528, %v524
  %v530 = vadd.s32 %v525, %v529
  %v531 = vadd.s32 %v530, 536870912
  %v532 = vshrl.u32 %v531, 30
  %v533 = vshll.u32 %v532, 30
  %v534 = vsub.s32 %v530, %v533
  %vm535 = vcmp.lt.s32.totalorder %v534, 0
  %v536 = vsub.s32 0, %v534
  %v537 = vsel %vm535, %v536, %v534
  %v538 = vclz %v537
  %v539 = vsub.s32 %v538, 2
  %vm540 = vcmp.gt.s32.totalorder 0, %v539
  %v541 = vsel %vm540, 0, %v539
  %v542 = vsub.s32 32, %v541
  %v543 = vshll.u32 %v534, %v541
  %v544 = vshrl.u32 %v526, %v542
  %v545 = vor.u32 %v543, %v544
  %v546 = vsub.s32 4294967266, %v541
  %v547 = vadd.s32 %v546, 127
  %v548 = vshll.u32 %v547, 23
  %v549 = vor.u32 4788187, %v548
  %v550 = vand.u32 2147483647, %v549
  %v552 = vcvt.s32.f32 %v545
  %v553 = vmul.f32 %v552, %v550
  %v554 = vxor.u32 %v553, 2147483648
  %v555 = vsel %vm472, %v554, %v553
  %v556 = vsub.s32 4, %v532
  %v557 = vsel %vm472, %v556, %v532
  %v558 = vsel %vm471, %v346, %v555
  %v559 = vsel %vm471, 0, %v557
  %v560 = vcosq.f32.pop %v558
  %v561 = vsinq.f32.pop %v558
  %vm562 = vweird.f32 %v346
  %v563 = vadd.s32 %v559, 3
  %v564 = vand.u32 %v563, 3
  %vm565 = vcmp.lt.s32.totalorder %v564, 2
  %vm566 = vcmp.eq.s32.totalorder %v564, 0
  %v567 = vxor.u32 %v561, 2147483648
  %v568 = vsel %vm566, %v560, %v567
  %vm569 = vcmp.eq.s32.totalorder %v564, 2
  %v570 = vxor.u32 %v560, 2147483648
  %v571 = vsel %vm569, %v570, %v561
  %v572 = vsel %vm565, %v568, %v571
  %v573 = vsel %vm562, nan, %v572
  %v574 = vand.u32 2147483647, %v347
  %vm575 = vcmp.le.f32.partialorder %v574, 0.7853982
  %vm576 = vcmp.lt.s32.totalorder %v347, 0
  %v577 = vand.u32 %v347, 2139095040
  %v578 = vshrl.u32 %v577, 23
  %v579 = vsub.s32 %v578, 127
  %v580 = vand.u32 2147483647, %v347
  %v581 = vand.u32 %v580, 8388607
  %v582 = vor.u32 %v581, 8388608
  %v583 = vsub.s32 0, %v582
  %v584 = vadd.s32 %v579, 1
  %vm585 = vcmp.gt.s32.totalorder %v584, 0
  %v586 = vsel %vm585, %v584, 0
  %v587 = vshrl.u32 %v586, 5
  %v588 = vand.u32 %v586, 31
  %v589 = vsub.s32 32, %v588
  %v590 = vshrl.u32 683565275, %v589
  %v591 = vshll.u32 683565275, %v588
  %v592 = vshrl.u32 2475754826, %v589
  %v593 = vor.u32 %v591, %v592
  %v594 = vshll.u32 2475754826, %v588
  %v595 = vshrl.u32 2131351028, %v589
  %v596 = vor.u32 %v594, %v595
  %v597 = vshll.u32 2131351028, %v588
  %v598 = vshrl.u32 2102212464, %v589
  %v599 = vor.u32 %v597, %v598
  %v600 = vshll.u32 2102212464, %v588
  %v601 = vshrl.u32 920167782, %v589
  %v602 = vor.u32 %v600, %v601
  %v603 = vshll.u32 920167782, %v588
  %v604 = vshrl.u32 1326507024, %v589
  %v605 = vor.u32 %v603, %v604
  %vm606 = vcmp.lt.s32.totalorder %v587, 1
  %vm607 = vcmp.lt.s32.totalorder %v587, 2
  %vm608 = vcmp.lt.s32.totalorder %v587, 3
  %vm609 = vcmp.lt.s32.totalorder %v587, 4
  %v610 = vsel %vm606, %v590, %v593
  %v611 = vsel %vm609, %v599, 2102212464
  %v612 = vsel %vm608, %v596, %v611
  %v613 = vsel %vm607, %v610, %v612
  %v614 = vsel %vm606, %v593, %v596
  %v615 = vsel %vm609, %v602, 920167782
  %v616 = vsel %vm608, %v599, %v615
  %v617 = vsel %vm607, %v614, %v616
  %v618 = vsel %vm606, %v596, %v599
  %v619 = vsel %vm609, %v605, 1326507024
  %v620 = vsel %vm608, %v602, %v619
  %v621 = vsel %vm607, %v618, %v620
  %v622 = vshll.u32 %v582, 8
  %v623 = vmul.u32.u64.compose %v622, %v621
  %v624 = vextract.low.u32 %v623
  %v625 = vextract.high.u32 %v623
  %v626 = vmul.u32.u64.compose %v622, %v617
  %v627 = vextract.low.u32 %v626
  %v628 = vextract.high.u32 %v626
  %v629 = vmul.u32 %v622, %v613
  %v630 = vadd.s32 %v625, %v627
  %vm631 = vc.u32 %v625, %v627
  %v632 = vadd.s32 %v628, 1
  %v633 = vsel %vm631, %v632, %v628
  %v634 = vadd.s32 %v629, %v633
  %v635 = vadd.s32 %v634, 536870912
  %v636 = vshrl.u32 %v635, 30
  %v637 = vshll.u32 %v636, 30
  %v638 = vsub.s32 %v634, %v637
  %vm639 = vcmp.lt.s32.totalorder %v638, 0
  %v640 = vsub.s32 0, %v638
  %v641 = vsel %vm639, %v640, %v638
  %v642 = vclz %v641
  %v643 = vsub.s32 %v642, 2
  %vm644 = vcmp.gt.s32.totalorder 0, %v643
  %v645 = vsel %vm644, 0, %v643
  %v646 = vsub.s32 32, %v645
  %v647 = vshll.u32 %v638, %v645
  %v648 = vshrl.u32 %v630, %v646
  %v649 = vor.u32 %v647, %v648
  %v650 = vsub.s32 4294967266, %v645
  %v651 = vadd.s32 %v650, 127
  %v652 = vshll.u32 %v651, 23
  %v653 = vor.u32 4788187, %v652
  %v654 = vand.u32 2147483647, %v653
  %v656 = vcvt.s32.f32 %v649
  %v657 = vmul.f32 %v656, %v654
  %v658 = vxor.u32 %v657, 2147483648
  %v659 = vsel %vm576, %v658, %v657
  %v660 = vsub.s32 4, %v636
  %v661 = vsel %vm576, %v660, %v636
  %v662 = vsel %vm575, %v347, %v659
  %v663 = vsel %vm575, 0, %v661
  %v664 = vcosq.f32.pop %v662
  %v665 = vsinq.f32.pop %v662
  %vm666 = vweird.f32 %v347
  %v667 = vadd.s32 %v663, 3
  %v668 = vand.u32 %v667, 3
  %vm669 = vcmp.lt.s32.totalorder %v668, 2
  %vm670 = vcmp.eq.s32.totalorder %v668, 0
  %v671 = vxor.u32 %v665, 2147483648
  %v672 = vsel %vm670, %v664, %v671
  %vm673 = vcmp.eq.s32.totalorder %v668, 2
  %v674 = vxor.u32 %v664, 2147483648
  %v675 = vsel %vm673, %v674, %v665
  %v676 = vsel %vm669, %v672, %v675
  %v677 = vsel %vm666, nan, %v676
  %v678 = vand.u32 2147483647, %v348
  %vm679 = vcmp.le.f32.partialorder %v678, 0.7853982
  %vm680 = vcmp.lt.s32.totalorder %v348, 0
  %v681 = vand.u32 %v348, 2139095040
  %v682 = vshrl.u32 %v681, 23
  %v683 = vsub.s32 %v682, 127
  %v684 = vand.u32 2147483647, %v348
  %v685 = vand.u32 %v684, 8388607
  %v686 = vor.u32 %v685, 8388608
  %v687 = vsub.s32 0, %v686
  %v688 = vadd.s32 %v683, 1
  %vm689 = vcmp.gt.s32.totalorder %v688, 0
  %v690 = vsel %vm689, %v688, 0
  %v691 = vshrl.u32 %v690, 5
  %v692 = vand.u32 %v690, 31
  %v693 = vsub.s32 32, %v692
  %v694 = vshrl.u32 683565275, %v693
  %v695 = vshll.u32 683565275, %v692
  %v696 = vshrl.u32 2475754826, %v693
  %v697 = vor.u32 %v695, %v696
  %v698 = vshll.u32 2475754826, %v692
  %v699 = vshrl.u32 2131351028, %v693
  %v700 = vor.u32 %v698, %v699
  %v701 = vshll.u32 2131351028, %v692
  %v702 = vshrl.u32 2102212464, %v693
  %v703 = vor.u32 %v701, %v702
  %v704 = vshll.u32 2102212464, %v692
  %v705 = vshrl.u32 920167782, %v693
  %v706 = vor.u32 %v704, %v705
  %v707 = vshll.u32 920167782, %v692
  %v708 = vshrl.u32 1326507024, %v693
  %v709 = vor.u32 %v707, %v708
  %vm710 = vcmp.lt.s32.totalorder %v691, 1
  %vm711 = vcmp.lt.s32.totalorder %v691, 2
  %vm712 = vcmp.lt.s32.totalorder %v691, 3
  %vm713 = vcmp.lt.s32.totalorder %v691, 4
  %v714 = vsel %vm710, %v694, %v697
  %v715 = vsel %vm713, %v703, 2102212464
  %v716 = vsel %vm712, %v700, %v715
  %v717 = vsel %vm711, %v714, %v716
  %v718 = vsel %vm710, %v697, %v700
  %v719 = vsel %vm713, %v706, 920167782
  %v720 = vsel %vm712, %v703, %v719
  %v721 = vsel %vm711, %v718, %v720
  %v722 = vsel %vm710, %v700, %v703
  %v723 = vsel %vm713, %v709, 1326507024
  %v724 = vsel %vm712, %v706, %v723
  %v725 = vsel %vm711, %v722, %v724
  %v726 = vshll.u32 %v686, 8
  %v727 = vmul.u32.u64.compose %v726, %v725
  %v728 = vextract.low.u32 %v727
  %v729 = vextract.high.u32 %v727
  %v730 = vmul.u32.u64.compose %v726, %v721
  %v731 = vextract.low.u32 %v730
  %v732 = vextract.high.u32 %v730
  %v733 = vmul.u32 %v726, %v717
  %v734 = vadd.s32 %v729, %v731
  %vm735 = vc.u32 %v729, %v731
  %v736 = vadd.s32 %v732, 1
  %v737 = vsel %vm735, %v736, %v732
  %v738 = vadd.s32 %v733, %v737
  %v739 = vadd.s32 %v738, 536870912
  %v740 = vshrl.u32 %v739, 30
  %v741 = vshll.u32 %v740, 30
  %v742 = vsub.s32 %v738, %v741
  %vm743 = vcmp.lt.s32.totalorder %v742, 0
  %v744 = vsub.s32 0, %v742
  %v745 = vsel %vm743, %v744, %v742
  %v746 = vclz %v745
  %v747 = vsub.s32 %v746, 2
  %vm748 = vcmp.gt.s32.totalorder 0, %v747
  %v749 = vsel %vm748, 0, %v747
  %v750 = vsub.s32 32, %v749
  %v751 = vshll.u32 %v742, %v749
  %v752 = vshrl.u32 %v734, %v750
  %v753 = vor.u32 %v751, %v752
  %v754 = vsub.s32 4294967266, %v749
  %v755 = vadd.s32 %v754, 127
  %v756 = vshll.u32 %v755, 23
  %v757 = vor.u32 4788187, %v756
  %v758 = vand.u32 2147483647, %v757
  %v760 = vcvt.s32.f32 %v753
  %v761 = vmul.f32 %v760, %v758
  %v762 = vxor.u32 %v761, 2147483648
  %v763 = vsel %vm680, %v762, %v761
  %v764 = vsub.s32 4, %v740
  %v765 = vsel %vm680, %v764, %v740
  %v766 = vsel %vm679, %v348, %v763
  %v767 = vsel %vm679, 0, %v765
  %v768 = vcosq.f32.pop %v766
  %v769 = vsinq.f32.pop %v766
  %vm770 = vweird.f32 %v348
  %v771 = vadd.s32 %v767, 3
  %v772 = vand.u32 %v771, 3
  %vm773 = vcmp.lt.s32.totalorder %v772, 2
  %vm774 = vcmp.eq.s32.totalorder %v772, 0
  %v775 = vxor.u32 %v769, 2147483648
  %v776 = vsel %vm774, %v768, %v775
  %vm777 = vcmp.eq.s32.totalorder %v772, 2
  %v778 = vxor.u32 %v768, 2147483648
  %v779 = vsel %vm777, %v778, %v769
  %v780 = vsel %vm773, %v776, %v779
  %v781 = vsel %vm770, nan, %v780
  %v782 = vand.u32 2147483647, %v349
  %vm783 = vcmp.le.f32.partialorder %v782, 0.7853982
  %vm784 = vcmp.lt.s32.totalorder %v349, 0
  %v785 = vand.u32 %v349, 2139095040
  %v786 = vshrl.u32 %v785, 23
  %v787 = vsub.s32 %v786, 127
  %v788 = vand.u32 2147483647, %v349
  %v789 = vand.u32 %v788, 8388607
  %v790 = vor.u32 %v789, 8388608
  %v791 = vsub.s32 0, %v790
  %v792 = vadd.s32 %v787, 1
  %vm793 = vcmp.gt.s32.totalorder %v792, 0
  %v794 = vsel %vm793, %v792, 0
  %v795 = vshrl.u32 %v794, 5
  %v796 = vand.u32 %v794, 31
  %v797 = vsub.s32 32, %v796
  %v798 = vshrl.u32 683565275, %v797
  %v799 = vshll.u32 683565275, %v796
  %v800 = vshrl.u32 2475754826, %v797
  %v801 = vor.u32 %v799, %v800
  %v802 = vshll.u32 2475754826, %v796
  %v803 = vshrl.u32 2131351028, %v797
  %v804 = vor.u32 %v802, %v803
  %v805 = vshll.u32 2131351028, %v796
  %v806 = vshrl.u32 2102212464, %v797
  %v807 = vor.u32 %v805, %v806
  %v808 = vshll.u32 2102212464, %v796
  %v809 = vshrl.u32 920167782, %v797
  %v810 = vor.u32 %v808, %v809
  %v811 = vshll.u32 920167782, %v796
  %v812 = vshrl.u32 1326507024, %v797
  %v813 = vor.u32 %v811, %v812
  %vm814 = vcmp.lt.s32.totalorder %v795, 1
  %vm815 = vcmp.lt.s32.totalorder %v795, 2
  %vm816 = vcmp.lt.s32.totalorder %v795, 3
  %vm817 = vcmp.lt.s32.totalorder %v795, 4
  %v818 = vsel %vm814, %v798, %v801
  %v819 = vsel %vm817, %v807, 2102212464
  %v820 = vsel %vm816, %v804, %v819
  %v821 = vsel %vm815, %v818, %v820
  %v822 = vsel %vm814, %v801, %v804
  %v823 = vsel %vm817, %v810, 920167782
  %v824 = vsel %vm816, %v807, %v823
  %v825 = vsel %vm815, %v822, %v824
  %v826 = vsel %vm814, %v804, %v807
  %v827 = vsel %vm817, %v813, 1326507024
  %v828 = vsel %vm816, %v810, %v827
  %v829 = vsel %vm815, %v826, %v828
  %v830 = vshll.u32 %v790, 8
  %v831 = vmul.u32.u64.compose %v830, %v829
  %v832 = vextract.low.u32 %v831
  %v833 = vextract.high.u32 %v831
  %v834 = vmul.u32.u64.compose %v830, %v825
  %v835 = vextract.low.u32 %v834
  %v836 = vextract.high.u32 %v834
  %v837 = vmul.u32 %v830, %v821
  %v838 = vadd.s32 %v833, %v835
  %vm839 = vc.u32 %v833, %v835
  %v840 = vadd.s32 %v836, 1
  %v841 = vsel %vm839, %v840, %v836
  %v842 = vadd.s32 %v837, %v841
  %v843 = vadd.s32 %v842, 536870912
  %v844 = vshrl.u32 %v843, 30
  %v845 = vshll.u32 %v844, 30
  %v846 = vsub.s32 %v842, %v845
  %vm847 = vcmp.lt.s32.totalorder %v846, 0
  %v848 = vsub.s32 0, %v846
  %v849 = vsel %vm847, %v848, %v846
  %v850 = vclz %v849
  %v851 = vsub.s32 %v850, 2
  %vm852 = vcmp.gt.s32.totalorder 0, %v851
  %v853 = vsel %vm852, 0, %v851
  %v854 = vsub.s32 32, %v853
  %v855 = vshll.u32 %v846, %v853
  %v856 = vshrl.u32 %v838, %v854
  %v857 = vor.u32 %v855, %v856
  %v858 = vsub.s32 4294967266, %v853
  %v859 = vadd.s32 %v858, 127
  %v860 = vshll.u32 %v859, 23
  %v861 = vor.u32 4788187, %v860
  %v862 = vand.u32 2147483647, %v861
  %v864 = vcvt.s32.f32 %v857
  %v865 = vmul.f32 %v864, %v862
  %v866 = vxor.u32 %v865, 2147483648
  %v867 = vsel %vm784, %v866, %v865
  %v868 = vsub.s32 4, %v844
  %v869 = vsel %vm784, %v868, %v844
  %v870 = vsel %vm783, %v349, %v867
  %v871 = vsel %vm783, 0, %v869
  %v872 = vcosq.f32.pop %v870
  %v873 = vsinq.f32.pop %v870
  %vm874 = vweird.f32 %v349
  %v875 = vadd.s32 %v871, 3
  %v876 = vand.u32 %v875, 3
  %vm877 = vcmp.lt.s32.totalorder %v876, 2
  %vm878 = vcmp.eq.s32.totalorder %v876, 0
  %v879 = vxor.u32 %v873, 2147483648
  %v880 = vsel %vm878, %v872, %v879
  %vm881 = vcmp.eq.s32.totalorder %v876, 2
  %v882 = vxor.u32 %v872, 2147483648
  %v883 = vsel %vm881, %v882, %v873
  %v884 = vsel %vm877, %v880, %v883
  %v885 = vsel %vm874, nan, %v884
  %v886 = vand.u32 2147483647, %v350
  %vm887 = vcmp.le.f32.partialorder %v886, 0.7853982
  %vm888 = vcmp.lt.s32.totalorder %v350, 0
  %v889 = vand.u32 %v350, 2139095040
  %v890 = vshrl.u32 %v889, 23
  %v891 = vsub.s32 %v890, 127
  %v892 = vand.u32 2147483647, %v350
  %v893 = vand.u32 %v892, 8388607
  %v894 = vor.u32 %v893, 8388608
  %v895 = vsub.s32 0, %v894
  %v896 = vadd.s32 %v891, 1
  %vm897 = vcmp.gt.s32.totalorder %v896, 0
  %v898 = vsel %vm897, %v896, 0
  %v899 = vshrl.u32 %v898, 5
  %v900 = vand.u32 %v898, 31
  %v901 = vsub.s32 32, %v900
  %v902 = vshrl.u32 683565275, %v901
  %v903 = vshll.u32 683565275, %v900
  %v904 = vshrl.u32 2475754826, %v901
  %v905 = vor.u32 %v903, %v904
  %v906 = vshll.u32 2475754826, %v900
  %v907 = vshrl.u32 2131351028, %v901
  %v908 = vor.u32 %v906, %v907
  %v909 = vshll.u32 2131351028, %v900
  %v910 = vshrl.u32 2102212464, %v901
  %v911 = vor.u32 %v909, %v910
  %v912 = vshll.u32 2102212464, %v900
  %v913 = vshrl.u32 920167782, %v901
  %v914 = vor.u32 %v912, %v913
  %v915 = vshll.u32 920167782, %v900
  %v916 = vshrl.u32 1326507024, %v901
  %v917 = vor.u32 %v915, %v916
  %vm918 = vcmp.lt.s32.totalorder %v899, 1
  %vm919 = vcmp.lt.s32.totalorder %v899, 2
  %vm920 = vcmp.lt.s32.totalorder %v899, 3
  %vm921 = vcmp.lt.s32.totalorder %v899, 4
  %v922 = vsel %vm918, %v902, %v905
  %v923 = vsel %vm921, %v911, 2102212464
  %v924 = vsel %vm920, %v908, %v923
  %v925 = vsel %vm919, %v922, %v924
  %v926 = vsel %vm918, %v905, %v908
  %v927 = vsel %vm921, %v914, 920167782
  %v928 = vsel %vm920, %v911, %v927
  %v929 = vsel %vm919, %v926, %v928
  %v930 = vsel %vm918, %v908, %v911
  %v931 = vsel %vm921, %v917, 1326507024
  %v932 = vsel %vm920, %v914, %v931
  %v933 = vsel %vm919, %v930, %v932
  %v934 = vshll.u32 %v894, 8
  %v935 = vmul.u32.u64.compose %v934, %v933
  %v936 = vextract.low.u32 %v935
  %v937 = vextract.high.u32 %v935
  %v938 = vmul.u32.u64.compose %v934, %v929
  %v939 = vextract.low.u32 %v938
  %v940 = vextract.high.u32 %v938
  %v941 = vmul.u32 %v934, %v925
  %v942 = vadd.s32 %v937, %v939
  %vm943 = vc.u32 %v937, %v939
  %v944 = vadd.s32 %v940, 1
  %v945 = vsel %vm943, %v944, %v940
  %v946 = vadd.s32 %v941, %v945
  %v947 = vadd.s32 %v946, 536870912
  %v948 = vshrl.u32 %v947, 30
  %v949 = vshll.u32 %v948, 30
  %v950 = vsub.s32 %v946, %v949
  %vm951 = vcmp.lt.s32.totalorder %v950, 0
  %v952 = vsub.s32 0, %v950
  %v953 = vsel %vm951, %v952, %v950
  %v954 = vclz %v953
  %v955 = vsub.s32 %v954, 2
  %vm956 = vcmp.gt.s32.totalorder 0, %v955
  %v957 = vsel %vm956, 0, %v955
  %v958 = vsub.s32 32, %v957
  %v959 = vshll.u32 %v950, %v957
  %v960 = vshrl.u32 %v942, %v958
  %v961 = vor.u32 %v959, %v960
  %v962 = vsub.s32 4294967266, %v957
  %v963 = vadd.s32 %v962, 127
  %v964 = vshll.u32 %v963, 23
  %v965 = vor.u32 4788187, %v964
  %v966 = vand.u32 2147483647, %v965
  %v968 = vcvt.s32.f32 %v961
  %v969 = vmul.f32 %v968, %v966
  %v970 = vxor.u32 %v969, 2147483648
  %v971 = vsel %vm888, %v970, %v969
  %v972 = vsub.s32 4, %v948
  %v973 = vsel %vm888, %v972, %v948
  %v974 = vsel %vm887, %v350, %v971
  %v975 = vsel %vm887, 0, %v973
  %v976 = vcosq.f32.pop %v974
  %v977 = vsinq.f32.pop %v974
  %vm978 = vweird.f32 %v350
  %v979 = vadd.s32 %v975, 3
  %v980 = vand.u32 %v979, 3
  %vm981 = vcmp.lt.s32.totalorder %v980, 2
  %vm982 = vcmp.eq.s32.totalorder %v980, 0
  %v983 = vxor.u32 %v977, 2147483648
  %v984 = vsel %vm982, %v976, %v983
  %vm985 = vcmp.eq.s32.totalorder %v980, 2
  %v986 = vxor.u32 %v976, 2147483648
  %v987 = vsel %vm985, %v986, %v977
  %v988 = vsel %vm981, %v984, %v987
  %v989 = vsel %vm978, nan, %v988
  %v990 = vand.u32 2147483647, %v351
  %vm991 = vcmp.le.f32.partialorder %v990, 0.7853982
  %vm992 = vcmp.lt.s32.totalorder %v351, 0
  %v993 = vand.u32 %v351, 2139095040
  %v994 = vshrl.u32 %v993, 23
  %v995 = vsub.s32 %v994, 127
  %v996 = vand.u32 2147483647, %v351
  %v997 = vand.u32 %v996, 8388607
  %v998 = vor.u32 %v997, 8388608
  %v999 = vsub.s32 0, %v998
  %v1000 = vadd.s32 %v995, 1
  %vm1001 = vcmp.gt.s32.totalorder %v1000, 0
  %v1002 = vsel %vm1001, %v1000, 0
  %v1003 = vshrl.u32 %v1002, 5
  %v1004 = vand.u32 %v1002, 31
  %v1005 = vsub.s32 32, %v1004
  %v1006 = vshrl.u32 683565275, %v1005
  %v1007 = vshll.u32 683565275, %v1004
  %v1008 = vshrl.u32 2475754826, %v1005
  %v1009 = vor.u32 %v1007, %v1008
  %v1010 = vshll.u32 2475754826, %v1004
  %v1011 = vshrl.u32 2131351028, %v1005
  %v1012 = vor.u32 %v1010, %v1011
  %v1013 = vshll.u32 2131351028, %v1004
  %v1014 = vshrl.u32 2102212464, %v1005
  %v1015 = vor.u32 %v1013, %v1014
  %v1016 = vshll.u32 2102212464, %v1004
  %v1017 = vshrl.u32 920167782, %v1005
  %v1018 = vor.u32 %v1016, %v1017
  %v1019 = vshll.u32 920167782, %v1004
  %v1020 = vshrl.u32 1326507024, %v1005
  %v1021 = vor.u32 %v1019, %v1020
  %vm1022 = vcmp.lt.s32.totalorder %v1003, 1
  %vm1023 = vcmp.lt.s32.totalorder %v1003, 2
  %vm1024 = vcmp.lt.s32.totalorder %v1003, 3
  %vm1025 = vcmp.lt.s32.totalorder %v1003, 4
  %v1026 = vsel %vm1022, %v1006, %v1009
  %v1027 = vsel %vm1025, %v1015, 2102212464
  %v1028 = vsel %vm1024, %v1012, %v1027
  %v1029 = vsel %vm1023, %v1026, %v1028
  %v1030 = vsel %vm1022, %v1009, %v1012
  %v1031 = vsel %vm1025, %v1018, 920167782
  %v1032 = vsel %vm1024, %v1015, %v1031
  %v1033 = vsel %vm1023, %v1030, %v1032
  %v1034 = vsel %vm1022, %v1012, %v1015
  %v1035 = vsel %vm1025, %v1021, 1326507024
  %v1036 = vsel %vm1024, %v1018, %v1035
  %v1037 = vsel %vm1023, %v1034, %v1036
  %v1038 = vshll.u32 %v998, 8
  %v1039 = vmul.u32.u64.compose %v1038, %v1037
  %v1040 = vextract.low.u32 %v1039
  %v1041 = vextract.high.u32 %v1039
  %v1042 = vmul.u32.u64.compose %v1038, %v1033
  %v1043 = vextract.low.u32 %v1042
  %v1044 = vextract.high.u32 %v1042
  %v1045 = vmul.u32 %v1038, %v1029
  %v1046 = vadd.s32 %v1041, %v1043
  %vm1047 = vc.u32 %v1041, %v1043
  %v1048 = vadd.s32 %v1044, 1
  %v1049 = vsel %vm1047, %v1048, %v1044
  %v1050 = vadd.s32 %v1045, %v1049
  %v1051 = vadd.s32 %v1050, 536870912
  %v1052 = vshrl.u32 %v1051, 30
  %v1053 = vshll.u32 %v1052, 30
  %v1054 = vsub.s32 %v1050, %v1053
  %vm1055 = vcmp.lt.s32.totalorder %v1054, 0
  %v1056 = vsub.s32 0, %v1054
  %v1057 = vsel %vm1055, %v1056, %v1054
  %v1058 = vclz %v1057
  %v1059 = vsub.s32 %v1058, 2
  %vm1060 = vcmp.gt.s32.totalorder 0, %v1059
  %v1061 = vsel %vm1060, 0, %v1059
  %v1062 = vsub.s32 32, %v1061
  %v1063 = vshll.u32 %v1054, %v1061
  %v1064 = vshrl.u32 %v1046, %v1062
  %v1065 = vor.u32 %v1063, %v1064
  %v1066 = vsub.s32 4294967266, %v1061
  %v1067 = vadd.s32 %v1066, 127
  %v1068 = vshll.u32 %v1067, 23
  %v1069 = vor.u32 4788187, %v1068
  %v1070 = vand.u32 2147483647, %v1069
  %v1072 = vcvt.s32.f32 %v1065
  %v1073 = vmul.f32 %v1072, %v1070
  %v1074 = vxor.u32 %v1073, 2147483648
  %v1075 = vsel %vm992, %v1074, %v1073
  %v1076 = vsub.s32 4, %v1052
  %v1077 = vsel %vm992, %v1076, %v1052
  %v1078 = vsel %vm991, %v351, %v1075
  %v1079 = vsel %vm991, 0, %v1077
  %v1080 = vcosq.f32.pop %v1078
  %v1081 = vsinq.f32.pop %v1078
  %vm1082 = vweird.f32 %v351
  %v1083 = vadd.s32 %v1079, 3
  %v1084 = vand.u32 %v1083, 3
  %vm1085 = vcmp.lt.s32.totalorder %v1084, 2
  %vm1086 = vcmp.eq.s32.totalorder %v1084, 0
  %v1087 = vxor.u32 %v1081, 2147483648
  %v1088 = vsel %vm1086, %v1080, %v1087
  %vm1089 = vcmp.eq.s32.totalorder %v1084, 2
  %v1090 = vxor.u32 %v1080, 2147483648
  %v1091 = vsel %vm1089, %v1090, %v1081
  %v1092 = vsel %vm1085, %v1088, %v1091
  %v1093 = vsel %vm1082, nan, %v1092
  %v1094 = vand.u32 2147483647, %v352
  %vm1095 = vcmp.le.f32.partialorder %v1094, 0.7853982
  %vm1096 = vcmp.lt.s32.totalorder %v352, 0
  %v1097 = vand.u32 %v352, 2139095040
  %v1098 = vshrl.u32 %v1097, 23
  %v1099 = vsub.s32 %v1098, 127
  %v1100 = vand.u32 2147483647, %v352
  %v1101 = vand.u32 %v1100, 8388607
  %v1102 = vor.u32 %v1101, 8388608
  %v1103 = vsub.s32 0, %v1102
  %v1104 = vadd.s32 %v1099, 1
  %vm1105 = vcmp.gt.s32.totalorder %v1104, 0
  %v1106 = vsel %vm1105, %v1104, 0
  %v1107 = vshrl.u32 %v1106, 5
  %v1108 = vand.u32 %v1106, 31
  %v1109 = vsub.s32 32, %v1108
  %v1110 = vshrl.u32 683565275, %v1109
  %v1111 = vshll.u32 683565275, %v1108
  %v1112 = vshrl.u32 2475754826, %v1109
  %v1113 = vor.u32 %v1111, %v1112
  %v1114 = vshll.u32 2475754826, %v1108
  %v1115 = vshrl.u32 2131351028, %v1109
  %v1116 = vor.u32 %v1114, %v1115
  %v1117 = vshll.u32 2131351028, %v1108
  %v1118 = vshrl.u32 2102212464, %v1109
  %v1119 = vor.u32 %v1117, %v1118
  %v1120 = vshll.u32 2102212464, %v1108
  %v1121 = vshrl.u32 920167782, %v1109
  %v1122 = vor.u32 %v1120, %v1121
  %v1123 = vshll.u32 920167782, %v1108
  %v1124 = vshrl.u32 1326507024, %v1109
  %v1125 = vor.u32 %v1123, %v1124
  %vm1126 = vcmp.lt.s32.totalorder %v1107, 1
  %vm1127 = vcmp.lt.s32.totalorder %v1107, 2
  %vm1128 = vcmp.lt.s32.totalorder %v1107, 3
  %vm1129 = vcmp.lt.s32.totalorder %v1107, 4
  %v1130 = vsel %vm1126, %v1110, %v1113
  %v1131 = vsel %vm1129, %v1119, 2102212464
  %v1132 = vsel %vm1128, %v1116, %v1131
  %v1133 = vsel %vm1127, %v1130, %v1132
  %v1134 = vsel %vm1126, %v1113, %v1116
  %v1135 = vsel %vm1129, %v1122, 920167782
  %v1136 = vsel %vm1128, %v1119, %v1135
  %v1137 = vsel %vm1127, %v1134, %v1136
  %v1138 = vsel %vm1126, %v1116, %v1119
  %v1139 = vsel %vm1129, %v1125, 1326507024
  %v1140 = vsel %vm1128, %v1122, %v1139
  %v1141 = vsel %vm1127, %v1138, %v1140
  %v1142 = vshll.u32 %v1102, 8
  %v1143 = vmul.u32.u64.compose %v1142, %v1141
  %v1144 = vextract.low.u32 %v1143
  %v1145 = vextract.high.u32 %v1143
  %v1146 = vmul.u32.u64.compose %v1142, %v1137
  %v1147 = vextract.low.u32 %v1146
  %v1148 = vextract.high.u32 %v1146
  %v1149 = vmul.u32 %v1142, %v1133
  %v1150 = vadd.s32 %v1145, %v1147
  %vm1151 = vc.u32 %v1145, %v1147
  %v1152 = vadd.s32 %v1148, 1
  %v1153 = vsel %vm1151, %v1152, %v1148
  %v1154 = vadd.s32 %v1149, %v1153
  %v1155 = vadd.s32 %v1154, 536870912
  %v1156 = vshrl.u32 %v1155, 30
  %v1157 = vshll.u32 %v1156, 30
  %v1158 = vsub.s32 %v1154, %v1157
  %vm1159 = vcmp.lt.s32.totalorder %v1158, 0
  %v1160 = vsub.s32 0, %v1158
  %v1161 = vsel %vm1159, %v1160, %v1158
  %v1162 = vclz %v1161
  %v1163 = vsub.s32 %v1162, 2
  %vm1164 = vcmp.gt.s32.totalorder 0, %v1163
  %v1165 = vsel %vm1164, 0, %v1163
  %v1166 = vsub.s32 32, %v1165
  %v1167 = vshll.u32 %v1158, %v1165
  %v1168 = vshrl.u32 %v1150, %v1166
  %v1169 = vor.u32 %v1167, %v1168
  %v1170 = vsub.s32 4294967266, %v1165
  %v1171 = vadd.s32 %v1170, 127
  %v1172 = vshll.u32 %v1171, 23
  %v1173 = vor.u32 4788187, %v1172
  %v1174 = vand.u32 2147483647, %v1173
  %v1176 = vcvt.s32.f32 %v1169
  %v1177 = vmul.f32 %v1176, %v1174
  %v1178 = vxor.u32 %v1177, 2147483648
  %v1179 = vsel %vm1096, %v1178, %v1177
  %v1180 = vsub.s32 4, %v1156
  %v1181 = vsel %vm1096, %v1180, %v1156
  %v1182 = vsel %vm1095, %v352, %v1179
  %v1183 = vsel %vm1095, 0, %v1181
  %v1184 = vcosq.f32.pop %v1182
  %v1185 = vsinq.f32.pop %v1182
  %vm1186 = vweird.f32 %v352
  %v1187 = vadd.s32 %v1183, 3
  %v1188 = vand.u32 %v1187, 3
  %vm1189 = vcmp.lt.s32.totalorder %v1188, 2
  %vm1190 = vcmp.eq.s32.totalorder %v1188, 0
  %v1191 = vxor.u32 %v1185, 2147483648
  %v1192 = vsel %vm1190, %v1184, %v1191
  %vm1193 = vcmp.eq.s32.totalorder %v1188, 2
  %v1194 = vxor.u32 %v1184, 2147483648
  %v1195 = vsel %vm1193, %v1194, %v1185
  %v1196 = vsel %vm1189, %v1192, %v1195
  %v1197 = vsel %vm1186, nan, %v1196
  %v1198 = vand.u32 2147483647, %v353
  %vm1199 = vcmp.le.f32.partialorder %v1198, 0.7853982
  %vm1200 = vcmp.lt.s32.totalorder %v353, 0
  %v1201 = vand.u32 %v353, 2139095040
  %v1202 = vshrl.u32 %v1201, 23
  %v1203 = vsub.s32 %v1202, 127
  %v1204 = vand.u32 2147483647, %v353
  %v1205 = vand.u32 %v1204, 8388607
  %v1206 = vor.u32 %v1205, 8388608
  %v1207 = vsub.s32 0, %v1206
  %v1208 = vadd.s32 %v1203, 1
  %vm1209 = vcmp.gt.s32.totalorder %v1208, 0
  %v1210 = vsel %vm1209, %v1208, 0
  %v1211 = vshrl.u32 %v1210, 5
  %v1212 = vand.u32 %v1210, 31
  %v1213 = vsub.s32 32, %v1212
  %v1214 = vshrl.u32 683565275, %v1213
  %v1215 = vshll.u32 683565275, %v1212
  %v1216 = vshrl.u32 2475754826, %v1213
  %v1217 = vor.u32 %v1215, %v1216
  %v1218 = vshll.u32 2475754826, %v1212
  %v1219 = vshrl.u32 2131351028, %v1213
  %v1220 = vor.u32 %v1218, %v1219
  %v1221 = vshll.u32 2131351028, %v1212
  %v1222 = vshrl.u32 2102212464, %v1213
  %v1223 = vor.u32 %v1221, %v1222
  %v1224 = vshll.u32 2102212464, %v1212
  %v1225 = vshrl.u32 920167782, %v1213
  %v1226 = vor.u32 %v1224, %v1225
  %v1227 = vshll.u32 920167782, %v1212
  %v1228 = vshrl.u32 1326507024, %v1213
  %v1229 = vor.u32 %v1227, %v1228
  %vm1230 = vcmp.lt.s32.totalorder %v1211, 1
  %vm1231 = vcmp.lt.s32.totalorder %v1211, 2
  %vm1232 = vcmp.lt.s32.totalorder %v1211, 3
  %vm1233 = vcmp.lt.s32.totalorder %v1211, 4
  %v1234 = vsel %vm1230, %v1214, %v1217
  %v1235 = vsel %vm1233, %v1223, 2102212464
  %v1236 = vsel %vm1232, %v1220, %v1235
  %v1237 = vsel %vm1231, %v1234, %v1236
  %v1238 = vsel %vm1230, %v1217, %v1220
  %v1239 = vsel %vm1233, %v1226, 920167782
  %v1240 = vsel %vm1232, %v1223, %v1239
  %v1241 = vsel %vm1231, %v1238, %v1240
  %v1242 = vsel %vm1230, %v1220, %v1223
  %v1243 = vsel %vm1233, %v1229, 1326507024
  %v1244 = vsel %vm1232, %v1226, %v1243
  %v1245 = vsel %vm1231, %v1242, %v1244
  %v1246 = vshll.u32 %v1206, 8
  %v1247 = vmul.u32.u64.compose %v1246, %v1245
  %v1248 = vextract.low.u32 %v1247
  %v1249 = vextract.high.u32 %v1247
  %v1250 = vmul.u32.u64.compose %v1246, %v1241
  %v1251 = vextract.low.u32 %v1250
  %v1252 = vextract.high.u32 %v1250
  %v1253 = vmul.u32 %v1246, %v1237
  %v1254 = vadd.s32 %v1249, %v1251
  %vm1255 = vc.u32 %v1249, %v1251
  %v1256 = vadd.s32 %v1252, 1
  %v1257 = vsel %vm1255, %v1256, %v1252
  %v1258 = vadd.s32 %v1253, %v1257
  %v1259 = vadd.s32 %v1258, 536870912
  %v1260 = vshrl.u32 %v1259, 30
  %v1261 = vshll.u32 %v1260, 30
  %v1262 = vsub.s32 %v1258, %v1261
  %vm1263 = vcmp.lt.s32.totalorder %v1262, 0
  %v1264 = vsub.s32 0, %v1262
  %v1265 = vsel %vm1263, %v1264, %v1262
  %v1266 = vclz %v1265
  %v1267 = vsub.s32 %v1266, 2
  %vm1268 = vcmp.gt.s32.totalorder 0, %v1267
  %v1269 = vsel %vm1268, 0, %v1267
  %v1270 = vsub.s32 32, %v1269
  %v1271 = vshll.u32 %v1262, %v1269
  %v1272 = vshrl.u32 %v1254, %v1270
  %v1273 = vor.u32 %v1271, %v1272
  %v1274 = vsub.s32 4294967266, %v1269
  %v1275 = vadd.s32 %v1274, 127
  %v1276 = vshll.u32 %v1275, 23
  %v1277 = vor.u32 4788187, %v1276
  %v1278 = vand.u32 2147483647, %v1277
  %v1280 = vcvt.s32.f32 %v1273
  %v1281 = vmul.f32 %v1280, %v1278
  %v1282 = vxor.u32 %v1281, 2147483648
  %v1283 = vsel %vm1200, %v1282, %v1281
  %v1284 = vsub.s32 4, %v1260
  %v1285 = vsel %vm1200, %v1284, %v1260
  %v1286 = vsel %vm1199, %v353, %v1283
  %v1287 = vsel %vm1199, 0, %v1285
  %v1288 = vcosq.f32.pop %v1286
  %v1289 = vsinq.f32.pop %v1286
  %vm1290 = vweird.f32 %v353
  %v1291 = vadd.s32 %v1287, 3
  %v1292 = vand.u32 %v1291, 3
  %vm1293 = vcmp.lt.s32.totalorder %v1292, 2
  %vm1294 = vcmp.eq.s32.totalorder %v1292, 0
  %v1295 = vxor.u32 %v1289, 2147483648
  %v1296 = vsel %vm1294, %v1288, %v1295
  %vm1297 = vcmp.eq.s32.totalorder %v1292, 2
  %v1298 = vxor.u32 %v1288, 2147483648
  %v1299 = vsel %vm1297, %v1298, %v1289
  %v1300 = vsel %vm1293, %v1296, %v1299
  %v1301 = vsel %vm1290, nan, %v1300
  %v1302 = vand.u32 2147483647, %v354
  %vm1303 = vcmp.le.f32.partialorder %v1302, 0.7853982
  %vm1304 = vcmp.lt.s32.totalorder %v354, 0
  %v1305 = vand.u32 %v354, 2139095040
  %v1306 = vshrl.u32 %v1305, 23
  %v1307 = vsub.s32 %v1306, 127
  %v1308 = vand.u32 2147483647, %v354
  %v1309 = vand.u32 %v1308, 8388607
  %v1310 = vor.u32 %v1309, 8388608
  %v1311 = vsub.s32 0, %v1310
  %v1312 = vadd.s32 %v1307, 1
  %vm1313 = vcmp.gt.s32.totalorder %v1312, 0
  %v1314 = vsel %vm1313, %v1312, 0
  %v1315 = vshrl.u32 %v1314, 5
  %v1316 = vand.u32 %v1314, 31
  %v1317 = vsub.s32 32, %v1316
  %v1318 = vshrl.u32 683565275, %v1317
  %v1319 = vshll.u32 683565275, %v1316
  %v1320 = vshrl.u32 2475754826, %v1317
  %v1321 = vor.u32 %v1319, %v1320
  %v1322 = vshll.u32 2475754826, %v1316
  %v1323 = vshrl.u32 2131351028, %v1317
  %v1324 = vor.u32 %v1322, %v1323
  %v1325 = vshll.u32 2131351028, %v1316
  %v1326 = vshrl.u32 2102212464, %v1317
  %v1327 = vor.u32 %v1325, %v1326
  %v1328 = vshll.u32 2102212464, %v1316
  %v1329 = vshrl.u32 920167782, %v1317
  %v1330 = vor.u32 %v1328, %v1329
  %v1331 = vshll.u32 920167782, %v1316
  %v1332 = vshrl.u32 1326507024, %v1317
  %v1333 = vor.u32 %v1331, %v1332
  %vm1334 = vcmp.lt.s32.totalorder %v1315, 1
  %vm1335 = vcmp.lt.s32.totalorder %v1315, 2
  %vm1336 = vcmp.lt.s32.totalorder %v1315, 3
  %vm1337 = vcmp.lt.s32.totalorder %v1315, 4
  %v1338 = vsel %vm1334, %v1318, %v1321
  %v1339 = vsel %vm1337, %v1327, 2102212464
  %v1340 = vsel %vm1336, %v1324, %v1339
  %v1341 = vsel %vm1335, %v1338, %v1340
  %v1342 = vsel %vm1334, %v1321, %v1324
  %v1343 = vsel %vm1337, %v1330, 920167782
  %v1344 = vsel %vm1336, %v1327, %v1343
  %v1345 = vsel %vm1335, %v1342, %v1344
  %v1346 = vsel %vm1334, %v1324, %v1327
  %v1347 = vsel %vm1337, %v1333, 1326507024
  %v1348 = vsel %vm1336, %v1330, %v1347
  %v1349 = vsel %vm1335, %v1346, %v1348
  %v1350 = vshll.u32 %v1310, 8
  %v1351 = vmul.u32.u64.compose %v1350, %v1349
  %v1352 = vextract.low.u32 %v1351
  %v1353 = vextract.high.u32 %v1351
  %v1354 = vmul.u32.u64.compose %v1350, %v1345
  %v1355 = vextract.low.u32 %v1354
  %v1356 = vextract.high.u32 %v1354
  %v1357 = vmul.u32 %v1350, %v1341
  %v1358 = vadd.s32 %v1353, %v1355
  %vm1359 = vc.u32 %v1353, %v1355
  %v1360 = vadd.s32 %v1356, 1
  %v1361 = vsel %vm1359, %v1360, %v1356
  %v1362 = vadd.s32 %v1357, %v1361
  %v1363 = vadd.s32 %v1362, 536870912
  %v1364 = vshrl.u32 %v1363, 30
  %v1365 = vshll.u32 %v1364, 30
  %v1366 = vsub.s32 %v1362, %v1365
  %vm1367 = vcmp.lt.s32.totalorder %v1366, 0
  %v1368 = vsub.s32 0, %v1366
  %v1369 = vsel %vm1367, %v1368, %v1366
  %v1370 = vclz %v1369
  %v1371 = vsub.s32 %v1370, 2
  %vm1372 = vcmp.gt.s32.totalorder 0, %v1371
  %v1373 = vsel %vm1372, 0, %v1371
  %v1374 = vsub.s32 32, %v1373
  %v1375 = vshll.u32 %v1366, %v1373
  %v1376 = vshrl.u32 %v1358, %v1374
  %v1377 = vor.u32 %v1375, %v1376
  %v1378 = vsub.s32 4294967266, %v1373
  %v1379 = vadd.s32 %v1378, 127
  %v1380 = vshll.u32 %v1379, 23
  %v1381 = vor.u32 4788187, %v1380
  %v1382 = vand.u32 2147483647, %v1381
  %v1384 = vcvt.s32.f32 %v1377
  %v1385 = vmul.f32 %v1384, %v1382
  %v1386 = vxor.u32 %v1385, 2147483648
  %v1387 = vsel %vm1304, %v1386, %v1385
  %v1388 = vsub.s32 4, %v1364
  %v1389 = vsel %vm1304, %v1388, %v1364
  %v1390 = vsel %vm1303, %v354, %v1387
  %v1391 = vsel %vm1303, 0, %v1389
  %v1392 = vcosq.f32.pop %v1390
  %v1393 = vsinq.f32.pop %v1390
  %vm1394 = vweird.f32 %v354
  %v1395 = vadd.s32 %v1391, 3
  %v1396 = vand.u32 %v1395, 3
  %vm1397 = vcmp.lt.s32.totalorder %v1396, 2
  %vm1398 = vcmp.eq.s32.totalorder %v1396, 0
  %v1399 = vxor.u32 %v1393, 2147483648
  %v1400 = vsel %vm1398, %v1392, %v1399
  %vm1401 = vcmp.eq.s32.totalorder %v1396, 2
  %v1402 = vxor.u32 %v1392, 2147483648
  %v1403 = vsel %vm1401, %v1402, %v1393
  %v1404 = vsel %vm1397, %v1400, %v1403
  %v1405 = vsel %vm1394, nan, %v1404
  %v1406 = vand.u32 2147483647, %v355
  %vm1407 = vcmp.le.f32.partialorder %v1406, 0.7853982
  %vm1408 = vcmp.lt.s32.totalorder %v355, 0
  %v1409 = vand.u32 %v355, 2139095040
  %v1410 = vshrl.u32 %v1409, 23
  %v1411 = vsub.s32 %v1410, 127
  %v1412 = vand.u32 2147483647, %v355
  %v1413 = vand.u32 %v1412, 8388607
  %v1414 = vor.u32 %v1413, 8388608
  %v1415 = vsub.s32 0, %v1414
  %v1416 = vadd.s32 %v1411, 1
  %vm1417 = vcmp.gt.s32.totalorder %v1416, 0
  %v1418 = vsel %vm1417, %v1416, 0
  %v1419 = vshrl.u32 %v1418, 5
  %v1420 = vand.u32 %v1418, 31
  %v1421 = vsub.s32 32, %v1420
  %v1422 = vshrl.u32 683565275, %v1421
  %v1423 = vshll.u32 683565275, %v1420
  %v1424 = vshrl.u32 2475754826, %v1421
  %v1425 = vor.u32 %v1423, %v1424
  %v1426 = vshll.u32 2475754826, %v1420
  %v1427 = vshrl.u32 2131351028, %v1421
  %v1428 = vor.u32 %v1426, %v1427
  %v1429 = vshll.u32 2131351028, %v1420
  %v1430 = vshrl.u32 2102212464, %v1421
  %v1431 = vor.u32 %v1429, %v1430
  %v1432 = vshll.u32 2102212464, %v1420
  %v1433 = vshrl.u32 920167782, %v1421
  %v1434 = vor.u32 %v1432, %v1433
  %v1435 = vshll.u32 920167782, %v1420
  %v1436 = vshrl.u32 1326507024, %v1421
  %v1437 = vor.u32 %v1435, %v1436
  %vm1438 = vcmp.lt.s32.totalorder %v1419, 1
  %vm1439 = vcmp.lt.s32.totalorder %v1419, 2
  %vm1440 = vcmp.lt.s32.totalorder %v1419, 3
  %vm1441 = vcmp.lt.s32.totalorder %v1419, 4
  %v1442 = vsel %vm1438, %v1422, %v1425
  %v1443 = vsel %vm1441, %v1431, 2102212464
  %v1444 = vsel %vm1440, %v1428, %v1443
  %v1445 = vsel %vm1439, %v1442, %v1444
  %v1446 = vsel %vm1438, %v1425, %v1428
  %v1447 = vsel %vm1441, %v1434, 920167782
  %v1448 = vsel %vm1440, %v1431, %v1447
  %v1449 = vsel %vm1439, %v1446, %v1448
  %v1450 = vsel %vm1438, %v1428, %v1431
  %v1451 = vsel %vm1441, %v1437, 1326507024
  %v1452 = vsel %vm1440, %v1434, %v1451
  %v1453 = vsel %vm1439, %v1450, %v1452
  %v1454 = vshll.u32 %v1414, 8
  %v1455 = vmul.u32.u64.compose %v1454, %v1453
  %v1456 = vextract.low.u32 %v1455
  %v1457 = vextract.high.u32 %v1455
  %v1458 = vmul.u32.u64.compose %v1454, %v1449
  %v1459 = vextract.low.u32 %v1458
  %v1460 = vextract.high.u32 %v1458
  %v1461 = vmul.u32 %v1454, %v1445
  %v1462 = vadd.s32 %v1457, %v1459
  %vm1463 = vc.u32 %v1457, %v1459
  %v1464 = vadd.s32 %v1460, 1
  %v1465 = vsel %vm1463, %v1464, %v1460
  %v1466 = vadd.s32 %v1461, %v1465
  %v1467 = vadd.s32 %v1466, 536870912
  %v1468 = vshrl.u32 %v1467, 30
  %v1469 = vshll.u32 %v1468, 30
  %v1470 = vsub.s32 %v1466, %v1469
  %vm1471 = vcmp.lt.s32.totalorder %v1470, 0
  %v1472 = vsub.s32 0, %v1470
  %v1473 = vsel %vm1471, %v1472, %v1470
  %v1474 = vclz %v1473
  %v1475 = vsub.s32 %v1474, 2
  %vm1476 = vcmp.gt.s32.totalorder 0, %v1475
  %v1477 = vsel %vm1476, 0, %v1475
  %v1478 = vsub.s32 32, %v1477
  %v1479 = vshll.u32 %v1470, %v1477
  %v1480 = vshrl.u32 %v1462, %v1478
  %v1481 = vor.u32 %v1479, %v1480
  %v1482 = vsub.s32 4294967266, %v1477
  %v1483 = vadd.s32 %v1482, 127
  %v1484 = vshll.u32 %v1483, 23
  %v1485 = vor.u32 4788187, %v1484
  %v1486 = vand.u32 2147483647, %v1485
  %v1488 = vcvt.s32.f32 %v1481
  %v1489 = vmul.f32 %v1488, %v1486
  %v1490 = vxor.u32 %v1489, 2147483648
  %v1491 = vsel %vm1408, %v1490, %v1489
  %v1492 = vsub.s32 4, %v1468
  %v1493 = vsel %vm1408, %v1492, %v1468
  %v1494 = vsel %vm1407, %v355, %v1491
  %v1495 = vsel %vm1407, 0, %v1493
  %v1496 = vcosq.f32.pop %v1494
  %v1497 = vsinq.f32.pop %v1494
  %vm1498 = vweird.f32 %v355
  %v1499 = vadd.s32 %v1495, 3
  %v1500 = vand.u32 %v1499, 3
  %vm1501 = vcmp.lt.s32.totalorder %v1500, 2
  %vm1502 = vcmp.eq.s32.totalorder %v1500, 0
  %v1503 = vxor.u32 %v1497, 2147483648
  %v1504 = vsel %vm1502, %v1496, %v1503
  %vm1505 = vcmp.eq.s32.totalorder %v1500, 2
  %v1506 = vxor.u32 %v1496, 2147483648
  %v1507 = vsel %vm1505, %v1506, %v1497
  %v1508 = vsel %vm1501, %v1504, %v1507
  %v1509 = vsel %vm1498, nan, %v1508
  %v1510 = vand.u32 2147483647, %v356
  %vm1511 = vcmp.le.f32.partialorder %v1510, 0.7853982
  %vm1512 = vcmp.lt.s32.totalorder %v356, 0
  %v1513 = vand.u32 %v356, 2139095040
  %v1514 = vshrl.u32 %v1513, 23
  %v1515 = vsub.s32 %v1514, 127
  %v1516 = vand.u32 2147483647, %v356
  %v1517 = vand.u32 %v1516, 8388607
  %v1518 = vor.u32 %v1517, 8388608
  %v1519 = vsub.s32 0, %v1518
  %v1520 = vadd.s32 %v1515, 1
  %vm1521 = vcmp.gt.s32.totalorder %v1520, 0
  %v1522 = vsel %vm1521, %v1520, 0
  %v1523 = vshrl.u32 %v1522, 5
  %v1524 = vand.u32 %v1522, 31
  %v1525 = vsub.s32 32, %v1524
  %v1526 = vshrl.u32 683565275, %v1525
  %v1527 = vshll.u32 683565275, %v1524
  %v1528 = vshrl.u32 2475754826, %v1525
  %v1529 = vor.u32 %v1527, %v1528
  %v1530 = vshll.u32 2475754826, %v1524
  %v1531 = vshrl.u32 2131351028, %v1525
  %v1532 = vor.u32 %v1530, %v1531
  %v1533 = vshll.u32 2131351028, %v1524
  %v1534 = vshrl.u32 2102212464, %v1525
  %v1535 = vor.u32 %v1533, %v1534
  %v1536 = vshll.u32 2102212464, %v1524
  %v1537 = vshrl.u32 920167782, %v1525
  %v1538 = vor.u32 %v1536, %v1537
  %v1539 = vshll.u32 920167782, %v1524
  %v1540 = vshrl.u32 1326507024, %v1525
  %v1541 = vor.u32 %v1539, %v1540
  %vm1542 = vcmp.lt.s32.totalorder %v1523, 1
  %vm1543 = vcmp.lt.s32.totalorder %v1523, 2
  %vm1544 = vcmp.lt.s32.totalorder %v1523, 3
  %vm1545 = vcmp.lt.s32.totalorder %v1523, 4
  %v1546 = vsel %vm1542, %v1526, %v1529
  %v1547 = vsel %vm1545, %v1535, 2102212464
  %v1548 = vsel %vm1544, %v1532, %v1547
  %v1549 = vsel %vm1543, %v1546, %v1548
  %v1550 = vsel %vm1542, %v1529, %v1532
  %v1551 = vsel %vm1545, %v1538, 920167782
  %v1552 = vsel %vm1544, %v1535, %v1551
  %v1553 = vsel %vm1543, %v1550, %v1552
  %v1554 = vsel %vm1542, %v1532, %v1535
  %v1555 = vsel %vm1545, %v1541, 1326507024
  %v1556 = vsel %vm1544, %v1538, %v1555
  %v1557 = vsel %vm1543, %v1554, %v1556
  %v1558 = vshll.u32 %v1518, 8
  %v1559 = vmul.u32.u64.compose %v1558, %v1557
  %v1560 = vextract.low.u32 %v1559
  %v1561 = vextract.high.u32 %v1559
  %v1562 = vmul.u32.u64.compose %v1558, %v1553
  %v1563 = vextract.low.u32 %v1562
  %v1564 = vextract.high.u32 %v1562
  %v1565 = vmul.u32 %v1558, %v1549
  %v1566 = vadd.s32 %v1561, %v1563
  %vm1567 = vc.u32 %v1561, %v1563
  %v1568 = vadd.s32 %v1564, 1
  %v1569 = vsel %vm1567, %v1568, %v1564
  %v1570 = vadd.s32 %v1565, %v1569
  %v1571 = vadd.s32 %v1570, 536870912
  %v1572 = vshrl.u32 %v1571, 30
  %v1573 = vshll.u32 %v1572, 30
  %v1574 = vsub.s32 %v1570, %v1573
  %vm1575 = vcmp.lt.s32.totalorder %v1574, 0
  %v1576 = vsub.s32 0, %v1574
  %v1577 = vsel %vm1575, %v1576, %v1574
  %v1578 = vclz %v1577
  %v1579 = vsub.s32 %v1578, 2
  %vm1580 = vcmp.gt.s32.totalorder 0, %v1579
  %v1581 = vsel %vm1580, 0, %v1579
  %v1582 = vsub.s32 32, %v1581
  %v1583 = vshll.u32 %v1574, %v1581
  %v1584 = vshrl.u32 %v1566, %v1582
  %v1585 = vor.u32 %v1583, %v1584
  %v1586 = vsub.s32 4294967266, %v1581
  %v1587 = vadd.s32 %v1586, 127
  %v1588 = vshll.u32 %v1587, 23
  %v1589 = vor.u32 4788187, %v1588
  %v1590 = vand.u32 2147483647, %v1589
  %v1592 = vcvt.s32.f32 %v1585
  %v1593 = vmul.f32 %v1592, %v1590
  %v1594 = vxor.u32 %v1593, 2147483648
  %v1595 = vsel %vm1512, %v1594, %v1593
  %v1596 = vsub.s32 4, %v1572
  %v1597 = vsel %vm1512, %v1596, %v1572
  %v1598 = vsel %vm1511, %v356, %v1595
  %v1599 = vsel %vm1511, 0, %v1597
  %v1600 = vcosq.f32.pop %v1598
  %v1601 = vsinq.f32.pop %v1598
  %vm1602 = vweird.f32 %v356
  %v1603 = vadd.s32 %v1599, 3
  %v1604 = vand.u32 %v1603, 3
  %vm1605 = vcmp.lt.s32.totalorder %v1604, 2
  %vm1606 = vcmp.eq.s32.totalorder %v1604, 0
  %v1607 = vxor.u32 %v1601, 2147483648
  %v1608 = vsel %vm1606, %v1600, %v1607
  %vm1609 = vcmp.eq.s32.totalorder %v1604, 2
  %v1610 = vxor.u32 %v1600, 2147483648
  %v1611 = vsel %vm1609, %v1610, %v1601
  %v1612 = vsel %vm1605, %v1608, %v1611
  %v1613 = vsel %vm1602, nan, %v1612
  %v1614 = vand.u32 2147483647, %v357
  %vm1615 = vcmp.le.f32.partialorder %v1614, 0.7853982
  %vm1616 = vcmp.lt.s32.totalorder %v357, 0
  %v1617 = vand.u32 %v357, 2139095040
  %v1618 = vshrl.u32 %v1617, 23
  %v1619 = vsub.s32 %v1618, 127
  %v1620 = vand.u32 2147483647, %v357
  %v1621 = vand.u32 %v1620, 8388607
  %v1622 = vor.u32 %v1621, 8388608
  %v1623 = vsub.s32 0, %v1622
  %v1624 = vadd.s32 %v1619, 1
  %vm1625 = vcmp.gt.s32.totalorder %v1624, 0
  %v1626 = vsel %vm1625, %v1624, 0
  %v1627 = vshrl.u32 %v1626, 5
  %v1628 = vand.u32 %v1626, 31
  %v1629 = vsub.s32 32, %v1628
  %v1630 = vshrl.u32 683565275, %v1629
  %v1631 = vshll.u32 683565275, %v1628
  %v1632 = vshrl.u32 2475754826, %v1629
  %v1633 = vor.u32 %v1631, %v1632
  %v1634 = vshll.u32 2475754826, %v1628
  %v1635 = vshrl.u32 2131351028, %v1629
  %v1636 = vor.u32 %v1634, %v1635
  %v1637 = vshll.u32 2131351028, %v1628
  %v1638 = vshrl.u32 2102212464, %v1629
  %v1639 = vor.u32 %v1637, %v1638
  %v1640 = vshll.u32 2102212464, %v1628
  %v1641 = vshrl.u32 920167782, %v1629
  %v1642 = vor.u32 %v1640, %v1641
  %v1643 = vshll.u32 920167782, %v1628
  %v1644 = vshrl.u32 1326507024, %v1629
  %v1645 = vor.u32 %v1643, %v1644
  %vm1646 = vcmp.lt.s32.totalorder %v1627, 1
  %vm1647 = vcmp.lt.s32.totalorder %v1627, 2
  %vm1648 = vcmp.lt.s32.totalorder %v1627, 3
  %vm1649 = vcmp.lt.s32.totalorder %v1627, 4
  %v1650 = vsel %vm1646, %v1630, %v1633
  %v1651 = vsel %vm1649, %v1639, 2102212464
  %v1652 = vsel %vm1648, %v1636, %v1651
  %v1653 = vsel %vm1647, %v1650, %v1652
  %v1654 = vsel %vm1646, %v1633, %v1636
  %v1655 = vsel %vm1649, %v1642, 920167782
  %v1656 = vsel %vm1648, %v1639, %v1655
  %v1657 = vsel %vm1647, %v1654, %v1656
  %v1658 = vsel %vm1646, %v1636, %v1639
  %v1659 = vsel %vm1649, %v1645, 1326507024
  %v1660 = vsel %vm1648, %v1642, %v1659
  %v1661 = vsel %vm1647, %v1658, %v1660
  %v1662 = vshll.u32 %v1622, 8
  %v1663 = vmul.u32.u64.compose %v1662, %v1661
  %v1664 = vextract.low.u32 %v1663
  %v1665 = vextract.high.u32 %v1663
  %v1666 = vmul.u32.u64.compose %v1662, %v1657
  %v1667 = vextract.low.u32 %v1666
  %v1668 = vextract.high.u32 %v1666
  %v1669 = vmul.u32 %v1662, %v1653
  %v1670 = vadd.s32 %v1665, %v1667
  %vm1671 = vc.u32 %v1665, %v1667
  %v1672 = vadd.s32 %v1668, 1
  %v1673 = vsel %vm1671, %v1672, %v1668
  %v1674 = vadd.s32 %v1669, %v1673
  %v1675 = vadd.s32 %v1674, 536870912
  %v1676 = vshrl.u32 %v1675, 30
  %v1677 = vshll.u32 %v1676, 30
  %v1678 = vsub.s32 %v1674, %v1677
  %vm1679 = vcmp.lt.s32.totalorder %v1678, 0
  %v1680 = vsub.s32 0, %v1678
  %v1681 = vsel %vm1679, %v1680, %v1678
  %v1682 = vclz %v1681
  %v1683 = vsub.s32 %v1682, 2
  %vm1684 = vcmp.gt.s32.totalorder 0, %v1683
  %v1685 = vsel %vm1684, 0, %v1683
  %v1686 = vsub.s32 32, %v1685
  %v1687 = vshll.u32 %v1678, %v1685
  %v1688 = vshrl.u32 %v1670, %v1686
  %v1689 = vor.u32 %v1687, %v1688
  %v1690 = vsub.s32 4294967266, %v1685
  %v1691 = vadd.s32 %v1690, 127
  %v1692 = vshll.u32 %v1691, 23
  %v1693 = vor.u32 4788187, %v1692
  %v1694 = vand.u32 2147483647, %v1693
  %v1696 = vcvt.s32.f32 %v1689
  %v1697 = vmul.f32 %v1696, %v1694
  %v1698 = vxor.u32 %v1697, 2147483648
  %v1699 = vsel %vm1616, %v1698, %v1697
  %v1700 = vsub.s32 4, %v1676
  %v1701 = vsel %vm1616, %v1700, %v1676
  %v1702 = vsel %vm1615, %v357, %v1699
  %v1703 = vsel %vm1615, 0, %v1701
  %v1704 = vcosq.f32.pop %v1702
  %v1705 = vsinq.f32.pop %v1702
  %vm1706 = vweird.f32 %v357
  %v1707 = vadd.s32 %v1703, 3
  %v1708 = vand.u32 %v1707, 3
  %vm1709 = vcmp.lt.s32.totalorder %v1708, 2
  %vm1710 = vcmp.eq.s32.totalorder %v1708, 0
  %v1711 = vxor.u32 %v1705, 2147483648
  %v1712 = vsel %vm1710, %v1704, %v1711
  %vm1713 = vcmp.eq.s32.totalorder %v1708, 2
  %v1714 = vxor.u32 %v1704, 2147483648
  %v1715 = vsel %vm1713, %v1714, %v1705
  %v1716 = vsel %vm1709, %v1712, %v1715
  %v1717 = vsel %vm1706, nan, %v1716
  %v1718 = vand.u32 2147483647, %v358
  %vm1719 = vcmp.le.f32.partialorder %v1718, 0.7853982
  %vm1720 = vcmp.lt.s32.totalorder %v358, 0
  %v1721 = vand.u32 %v358, 2139095040
  %v1722 = vshrl.u32 %v1721, 23
  %v1723 = vsub.s32 %v1722, 127
  %v1724 = vand.u32 2147483647, %v358
  %v1725 = vand.u32 %v1724, 8388607
  %v1726 = vor.u32 %v1725, 8388608
  %v1727 = vsub.s32 0, %v1726
  %v1728 = vadd.s32 %v1723, 1
  %vm1729 = vcmp.gt.s32.totalorder %v1728, 0
  %v1730 = vsel %vm1729, %v1728, 0
  %v1731 = vshrl.u32 %v1730, 5
  %v1732 = vand.u32 %v1730, 31
  %v1733 = vsub.s32 32, %v1732
  %v1734 = vshrl.u32 683565275, %v1733
  %v1735 = vshll.u32 683565275, %v1732
  %v1736 = vshrl.u32 2475754826, %v1733
  %v1737 = vor.u32 %v1735, %v1736
  %v1738 = vshll.u32 2475754826, %v1732
  %v1739 = vshrl.u32 2131351028, %v1733
  %v1740 = vor.u32 %v1738, %v1739
  %v1741 = vshll.u32 2131351028, %v1732
  %v1742 = vshrl.u32 2102212464, %v1733
  %v1743 = vor.u32 %v1741, %v1742
  %v1744 = vshll.u32 2102212464, %v1732
  %v1745 = vshrl.u32 920167782, %v1733
  %v1746 = vor.u32 %v1744, %v1745
  %v1747 = vshll.u32 920167782, %v1732
  %v1748 = vshrl.u32 1326507024, %v1733
  %v1749 = vor.u32 %v1747, %v1748
  %vm1750 = vcmp.lt.s32.totalorder %v1731, 1
  %vm1751 = vcmp.lt.s32.totalorder %v1731, 2
  %vm1752 = vcmp.lt.s32.totalorder %v1731, 3
  %vm1753 = vcmp.lt.s32.totalorder %v1731, 4
  %v1754 = vsel %vm1750, %v1734, %v1737
  %v1755 = vsel %vm1753, %v1743, 2102212464
  %v1756 = vsel %vm1752, %v1740, %v1755
  %v1757 = vsel %vm1751, %v1754, %v1756
  %v1758 = vsel %vm1750, %v1737, %v1740
  %v1759 = vsel %vm1753, %v1746, 920167782
  %v1760 = vsel %vm1752, %v1743, %v1759
  %v1761 = vsel %vm1751, %v1758, %v1760
  %v1762 = vsel %vm1750, %v1740, %v1743
  %v1763 = vsel %vm1753, %v1749, 1326507024
  %v1764 = vsel %vm1752, %v1746, %v1763
  %v1765 = vsel %vm1751, %v1762, %v1764
  %v1766 = vshll.u32 %v1726, 8
  %v1767 = vmul.u32.u64.compose %v1766, %v1765
  %v1768 = vextract.low.u32 %v1767
  %v1769 = vextract.high.u32 %v1767
  %v1770 = vmul.u32.u64.compose %v1766, %v1761
  %v1771 = vextract.low.u32 %v1770
  %v1772 = vextract.high.u32 %v1770
  %v1773 = vmul.u32 %v1766, %v1757
  %v1774 = vadd.s32 %v1769, %v1771
  %vm1775 = vc.u32 %v1769, %v1771
  %v1776 = vadd.s32 %v1772, 1
  %v1777 = vsel %vm1775, %v1776, %v1772
  %v1778 = vadd.s32 %v1773, %v1777
  %v1779 = vadd.s32 %v1778, 536870912
  %v1780 = vshrl.u32 %v1779, 30
  %v1781 = vshll.u32 %v1780, 30
  %v1782 = vsub.s32 %v1778, %v1781
  %vm1783 = vcmp.lt.s32.totalorder %v1782, 0
  %v1784 = vsub.s32 0, %v1782
  %v1785 = vsel %vm1783, %v1784, %v1782
  %v1786 = vclz %v1785
  %v1787 = vsub.s32 %v1786, 2
  %vm1788 = vcmp.gt.s32.totalorder 0, %v1787
  %v1789 = vsel %vm1788, 0, %v1787
  %v1790 = vsub.s32 32, %v1789
  %v1791 = vshll.u32 %v1782, %v1789
  %v1792 = vshrl.u32 %v1774, %v1790
  %v1793 = vor.u32 %v1791, %v1792
  %v1794 = vsub.s32 4294967266, %v1789
  %v1795 = vadd.s32 %v1794, 127
  %v1796 = vshll.u32 %v1795, 23
  %v1797 = vor.u32 4788187, %v1796
  %v1798 = vand.u32 2147483647, %v1797
  %v1800 = vcvt.s32.f32 %v1793
  %v1801 = vmul.f32 %v1800, %v1798
  %v1802 = vxor.u32 %v1801, 2147483648
  %v1803 = vsel %vm1720, %v1802, %v1801
  %v1804 = vsub.s32 4, %v1780
  %v1805 = vsel %vm1720, %v1804, %v1780
  %v1806 = vsel %vm1719, %v358, %v1803
  %v1807 = vsel %vm1719, 0, %v1805
  %v1808 = vcosq.f32.pop %v1806
  %v1809 = vsinq.f32.pop %v1806
  %vm1810 = vweird.f32 %v358
  %v1811 = vadd.s32 %v1807, 3
  %v1812 = vand.u32 %v1811, 3
  %vm1813 = vcmp.lt.s32.totalorder %v1812, 2
  %vm1814 = vcmp.eq.s32.totalorder %v1812, 0
  %v1815 = vxor.u32 %v1809, 2147483648
  %v1816 = vsel %vm1814, %v1808, %v1815
  %vm1817 = vcmp.eq.s32.totalorder %v1812, 2
  %v1818 = vxor.u32 %v1808, 2147483648
  %v1819 = vsel %vm1817, %v1818, %v1809
  %v1820 = vsel %vm1813, %v1816, %v1819
  %v1821 = vsel %vm1810, nan, %v1820
  %v1822 = vand.u32 2147483647, %v359
  %vm1823 = vcmp.le.f32.partialorder %v1822, 0.7853982
  %vm1824 = vcmp.lt.s32.totalorder %v359, 0
  %v1825 = vand.u32 %v359, 2139095040
  %v1826 = vshrl.u32 %v1825, 23
  %v1827 = vsub.s32 %v1826, 127
  %v1828 = vand.u32 2147483647, %v359
  %v1829 = vand.u32 %v1828, 8388607
  %v1830 = vor.u32 %v1829, 8388608
  %v1831 = vsub.s32 0, %v1830
  %v1832 = vadd.s32 %v1827, 1
  %vm1833 = vcmp.gt.s32.totalorder %v1832, 0
  %v1834 = vsel %vm1833, %v1832, 0
  %v1835 = vshrl.u32 %v1834, 5
  %v1836 = vand.u32 %v1834, 31
  %v1837 = vsub.s32 32, %v1836
  %v1838 = vshrl.u32 683565275, %v1837
  %v1839 = vshll.u32 683565275, %v1836
  %v1840 = vshrl.u32 2475754826, %v1837
  %v1841 = vor.u32 %v1839, %v1840
  %v1842 = vshll.u32 2475754826, %v1836
  %v1843 = vshrl.u32 2131351028, %v1837
  %v1844 = vor.u32 %v1842, %v1843
  %v1845 = vshll.u32 2131351028, %v1836
  %v1846 = vshrl.u32 2102212464, %v1837
  %v1847 = vor.u32 %v1845, %v1846
  %v1848 = vshll.u32 2102212464, %v1836
  %v1849 = vshrl.u32 920167782, %v1837
  %v1850 = vor.u32 %v1848, %v1849
  %v1851 = vshll.u32 920167782, %v1836
  %v1852 = vshrl.u32 1326507024, %v1837
  %v1853 = vor.u32 %v1851, %v1852
  %vm1854 = vcmp.lt.s32.totalorder %v1835, 1
  %vm1855 = vcmp.lt.s32.totalorder %v1835, 2
  %vm1856 = vcmp.lt.s32.totalorder %v1835, 3
  %vm1857 = vcmp.lt.s32.totalorder %v1835, 4
  %v1858 = vsel %vm1854, %v1838, %v1841
  %v1859 = vsel %vm1857, %v1847, 2102212464
  %v1860 = vsel %vm1856, %v1844, %v1859
  %v1861 = vsel %vm1855, %v1858, %v1860
  %v1862 = vsel %vm1854, %v1841, %v1844
  %v1863 = vsel %vm1857, %v1850, 920167782
  %v1864 = vsel %vm1856, %v1847, %v1863
  %v1865 = vsel %vm1855, %v1862, %v1864
  %v1866 = vsel %vm1854, %v1844, %v1847
  %v1867 = vsel %vm1857, %v1853, 1326507024
  %v1868 = vsel %vm1856, %v1850, %v1867
  %v1869 = vsel %vm1855, %v1866, %v1868
  %v1870 = vshll.u32 %v1830, 8
  %v1871 = vmul.u32.u64.compose %v1870, %v1869
  %v1872 = vextract.low.u32 %v1871
  %v1873 = vextract.high.u32 %v1871
  %v1874 = vmul.u32.u64.compose %v1870, %v1865
  %v1875 = vextract.low.u32 %v1874
  %v1876 = vextract.high.u32 %v1874
  %v1877 = vmul.u32 %v1870, %v1861
  %v1878 = vadd.s32 %v1873, %v1875
  %vm1879 = vc.u32 %v1873, %v1875
  %v1880 = vadd.s32 %v1876, 1
  %v1881 = vsel %vm1879, %v1880, %v1876
  %v1882 = vadd.s32 %v1877, %v1881
  %v1883 = vadd.s32 %v1882, 536870912
  %v1884 = vshrl.u32 %v1883, 30
  %v1885 = vshll.u32 %v1884, 30
  %v1886 = vsub.s32 %v1882, %v1885
  %vm1887 = vcmp.lt.s32.totalorder %v1886, 0
  %v1888 = vsub.s32 0, %v1886
  %v1889 = vsel %vm1887, %v1888, %v1886
  %v1890 = vclz %v1889
  %v1891 = vsub.s32 %v1890, 2
  %vm1892 = vcmp.gt.s32.totalorder 0, %v1891
  %v1893 = vsel %vm1892, 0, %v1891
  %v1894 = vsub.s32 32, %v1893
  %v1895 = vshll.u32 %v1886, %v1893
  %v1896 = vshrl.u32 %v1878, %v1894
  %v1897 = vor.u32 %v1895, %v1896
  %v1898 = vsub.s32 4294967266, %v1893
  %v1899 = vadd.s32 %v1898, 127
  %v1900 = vshll.u32 %v1899, 23
  %v1901 = vor.u32 4788187, %v1900
  %v1902 = vand.u32 2147483647, %v1901
  %v1904 = vcvt.s32.f32 %v1897
  %v1905 = vmul.f32 %v1904, %v1902
  %v1906 = vxor.u32 %v1905, 2147483648
  %v1907 = vsel %vm1824, %v1906, %v1905
  %v1908 = vsub.s32 4, %v1884
  %v1909 = vsel %vm1824, %v1908, %v1884
  %v1910 = vsel %vm1823, %v359, %v1907
  %v1911 = vsel %vm1823, 0, %v1909
  %v1912 = vcosq.f32.pop %v1910
  %v1913 = vsinq.f32.pop %v1910
  %vm1914 = vweird.f32 %v359
  %v1915 = vadd.s32 %v1911, 3
  %v1916 = vand.u32 %v1915, 3
  %vm1917 = vcmp.lt.s32.totalorder %v1916, 2
  %vm1918 = vcmp.eq.s32.totalorder %v1916, 0
  %v1919 = vxor.u32 %v1913, 2147483648
  %v1920 = vsel %vm1918, %v1912, %v1919
  %vm1921 = vcmp.eq.s32.totalorder %v1916, 2
  %v1922 = vxor.u32 %v1912, 2147483648
  %v1923 = vsel %vm1921, %v1922, %v1913
  %v1924 = vsel %vm1917, %v1920, %v1923
  %v1925 = vsel %vm1914, nan, %v1924
  %v1926 = vand.u32 2147483647, %v360
  %vm1927 = vcmp.le.f32.partialorder %v1926, 0.7853982
  %vm1928 = vcmp.lt.s32.totalorder %v360, 0
  %v1929 = vand.u32 %v360, 2139095040
  %v1930 = vshrl.u32 %v1929, 23
  %v1931 = vsub.s32 %v1930, 127
  %v1932 = vand.u32 2147483647, %v360
  %v1933 = vand.u32 %v1932, 8388607
  %v1934 = vor.u32 %v1933, 8388608
  %v1935 = vsub.s32 0, %v1934
  %v1936 = vadd.s32 %v1931, 1
  %vm1937 = vcmp.gt.s32.totalorder %v1936, 0
  %v1938 = vsel %vm1937, %v1936, 0
  %v1939 = vshrl.u32 %v1938, 5
  %v1940 = vand.u32 %v1938, 31
  %v1941 = vsub.s32 32, %v1940
  %v1942 = vshrl.u32 683565275, %v1941
  %v1943 = vshll.u32 683565275, %v1940
  %v1944 = vshrl.u32 2475754826, %v1941
  %v1945 = vor.u32 %v1943, %v1944
  %v1946 = vshll.u32 2475754826, %v1940
  %v1947 = vshrl.u32 2131351028, %v1941
  %v1948 = vor.u32 %v1946, %v1947
  %v1949 = vshll.u32 2131351028, %v1940
  %v1950 = vshrl.u32 2102212464, %v1941
  %v1951 = vor.u32 %v1949, %v1950
  %v1952 = vshll.u32 2102212464, %v1940
  %v1953 = vshrl.u32 920167782, %v1941
  %v1954 = vor.u32 %v1952, %v1953
  %v1955 = vshll.u32 920167782, %v1940
  %v1956 = vshrl.u32 1326507024, %v1941
  %v1957 = vor.u32 %v1955, %v1956
  %vm1958 = vcmp.lt.s32.totalorder %v1939, 1
  %vm1959 = vcmp.lt.s32.totalorder %v1939, 2
  %vm1960 = vcmp.lt.s32.totalorder %v1939, 3
  %vm1961 = vcmp.lt.s32.totalorder %v1939, 4
  %v1962 = vsel %vm1958, %v1942, %v1945
  %v1963 = vsel %vm1961, %v1951, 2102212464
  %v1964 = vsel %vm1960, %v1948, %v1963
  %v1965 = vsel %vm1959, %v1962, %v1964
  %v1966 = vsel %vm1958, %v1945, %v1948
  %v1967 = vsel %vm1961, %v1954, 920167782
  %v1968 = vsel %vm1960, %v1951, %v1967
  %v1969 = vsel %vm1959, %v1966, %v1968
  %v1970 = vsel %vm1958, %v1948, %v1951
  %v1971 = vsel %vm1961, %v1957, 1326507024
  %v1972 = vsel %vm1960, %v1954, %v1971
  %v1973 = vsel %vm1959, %v1970, %v1972
  %v1974 = vshll.u32 %v1934, 8
  %v1975 = vmul.u32.u64.compose %v1974, %v1973
  %v1976 = vextract.low.u32 %v1975
  %v1977 = vextract.high.u32 %v1975
  %v1978 = vmul.u32.u64.compose %v1974, %v1969
  %v1979 = vextract.low.u32 %v1978
  %v1980 = vextract.high.u32 %v1978
  %v1981 = vmul.u32 %v1974, %v1965
  %v1982 = vadd.s32 %v1977, %v1979
  %vm1983 = vc.u32 %v1977, %v1979
  %v1984 = vadd.s32 %v1980, 1
  %v1985 = vsel %vm1983, %v1984, %v1980
  %v1986 = vadd.s32 %v1981, %v1985
  %v1987 = vadd.s32 %v1986, 536870912
  %v1988 = vshrl.u32 %v1987, 30
  %v1989 = vshll.u32 %v1988, 30
  %v1990 = vsub.s32 %v1986, %v1989
  %vm1991 = vcmp.lt.s32.totalorder %v1990, 0
  %v1992 = vsub.s32 0, %v1990
  %v1993 = vsel %vm1991, %v1992, %v1990
  %v1994 = vclz %v1993
  %v1995 = vsub.s32 %v1994, 2
  %vm1996 = vcmp.gt.s32.totalorder 0, %v1995
  %v1997 = vsel %vm1996, 0, %v1995
  %v1998 = vsub.s32 32, %v1997
  %v1999 = vshll.u32 %v1990, %v1997
  %v2000 = vshrl.u32 %v1982, %v1998
  %v2001 = vor.u32 %v1999, %v2000
  %v2002 = vsub.s32 4294967266, %v1997
  %v2003 = vadd.s32 %v2002, 127
  %v2004 = vshll.u32 %v2003, 23
  %v2005 = vor.u32 4788187, %v2004
  %v2006 = vand.u32 2147483647, %v2005
  %v2008 = vcvt.s32.f32 %v2001
  %v2009 = vmul.f32 %v2008, %v2006
  %v2010 = vxor.u32 %v2009, 2147483648
  %v2011 = vsel %vm1928, %v2010, %v2009
  %v2012 = vsub.s32 4, %v1988
  %v2013 = vsel %vm1928, %v2012, %v1988
  %v2014 = vsel %vm1927, %v360, %v2011
  %v2015 = vsel %vm1927, 0, %v2013
  %v2016 = vcosq.f32.pop %v2014
  %v2017 = vsinq.f32.pop %v2014
  %vm2018 = vweird.f32 %v360
  %v2019 = vadd.s32 %v2015, 3
  %v2020 = vand.u32 %v2019, 3
  %vm2021 = vcmp.lt.s32.totalorder %v2020, 2
  %vm2022 = vcmp.eq.s32.totalorder %v2020, 0
  %v2023 = vxor.u32 %v2017, 2147483648
  %v2024 = vsel %vm2022, %v2016, %v2023
  %vm2025 = vcmp.eq.s32.totalorder %v2020, 2
  %v2026 = vxor.u32 %v2016, 2147483648
  %v2027 = vsel %vm2025, %v2026, %v2017
  %v2028 = vsel %vm2021, %v2024, %v2027
  %v2029 = vsel %vm2018, nan, %v2028
  %v2030 = vand.u32 2147483647, %v361
  %vm2031 = vcmp.le.f32.partialorder %v2030, 0.7853982
  %vm2032 = vcmp.lt.s32.totalorder %v361, 0
  %v2033 = vand.u32 %v361, 2139095040
  %v2034 = vshrl.u32 %v2033, 23
  %v2035 = vsub.s32 %v2034, 127
  %v2036 = vand.u32 2147483647, %v361
  %v2037 = vand.u32 %v2036, 8388607
  %v2038 = vor.u32 %v2037, 8388608
  %v2039 = vsub.s32 0, %v2038
  %v2040 = vadd.s32 %v2035, 1
  %vm2041 = vcmp.gt.s32.totalorder %v2040, 0
  %v2042 = vsel %vm2041, %v2040, 0
  %v2043 = vshrl.u32 %v2042, 5
  %v2044 = vand.u32 %v2042, 31
  %v2045 = vsub.s32 32, %v2044
  %v2046 = vshrl.u32 683565275, %v2045
  %v2047 = vshll.u32 683565275, %v2044
  %v2048 = vshrl.u32 2475754826, %v2045
  %v2049 = vor.u32 %v2047, %v2048
  %v2050 = vshll.u32 2475754826, %v2044
  %v2051 = vshrl.u32 2131351028, %v2045
  %v2052 = vor.u32 %v2050, %v2051
  %v2053 = vshll.u32 2131351028, %v2044
  %v2054 = vshrl.u32 2102212464, %v2045
  %v2055 = vor.u32 %v2053, %v2054
  %v2056 = vshll.u32 2102212464, %v2044
  %v2057 = vshrl.u32 920167782, %v2045
  %v2058 = vor.u32 %v2056, %v2057
  %v2059 = vshll.u32 920167782, %v2044
  %v2060 = vshrl.u32 1326507024, %v2045
  %v2061 = vor.u32 %v2059, %v2060
  %vm2062 = vcmp.lt.s32.totalorder %v2043, 1
  %vm2063 = vcmp.lt.s32.totalorder %v2043, 2
  %vm2064 = vcmp.lt.s32.totalorder %v2043, 3
  %vm2065 = vcmp.lt.s32.totalorder %v2043, 4
  %v2066 = vsel %vm2062, %v2046, %v2049
  %v2067 = vsel %vm2065, %v2055, 2102212464
  %v2068 = vsel %vm2064, %v2052, %v2067
  %v2069 = vsel %vm2063, %v2066, %v2068
  %v2070 = vsel %vm2062, %v2049, %v2052
  %v2071 = vsel %vm2065, %v2058, 920167782
  %v2072 = vsel %vm2064, %v2055, %v2071
  %v2073 = vsel %vm2063, %v2070, %v2072
  %v2074 = vsel %vm2062, %v2052, %v2055
  %v2075 = vsel %vm2065, %v2061, 1326507024
  %v2076 = vsel %vm2064, %v2058, %v2075
  %v2077 = vsel %vm2063, %v2074, %v2076
  %v2078 = vshll.u32 %v2038, 8
  %v2079 = vmul.u32.u64.compose %v2078, %v2077
  %v2080 = vextract.low.u32 %v2079
  %v2081 = vextract.high.u32 %v2079
  %v2082 = vmul.u32.u64.compose %v2078, %v2073
  %v2083 = vextract.low.u32 %v2082
  %v2084 = vextract.high.u32 %v2082
  %v2085 = vmul.u32 %v2078, %v2069
  %v2086 = vadd.s32 %v2081, %v2083
  %vm2087 = vc.u32 %v2081, %v2083
  %v2088 = vadd.s32 %v2084, 1
  %v2089 = vsel %vm2087, %v2088, %v2084
  %v2090 = vadd.s32 %v2085, %v2089
  %v2091 = vadd.s32 %v2090, 536870912
  %v2092 = vshrl.u32 %v2091, 30
  %v2093 = vshll.u32 %v2092, 30
  %v2094 = vsub.s32 %v2090, %v2093
  %vm2095 = vcmp.lt.s32.totalorder %v2094, 0
  %v2096 = vsub.s32 0, %v2094
  %v2097 = vsel %vm2095, %v2096, %v2094
  %v2098 = vclz %v2097
  %v2099 = vsub.s32 %v2098, 2
  %vm2100 = vcmp.gt.s32.totalorder 0, %v2099
  %v2101 = vsel %vm2100, 0, %v2099
  %v2102 = vsub.s32 32, %v2101
  %v2103 = vshll.u32 %v2094, %v2101
  %v2104 = vshrl.u32 %v2086, %v2102
  %v2105 = vor.u32 %v2103, %v2104
  %v2106 = vsub.s32 4294967266, %v2101
  %v2107 = vadd.s32 %v2106, 127
  %v2108 = vshll.u32 %v2107, 23
  %v2109 = vor.u32 4788187, %v2108
  %v2110 = vand.u32 2147483647, %v2109
  %v2112 = vcvt.s32.f32 %v2105
  %v2113 = vmul.f32 %v2112, %v2110
  %v2114 = vxor.u32 %v2113, 2147483648
  %v2115 = vsel %vm2032, %v2114, %v2113
  %v2116 = vsub.s32 4, %v2092
  %v2117 = vsel %vm2032, %v2116, %v2092
  %v2118 = vsel %vm2031, %v361, %v2115
  %v2119 = vsel %vm2031, 0, %v2117
  %v2120 = vcosq.f32.pop %v2118
  %v2121 = vsinq.f32.pop %v2118
  %vm2122 = vweird.f32 %v361
  %v2123 = vadd.s32 %v2119, 3
  %v2124 = vand.u32 %v2123, 3
  %vm2125 = vcmp.lt.s32.totalorder %v2124, 2
  %vm2126 = vcmp.eq.s32.totalorder %v2124, 0
  %v2127 = vxor.u32 %v2121, 2147483648
  %v2128 = vsel %vm2126, %v2120, %v2127
  %vm2129 = vcmp.eq.s32.totalorder %v2124, 2
  %v2130 = vxor.u32 %v2120, 2147483648
  %v2131 = vsel %vm2129, %v2130, %v2121
  %v2132 = vsel %vm2125, %v2128, %v2131
  %v2133 = vsel %vm2122, nan, %v2132
  %v2134 = vand.u32 2147483647, %v362
  %vm2135 = vcmp.le.f32.partialorder %v2134, 0.7853982
  %vm2136 = vcmp.lt.s32.totalorder %v362, 0
  %v2137 = vand.u32 %v362, 2139095040
  %v2138 = vshrl.u32 %v2137, 23
  %v2139 = vsub.s32 %v2138, 127
  %v2140 = vand.u32 2147483647, %v362
  %v2141 = vand.u32 %v2140, 8388607
  %v2142 = vor.u32 %v2141, 8388608
  %v2143 = vsub.s32 0, %v2142
  %v2144 = vadd.s32 %v2139, 1
  %vm2145 = vcmp.gt.s32.totalorder %v2144, 0
  %v2146 = vsel %vm2145, %v2144, 0
  %v2147 = vshrl.u32 %v2146, 5
  %v2148 = vand.u32 %v2146, 31
  %v2149 = vsub.s32 32, %v2148
  %v2150 = vshrl.u32 683565275, %v2149
  %v2151 = vshll.u32 683565275, %v2148
  %v2152 = vshrl.u32 2475754826, %v2149
  %v2153 = vor.u32 %v2151, %v2152
  %v2154 = vshll.u32 2475754826, %v2148
  %v2155 = vshrl.u32 2131351028, %v2149
  %v2156 = vor.u32 %v2154, %v2155
  %v2157 = vshll.u32 2131351028, %v2148
  %v2158 = vshrl.u32 2102212464, %v2149
  %v2159 = vor.u32 %v2157, %v2158
  %v2160 = vshll.u32 2102212464, %v2148
  %v2161 = vshrl.u32 920167782, %v2149
  %v2162 = vor.u32 %v2160, %v2161
  %v2163 = vshll.u32 920167782, %v2148
  %v2164 = vshrl.u32 1326507024, %v2149
  %v2165 = vor.u32 %v2163, %v2164
  %vm2166 = vcmp.lt.s32.totalorder %v2147, 1
  %vm2167 = vcmp.lt.s32.totalorder %v2147, 2
  %vm2168 = vcmp.lt.s32.totalorder %v2147, 3
  %vm2169 = vcmp.lt.s32.totalorder %v2147, 4
  %v2170 = vsel %vm2166, %v2150, %v2153
  %v2171 = vsel %vm2169, %v2159, 2102212464
  %v2172 = vsel %vm2168, %v2156, %v2171
  %v2173 = vsel %vm2167, %v2170, %v2172
  %v2174 = vsel %vm2166, %v2153, %v2156
  %v2175 = vsel %vm2169, %v2162, 920167782
  %v2176 = vsel %vm2168, %v2159, %v2175
  %v2177 = vsel %vm2167, %v2174, %v2176
  %v2178 = vsel %vm2166, %v2156, %v2159
  %v2179 = vsel %vm2169, %v2165, 1326507024
  %v2180 = vsel %vm2168, %v2162, %v2179
  %v2181 = vsel %vm2167, %v2178, %v2180
  %v2182 = vshll.u32 %v2142, 8
  %v2183 = vmul.u32.u64.compose %v2182, %v2181
  %v2184 = vextract.low.u32 %v2183
  %v2185 = vextract.high.u32 %v2183
  %v2186 = vmul.u32.u64.compose %v2182, %v2177
  %v2187 = vextract.low.u32 %v2186
  %v2188 = vextract.high.u32 %v2186
  %v2189 = vmul.u32 %v2182, %v2173
  %v2190 = vadd.s32 %v2185, %v2187
  %vm2191 = vc.u32 %v2185, %v2187
  %v2192 = vadd.s32 %v2188, 1
  %v2193 = vsel %vm2191, %v2192, %v2188
  %v2194 = vadd.s32 %v2189, %v2193
  %v2195 = vadd.s32 %v2194, 536870912
  %v2196 = vshrl.u32 %v2195, 30
  %v2197 = vshll.u32 %v2196, 30
  %v2198 = vsub.s32 %v2194, %v2197
  %vm2199 = vcmp.lt.s32.totalorder %v2198, 0
  %v2200 = vsub.s32 0, %v2198
  %v2201 = vsel %vm2199, %v2200, %v2198
  %v2202 = vclz %v2201
  %v2203 = vsub.s32 %v2202, 2
  %vm2204 = vcmp.gt.s32.totalorder 0, %v2203
  %v2205 = vsel %vm2204, 0, %v2203
  %v2206 = vsub.s32 32, %v2205
  %v2207 = vshll.u32 %v2198, %v2205
  %v2208 = vshrl.u32 %v2190, %v2206
  %v2209 = vor.u32 %v2207, %v2208
  %v2210 = vsub.s32 4294967266, %v2205
  %v2211 = vadd.s32 %v2210, 127
  %v2212 = vshll.u32 %v2211, 23
  %v2213 = vor.u32 4788187, %v2212
  %v2214 = vand.u32 2147483647, %v2213
  %v2216 = vcvt.s32.f32 %v2209
  %v2217 = vmul.f32 %v2216, %v2214
  %v2218 = vxor.u32 %v2217, 2147483648
  %v2219 = vsel %vm2136, %v2218, %v2217
  %v2220 = vsub.s32 4, %v2196
  %v2221 = vsel %vm2136, %v2220, %v2196
  %v2222 = vsel %vm2135, %v362, %v2219
  %v2223 = vsel %vm2135, 0, %v2221
  %v2224 = vcosq.f32.pop %v2222
  %v2225 = vsinq.f32.pop %v2222
  %vm2226 = vweird.f32 %v362
  %v2227 = vadd.s32 %v2223, 3
  %v2228 = vand.u32 %v2227, 3
  %vm2229 = vcmp.lt.s32.totalorder %v2228, 2
  %vm2230 = vcmp.eq.s32.totalorder %v2228, 0
  %v2231 = vxor.u32 %v2225, 2147483648
  %v2232 = vsel %vm2230, %v2224, %v2231
  %vm2233 = vcmp.eq.s32.totalorder %v2228, 2
  %v2234 = vxor.u32 %v2224, 2147483648
  %v2235 = vsel %vm2233, %v2234, %v2225
  %v2236 = vsel %vm2229, %v2232, %v2235
  %v2237 = vsel %vm2226, nan, %v2236
  %v2238 = vand.u32 2147483647, %v363
  %vm2239 = vcmp.le.f32.partialorder %v2238, 0.7853982
  %vm2240 = vcmp.lt.s32.totalorder %v363, 0
  %v2241 = vand.u32 %v363, 2139095040
  %v2242 = vshrl.u32 %v2241, 23
  %v2243 = vsub.s32 %v2242, 127
  %v2244 = vand.u32 2147483647, %v363
  %v2245 = vand.u32 %v2244, 8388607
  %v2246 = vor.u32 %v2245, 8388608
  %v2247 = vsub.s32 0, %v2246
  %v2248 = vadd.s32 %v2243, 1
  %vm2249 = vcmp.gt.s32.totalorder %v2248, 0
  %v2250 = vsel %vm2249, %v2248, 0
  %v2251 = vshrl.u32 %v2250, 5
  %v2252 = vand.u32 %v2250, 31
  %v2253 = vsub.s32 32, %v2252
  %v2254 = vshrl.u32 683565275, %v2253
  %v2255 = vshll.u32 683565275, %v2252
  %v2256 = vshrl.u32 2475754826, %v2253
  %v2257 = vor.u32 %v2255, %v2256
  %v2258 = vshll.u32 2475754826, %v2252
  %v2259 = vshrl.u32 2131351028, %v2253
  %v2260 = vor.u32 %v2258, %v2259
  %v2261 = vshll.u32 2131351028, %v2252
  %v2262 = vshrl.u32 2102212464, %v2253
  %v2263 = vor.u32 %v2261, %v2262
  %v2264 = vshll.u32 2102212464, %v2252
  %v2265 = vshrl.u32 920167782, %v2253
  %v2266 = vor.u32 %v2264, %v2265
  %v2267 = vshll.u32 920167782, %v2252
  %v2268 = vshrl.u32 1326507024, %v2253
  %v2269 = vor.u32 %v2267, %v2268
  %vm2270 = vcmp.lt.s32.totalorder %v2251, 1
  %vm2271 = vcmp.lt.s32.totalorder %v2251, 2
  %vm2272 = vcmp.lt.s32.totalorder %v2251, 3
  %vm2273 = vcmp.lt.s32.totalorder %v2251, 4
  %v2274 = vsel %vm2270, %v2254, %v2257
  %v2275 = vsel %vm2273, %v2263, 2102212464
  %v2276 = vsel %vm2272, %v2260, %v2275
  %v2277 = vsel %vm2271, %v2274, %v2276
  %v2278 = vsel %vm2270, %v2257, %v2260
  %v2279 = vsel %vm2273, %v2266, 920167782
  %v2280 = vsel %vm2272, %v2263, %v2279
  %v2281 = vsel %vm2271, %v2278, %v2280
  %v2282 = vsel %vm2270, %v2260, %v2263
  %v2283 = vsel %vm2273, %v2269, 1326507024
  %v2284 = vsel %vm2272, %v2266, %v2283
  %v2285 = vsel %vm2271, %v2282, %v2284
  %v2286 = vshll.u32 %v2246, 8
  %v2287 = vmul.u32.u64.compose %v2286, %v2285
  %v2288 = vextract.low.u32 %v2287
  %v2289 = vextract.high.u32 %v2287
  %v2290 = vmul.u32.u64.compose %v2286, %v2281
  %v2291 = vextract.low.u32 %v2290
  %v2292 = vextract.high.u32 %v2290
  %v2293 = vmul.u32 %v2286, %v2277
  %v2294 = vadd.s32 %v2289, %v2291
  %vm2295 = vc.u32 %v2289, %v2291
  %v2296 = vadd.s32 %v2292, 1
  %v2297 = vsel %vm2295, %v2296, %v2292
  %v2298 = vadd.s32 %v2293, %v2297
  %v2299 = vadd.s32 %v2298, 536870912
  %v2300 = vshrl.u32 %v2299, 30
  %v2301 = vshll.u32 %v2300, 30
  %v2302 = vsub.s32 %v2298, %v2301
  %vm2303 = vcmp.lt.s32.totalorder %v2302, 0
  %v2304 = vsub.s32 0, %v2302
  %v2305 = vsel %vm2303, %v2304, %v2302
  %v2306 = vclz %v2305
  %v2307 = vsub.s32 %v2306, 2
  %vm2308 = vcmp.gt.s32.totalorder 0, %v2307
  %v2309 = vsel %vm2308, 0, %v2307
  %v2310 = vsub.s32 32, %v2309
  %v2311 = vshll.u32 %v2302, %v2309
  %v2312 = vshrl.u32 %v2294, %v2310
  %v2313 = vor.u32 %v2311, %v2312
  %v2314 = vsub.s32 4294967266, %v2309
  %v2315 = vadd.s32 %v2314, 127
  %v2316 = vshll.u32 %v2315, 23
  %v2317 = vor.u32 4788187, %v2316
  %v2318 = vand.u32 2147483647, %v2317
  %v2320 = vcvt.s32.f32 %v2313
  %v2321 = vmul.f32 %v2320, %v2318
  %v2322 = vxor.u32 %v2321, 2147483648
  %v2323 = vsel %vm2240, %v2322, %v2321
  %v2324 = vsub.s32 4, %v2300
  %v2325 = vsel %vm2240, %v2324, %v2300
  %v2326 = vsel %vm2239, %v363, %v2323
  %v2327 = vsel %vm2239, 0, %v2325
  %v2328 = vcosq.f32.pop %v2326
  %v2329 = vsinq.f32.pop %v2326
  %vm2330 = vweird.f32 %v363
  %v2331 = vadd.s32 %v2327, 3
  %v2332 = vand.u32 %v2331, 3
  %vm2333 = vcmp.lt.s32.totalorder %v2332, 2
  %vm2334 = vcmp.eq.s32.totalorder %v2332, 0
  %v2335 = vxor.u32 %v2329, 2147483648
  %v2336 = vsel %vm2334, %v2328, %v2335
  %vm2337 = vcmp.eq.s32.totalorder %v2332, 2
  %v2338 = vxor.u32 %v2328, 2147483648
  %v2339 = vsel %vm2337, %v2338, %v2329
  %v2340 = vsel %vm2333, %v2336, %v2339
  %v2341 = vsel %vm2330, nan, %v2340
  %v2342 = vand.u32 2147483647, %v364
  %vm2343 = vcmp.le.f32.partialorder %v2342, 0.7853982
  %vm2344 = vcmp.lt.s32.totalorder %v364, 0
  %v2345 = vand.u32 %v364, 2139095040
  %v2346 = vshrl.u32 %v2345, 23
  %v2347 = vsub.s32 %v2346, 127
  %v2348 = vand.u32 2147483647, %v364
  %v2349 = vand.u32 %v2348, 8388607
  %v2350 = vor.u32 %v2349, 8388608
  %v2351 = vsub.s32 0, %v2350
  %v2352 = vadd.s32 %v2347, 1
  %vm2353 = vcmp.gt.s32.totalorder %v2352, 0
  %v2354 = vsel %vm2353, %v2352, 0
  %v2355 = vshrl.u32 %v2354, 5
  %v2356 = vand.u32 %v2354, 31
  %v2357 = vsub.s32 32, %v2356
  %v2358 = vshrl.u32 683565275, %v2357
  %v2359 = vshll.u32 683565275, %v2356
  %v2360 = vshrl.u32 2475754826, %v2357
  %v2361 = vor.u32 %v2359, %v2360
  %v2362 = vshll.u32 2475754826, %v2356
  %v2363 = vshrl.u32 2131351028, %v2357
  %v2364 = vor.u32 %v2362, %v2363
  %v2365 = vshll.u32 2131351028, %v2356
  %v2366 = vshrl.u32 2102212464, %v2357
  %v2367 = vor.u32 %v2365, %v2366
  %v2368 = vshll.u32 2102212464, %v2356
  %v2369 = vshrl.u32 920167782, %v2357
  %v2370 = vor.u32 %v2368, %v2369
  %v2371 = vshll.u32 920167782, %v2356
  %v2372 = vshrl.u32 1326507024, %v2357
  %v2373 = vor.u32 %v2371, %v2372
  %vm2374 = vcmp.lt.s32.totalorder %v2355, 1
  %vm2375 = vcmp.lt.s32.totalorder %v2355, 2
  %vm2376 = vcmp.lt.s32.totalorder %v2355, 3
  %vm2377 = vcmp.lt.s32.totalorder %v2355, 4
  %v2378 = vsel %vm2374, %v2358, %v2361
  %v2379 = vsel %vm2377, %v2367, 2102212464
  %v2380 = vsel %vm2376, %v2364, %v2379
  %v2381 = vsel %vm2375, %v2378, %v2380
  %v2382 = vsel %vm2374, %v2361, %v2364
  %v2383 = vsel %vm2377, %v2370, 920167782
  %v2384 = vsel %vm2376, %v2367, %v2383
  %v2385 = vsel %vm2375, %v2382, %v2384
  %v2386 = vsel %vm2374, %v2364, %v2367
  %v2387 = vsel %vm2377, %v2373, 1326507024
  %v2388 = vsel %vm2376, %v2370, %v2387
  %v2389 = vsel %vm2375, %v2386, %v2388
  %v2390 = vshll.u32 %v2350, 8
  %v2391 = vmul.u32.u64.compose %v2390, %v2389
  %v2392 = vextract.low.u32 %v2391
  %v2393 = vextract.high.u32 %v2391
  %v2394 = vmul.u32.u64.compose %v2390, %v2385
  %v2395 = vextract.low.u32 %v2394
  %v2396 = vextract.high.u32 %v2394
  %v2397 = vmul.u32 %v2390, %v2381
  %v2398 = vadd.s32 %v2393, %v2395
  %vm2399 = vc.u32 %v2393, %v2395
  %v2400 = vadd.s32 %v2396, 1
  %v2401 = vsel %vm2399, %v2400, %v2396
  %v2402 = vadd.s32 %v2397, %v2401
  %v2403 = vadd.s32 %v2402, 536870912
  %v2404 = vshrl.u32 %v2403, 30
  %v2405 = vshll.u32 %v2404, 30
  %v2406 = vsub.s32 %v2402, %v2405
  %vm2407 = vcmp.lt.s32.totalorder %v2406, 0
  %v2408 = vsub.s32 0, %v2406
  %v2409 = vsel %vm2407, %v2408, %v2406
  %v2410 = vclz %v2409
  %v2411 = vsub.s32 %v2410, 2
  %vm2412 = vcmp.gt.s32.totalorder 0, %v2411
  %v2413 = vsel %vm2412, 0, %v2411
  %v2414 = vsub.s32 32, %v2413
  %v2415 = vshll.u32 %v2406, %v2413
  %v2416 = vshrl.u32 %v2398, %v2414
  %v2417 = vor.u32 %v2415, %v2416
  %v2418 = vsub.s32 4294967266, %v2413
  %v2419 = vadd.s32 %v2418, 127
  %v2420 = vshll.u32 %v2419, 23
  %v2421 = vor.u32 4788187, %v2420
  %v2422 = vand.u32 2147483647, %v2421
  %v2424 = vcvt.s32.f32 %v2417
  %v2425 = vmul.f32 %v2424, %v2422
  %v2426 = vxor.u32 %v2425, 2147483648
  %v2427 = vsel %vm2344, %v2426, %v2425
  %v2428 = vsub.s32 4, %v2404
  %v2429 = vsel %vm2344, %v2428, %v2404
  %v2430 = vsel %vm2343, %v364, %v2427
  %v2431 = vsel %vm2343, 0, %v2429
  %v2432 = vcosq.f32.pop %v2430
  %v2433 = vsinq.f32.pop %v2430
  %vm2434 = vweird.f32 %v364
  %v2435 = vadd.s32 %v2431, 3
  %v2436 = vand.u32 %v2435, 3
  %vm2437 = vcmp.lt.s32.totalorder %v2436, 2
  %vm2438 = vcmp.eq.s32.totalorder %v2436, 0
  %v2439 = vxor.u32 %v2433, 2147483648
  %v2440 = vsel %vm2438, %v2432, %v2439
  %vm2441 = vcmp.eq.s32.totalorder %v2436, 2
  %v2442 = vxor.u32 %v2432, 2147483648
  %v2443 = vsel %vm2441, %v2442, %v2433
  %v2444 = vsel %vm2437, %v2440, %v2443
  %v2445 = vsel %vm2434, nan, %v2444
  %v2446 = vand.u32 2147483647, %v365
  %vm2447 = vcmp.le.f32.partialorder %v2446, 0.7853982
  %vm2448 = vcmp.lt.s32.totalorder %v365, 0
  %v2449 = vand.u32 %v365, 2139095040
  %v2450 = vshrl.u32 %v2449, 23
  %v2451 = vsub.s32 %v2450, 127
  %v2452 = vand.u32 2147483647, %v365
  %v2453 = vand.u32 %v2452, 8388607
  %v2454 = vor.u32 %v2453, 8388608
  %v2455 = vsub.s32 0, %v2454
  %v2456 = vadd.s32 %v2451, 1
  %vm2457 = vcmp.gt.s32.totalorder %v2456, 0
  %v2458 = vsel %vm2457, %v2456, 0
  %v2459 = vshrl.u32 %v2458, 5
  %v2460 = vand.u32 %v2458, 31
  %v2461 = vsub.s32 32, %v2460
  %v2462 = vshrl.u32 683565275, %v2461
  %v2463 = vshll.u32 683565275, %v2460
  %v2464 = vshrl.u32 2475754826, %v2461
  %v2465 = vor.u32 %v2463, %v2464
  %v2466 = vshll.u32 2475754826, %v2460
  %v2467 = vshrl.u32 2131351028, %v2461
  %v2468 = vor.u32 %v2466, %v2467
  %v2469 = vshll.u32 2131351028, %v2460
  %v2470 = vshrl.u32 2102212464, %v2461
  %v2471 = vor.u32 %v2469, %v2470
  %v2472 = vshll.u32 2102212464, %v2460
  %v2473 = vshrl.u32 920167782, %v2461
  %v2474 = vor.u32 %v2472, %v2473
  %v2475 = vshll.u32 920167782, %v2460
  %v2476 = vshrl.u32 1326507024, %v2461
  %v2477 = vor.u32 %v2475, %v2476
  %vm2478 = vcmp.lt.s32.totalorder %v2459, 1
  %vm2479 = vcmp.lt.s32.totalorder %v2459, 2
  %vm2480 = vcmp.lt.s32.totalorder %v2459, 3
  %vm2481 = vcmp.lt.s32.totalorder %v2459, 4
  %v2482 = vsel %vm2478, %v2462, %v2465
  %v2483 = vsel %vm2481, %v2471, 2102212464
  %v2484 = vsel %vm2480, %v2468, %v2483
  %v2485 = vsel %vm2479, %v2482, %v2484
  %v2486 = vsel %vm2478, %v2465, %v2468
  %v2487 = vsel %vm2481, %v2474, 920167782
  %v2488 = vsel %vm2480, %v2471, %v2487
  %v2489 = vsel %vm2479, %v2486, %v2488
  %v2490 = vsel %vm2478, %v2468, %v2471
  %v2491 = vsel %vm2481, %v2477, 1326507024
  %v2492 = vsel %vm2480, %v2474, %v2491
  %v2493 = vsel %vm2479, %v2490, %v2492
  %v2494 = vshll.u32 %v2454, 8
  %v2495 = vmul.u32.u64.compose %v2494, %v2493
  %v2496 = vextract.low.u32 %v2495
  %v2497 = vextract.high.u32 %v2495
  %v2498 = vmul.u32.u64.compose %v2494, %v2489
  %v2499 = vextract.low.u32 %v2498
  %v2500 = vextract.high.u32 %v2498
  %v2501 = vmul.u32 %v2494, %v2485
  %v2502 = vadd.s32 %v2497, %v2499
  %vm2503 = vc.u32 %v2497, %v2499
  %v2504 = vadd.s32 %v2500, 1
  %v2505 = vsel %vm2503, %v2504, %v2500
  %v2506 = vadd.s32 %v2501, %v2505
  %v2507 = vadd.s32 %v2506, 536870912
  %v2508 = vshrl.u32 %v2507, 30
  %v2509 = vshll.u32 %v2508, 30
  %v2510 = vsub.s32 %v2506, %v2509
  %vm2511 = vcmp.lt.s32.totalorder %v2510, 0
  %v2512 = vsub.s32 0, %v2510
  %v2513 = vsel %vm2511, %v2512, %v2510
  %v2514 = vclz %v2513
  %v2515 = vsub.s32 %v2514, 2
  %vm2516 = vcmp.gt.s32.totalorder 0, %v2515
  %v2517 = vsel %vm2516, 0, %v2515
  %v2518 = vsub.s32 32, %v2517
  %v2519 = vshll.u32 %v2510, %v2517
  %v2520 = vshrl.u32 %v2502, %v2518
  %v2521 = vor.u32 %v2519, %v2520
  %v2522 = vsub.s32 4294967266, %v2517
  %v2523 = vadd.s32 %v2522, 127
  %v2524 = vshll.u32 %v2523, 23
  %v2525 = vor.u32 4788187, %v2524
  %v2526 = vand.u32 2147483647, %v2525
  %v2528 = vcvt.s32.f32 %v2521
  %v2529 = vmul.f32 %v2528, %v2526
  %v2530 = vxor.u32 %v2529, 2147483648
  %v2531 = vsel %vm2448, %v2530, %v2529
  %v2532 = vsub.s32 4, %v2508
  %v2533 = vsel %vm2448, %v2532, %v2508
  %v2534 = vsel %vm2447, %v365, %v2531
  %v2535 = vsel %vm2447, 0, %v2533
  %v2536 = vcosq.f32.pop %v2534
  %v2537 = vsinq.f32.pop %v2534
  %vm2538 = vweird.f32 %v365
  %v2539 = vadd.s32 %v2535, 3
  %v2540 = vand.u32 %v2539, 3
  %vm2541 = vcmp.lt.s32.totalorder %v2540, 2
  %vm2542 = vcmp.eq.s32.totalorder %v2540, 0
  %v2543 = vxor.u32 %v2537, 2147483648
  %v2544 = vsel %vm2542, %v2536, %v2543
  %vm2545 = vcmp.eq.s32.totalorder %v2540, 2
  %v2546 = vxor.u32 %v2536, 2147483648
  %v2547 = vsel %vm2545, %v2546, %v2537
  %v2548 = vsel %vm2541, %v2544, %v2547
  %v2549 = vsel %vm2538, nan, %v2548
  %2550 = vmatprep.subr.mxu0 0.0
  %2551 = vmatpush1.msra.mxu0 %v216
  %2552 = vmatprep.subr.mxu0 0.0
  %2553 = vmatpush1.msra.mxu0 %v217
  %2554 = vmatprep.subr.mxu0 0.0
  %2555 = vmatpush1.msra.mxu0 %v218
  %2556 = vmatprep.subr.mxu0 0.0
  %2557 = vmatpush1.msra.mxu0 %v219
  %2558 = vmatprep.subr.mxu0 0.0
  %2559 = vmatpush1.msra.mxu0 %v220
  %2560 = vmatprep.subr.mxu0 0.0
  %2561 = vmatpush1.msra.mxu0 %v221
  %2562 = vmatprep.subr.mxu0 0.0
  %2563 = vmatpush1.msra.mxu0 %v222
  %2564 = vmatprep.subr.mxu0 0.0
  %2565 = vmatpush1.msra.mxu0 %v223
  %2566 = vmatprep.subr.mxu0 0.0
  %2567 = vmatpush1.msra.mxu0 %v224
  %2568 = vmatprep.subr.mxu0 0.0
  %2569 = vmatpush1.msra.mxu0 %v225
  %2570 = vmatprep.subr.mxu0 0.0
  %2571 = vmatpush1.msra.mxu0 %v226
  %2572 = vmatprep.subr.mxu0 0.0
  %2573 = vmatpush1.msra.mxu0 %v227
  %2574 = vmatprep.subr.mxu0 0.0
  %2575 = vmatpush1.msra.mxu0 %v228
  %2576 = vmatprep.subr.mxu0 0.0
  %2577 = vmatpush1.msra.mxu0 %v229
  %2578 = vmatprep.subr.mxu0 0.0
  %2579 = vmatpush1.msra.mxu0 %v230
  %2580 = vmatprep.subr.mxu0 0.0
  %2581 = vmatpush1.msra.mxu0 %v231
  %2582 = vmatprep.subr.mxu0 0.0
  %2583 = vmatpush1.msra.mxu0 0.0
  %2584 = vmatprep.subr.mxu0 0.0
  %2585 = vmatpush1.msra.mxu0 0.0
  %2586 = vmatprep.subr.mxu0 0.0
  %2587 = vmatpush1.msra.mxu0 0.0
  %2588 = vmatprep.subr.mxu0 0.0
  %2589 = vmatpush1.msra.mxu0 0.0
  %2590 = vmatprep.subr.mxu0 0.0
  %2591 = vmatpush1.msra.mxu0 0.0
  %2592 = vmatprep.subr.mxu0 0.0
  %2593 = vmatpush1.msra.mxu0 0.0
  %2594 = vmatprep.subr.mxu0 0.0
  %2595 = vmatpush1.msra.mxu0 0.0
  %2596 = vmatprep.subr.mxu0 0.0
  %2597 = vmatpush1.msra.mxu0 0.0
  %2598 = vmatprep.subr.mxu0 0.0
  %2599 = vmatpush1.msra.mxu0 0.0
  %2600 = vmatprep.subr.mxu0 0.0
  %2601 = vmatpush1.msra.mxu0 0.0
  %2602 = vmatprep.subr.mxu0 0.0
  %2603 = vmatpush1.msra.mxu0 0.0
  %2604 = vmatprep.subr.mxu0 0.0
  %2605 = vmatpush1.msra.mxu0 0.0
  %2606 = vmatprep.subr.mxu0 0.0
  %2607 = vmatpush1.msra.mxu0 0.0
  %2608 = vmatprep.subr.mxu0 0.0
  %2609 = vmatpush1.msra.mxu0 0.0
  %2610 = vmatprep.subr.mxu0 0.0
  %2611 = vmatpush1.msra.mxu0 0.0
  %2612 = vmatprep.subr.mxu0 0.0
  %2613 = vmatpush1.msra.mxu0 0.0
  %2614 = vmatprep.mubr.f32.mxu0 0.0
  %2615 = vmatmul.mubr.f32.gmra.mrb[0].mxu0 %v195
  %v2616 = vpop.f32.mrb[0].mxu0
  %v2617 = vadd.f32 %v469, %v2616
  %v2618 = vpop.f32.mrb[0].mxu0
  %2619 = vmatprep.mubr.f32.mxu0 0.0
  %2620 = vmatmul.mubr.f32.gmra.mrb[0].mxu0 %v196
  %v2621 = vpop.f32.mrb[0].mxu0
  %v2622 = vadd.f32 %v573, %v2621
  %v2623 = vpop.f32.mrb[0].mxu0
  %2624 = vmatprep.mubr.f32.mxu0 0.0
  %2625 = vmatmul.mubr.f32.gmra.mrb[0].mxu0 %v197
  %v2626 = vpop.f32.mrb[0].mxu0
  %v2627 = vadd.f32 %v677, %v2626
  %v2628 = vpop.f32.mrb[0].mxu0
  %2629 = vmatprep.mubr.f32.mxu0 0.0
  %2630 = vmatmul.mubr.f32.gmra.mrb[0].mxu0 %v198
  %v2631 = vpop.f32.mrb[0].mxu0
  %v2632 = vadd.f32 %v781, %v2631
  %v2633 = vpop.f32.mrb[0].mxu0
  %2634 = vmatprep.mubr.f32.mxu0 0.0
  %2635 = vmatmul.mubr.f32.gmra.mrb[0].mxu0 %v199
  %v2636 = vpop.f32.mrb[0].mxu0
  %v2637 = vadd.f32 %v885, %v2636
  %v2638 = vpop.f32.mrb[0].mxu0
  %2639 = vmatprep.mubr.f32.mxu0 0.0
  %2640 = vmatmul.mubr.f32.gmra.mrb[0].mxu0 %v200
  %v2641 = vpop.f32.mrb[0].mxu0
  %v2642 = vadd.f32 %v989, %v2641
  %v2643 = vpop.f32.mrb[0].mxu0
  %2644 = vmatprep.mubr.f32.mxu0 0.0
  %2645 = vmatmul.mubr.f32.gmra.mrb[0].mxu0 %v201
  %v2646 = vpop.f32.mrb[0].mxu0
  %v2647 = vadd.f32 %v1093, %v2646
  %v2648 = vpop.f32.mrb[0].mxu0
  %2649 = vmatprep.mubr.f32.mxu0 0.0
  %2650 = vmatmul.mubr.f32.gmra.mrb[0].mxu0 %v202
  %v2651 = vpop.f32.mrb[0].mxu0
  %v2652 = vadd.f32 %v1197, %v2651
  %v2653 = vpop.f32.mrb[0].mxu0
  %2654 = vmatprep.mubr.f32.mxu0 0.0
  %2655 = vmatmul.mubr.f32.gmra.mrb[0].mxu0 %v203
  %v2656 = vpop.f32.mrb[0].mxu0
  %v2657 = vadd.f32 %v1301, %v2656
  %v2658 = vpop.f32.mrb[0].mxu0
  %2659 = vmatprep.mubr.f32.mxu0 0.0
  %2660 = vmatmul.mubr.f32.gmra.mrb[0].mxu0 %v204
  %v2661 = vpop.f32.mrb[0].mxu0
  %v2662 = vadd.f32 %v1405, %v2661
  %v2663 = vpop.f32.mrb[0].mxu0
  %2664 = vmatprep.mubr.f32.mxu0 0.0
  %2665 = vmatmul.mubr.f32.gmra.mrb[0].mxu0 %v205
  %v2666 = vpop.f32.mrb[0].mxu0
  %v2667 = vadd.f32 %v1509, %v2666
  %v2668 = vpop.f32.mrb[0].mxu0
  %2669 = vmatprep.mubr.f32.mxu0 0.0
  %2670 = vmatmul.mubr.f32.gmra.mrb[0].mxu0 %v206
  %v2671 = vpop.f32.mrb[0].mxu0
  %v2672 = vadd.f32 %v1613, %v2671
  %v2673 = vpop.f32.mrb[0].mxu0
  %2674 = vmatprep.mubr.f32.mxu0 0.0
  %2675 = vmatmul.mubr.f32.gmra.mrb[0].mxu0 %v207
  %v2676 = vpop.f32.mrb[0].mxu0
  %v2677 = vadd.f32 %v1717, %v2676
  %v2678 = vpop.f32.mrb[0].mxu0
  %2679 = vmatprep.mubr.f32.mxu0 0.0
  %2680 = vmatmul.mubr.f32.gmra.mrb[0].mxu0 %v208
  %v2681 = vpop.f32.mrb[0].mxu0
  %v2682 = vadd.f32 %v1821, %v2681
  %v2683 = vpop.f32.mrb[0].mxu0
  %2684 = vmatprep.mubr.f32.mxu0 0.0
  %2685 = vmatmul.mubr.f32.gmra.mrb[0].mxu0 %v209
  %v2686 = vpop.f32.mrb[0].mxu0
  %v2687 = vadd.f32 %v1925, %v2686
  %v2688 = vpop.f32.mrb[0].mxu0
  %2689 = vmatprep.mubr.f32.mxu0 0.0
  %2690 = vmatmul.mubr.f32.gmra.mrb[0].mxu0 %v210
  %v2691 = vpop.f32.mrb[0].mxu0
  %v2692 = vadd.f32 %v2029, %v2691
  %v2693 = vpop.f32.mrb[0].mxu0
  %2694 = vmatprep.mubr.f32.mxu0 0.0
  %2695 = vmatmul.mubr.f32.gmra.mrb[0].mxu0 %v211
  %v2696 = vpop.f32.mrb[0].mxu0
  %v2697 = vadd.f32 %v2133, %v2696
  %v2698 = vpop.f32.mrb[0].mxu0
  %2699 = vmatprep.mubr.f32.mxu0 0.0
  %2700 = vmatmul.mubr.f32.gmra.mrb[0].mxu0 %v212
  %v2701 = vpop.f32.mrb[0].mxu0
  %v2702 = vadd.f32 %v2237, %v2701
  %v2703 = vpop.f32.mrb[0].mxu0
  %2704 = vmatprep.mubr.f32.mxu0 0.0
  %2705 = vmatmul.mubr.f32.gmra.mrb[0].mxu0 %v213
  %v2706 = vpop.f32.mrb[0].mxu0
  %v2707 = vadd.f32 %v2341, %v2706
  %v2708 = vpop.f32.mrb[0].mxu0
  %2709 = vmatprep.mubr.f32.mxu0 0.0
  %2710 = vmatmul.mubr.f32.gmra.mrb[0].mxu0 %v214
  %v2711 = vpop.f32.mrb[0].mxu0
  %v2712 = vadd.f32 %v2445, %v2711
  %v2713 = vpop.f32.mrb[0].mxu0
  %2714 = vmatprep.mubr.f32.mxu0 0.0
  %2715 = vmatmul.mubr.f32.gmra.mrb[0].mxu0 %v215
  %v2716 = vpop.f32.mrb[0].mxu0
  %v2717 = vadd.f32 %v2549, %v2716
  %v2718 = vpop.f32.mrb[0].mxu0
  %2719 = vdwg.mxu0
  %2720 = vset.pattern.permute.xlu0 2
  %2721 = vperm.xlu0 %2720, %v23
  %v2722 = vpop.permute.xlu0 %2721
  %2724 = vset.pattern.permute.xlu0 2
  %2725 = vperm.xlu0 %2724, %v24
  %v2726 = vpop.permute.xlu0 %2725
  %2728 = vset.pattern.permute.xlu0 2
  %2729 = vperm.xlu0 %2728, %v25
  %v2730 = vpop.permute.xlu0 %2729
  %2732 = vset.pattern.permute.xlu0 2
  %2733 = vperm.xlu0 %2732, %v26
  %v2734 = vpop.permute.xlu0 %2733
  %2736 = vset.pattern.permute.xlu0 2
  %2737 = vperm.xlu0 %2736, %v27
  %v2738 = vpop.permute.xlu0 %2737
  %2740 = vset.pattern.permute.xlu0 2
  %2741 = vperm.xlu0 %2740, %v28
  %v2742 = vpop.permute.xlu0 %2741
  %2744 = vset.pattern.permute.xlu0 2
  %2745 = vperm.xlu0 %2744, %v29
  %v2746 = vpop.permute.xlu0 %2745
  %2748 = vset.pattern.permute.xlu0 2
  %2749 = vperm.xlu0 %2748, %v30
  %v2750 = vpop.permute.xlu0 %2749
  %2752 = vset.pattern.permute.xlu0 2
  %2753 = vperm.xlu0 %2752, %v31
  %v2754 = vpop.permute.xlu0 %2753
  %2756 = vset.pattern.permute.xlu0 2
  %2757 = vperm.xlu0 %2756, %v32
  %v2758 = vpop.permute.xlu0 %2757
  %2760 = vset.pattern.permute.xlu0 2
  %2761 = vperm.xlu0 %2760, %v33
  %v2762 = vpop.permute.xlu0 %2761
  %2764 = vset.pattern.permute.xlu0 2
  %2765 = vperm.xlu0 %2764, %v34
  %v2766 = vpop.permute.xlu0 %2765
  %2768 = vset.pattern.permute.xlu0 2
  %2769 = vperm.xlu0 %2768, %v35
  %v2770 = vpop.permute.xlu0 %2769
  %2772 = vset.pattern.permute.xlu0 2
  %2773 = vperm.xlu0 %2772, %v36
  %v2774 = vpop.permute.xlu0 %2773
  %2776 = vset.pattern.permute.xlu0 2
  %2777 = vperm.xlu0 %2776, %v37
  %v2778 = vpop.permute.xlu0 %2777
  %2780 = vset.pattern.permute.xlu0 2
  %2781 = vperm.xlu0 %2780, %v38
  %v2782 = vpop.permute.xlu0 %2781
  %2784 = vset.pattern.permute.xlu0 2
  %2785 = vperm.xlu0 %2784, %v39
  %v2786 = vpop.permute.xlu0 %2785
  %2788 = vset.pattern.permute.xlu0 2
  %2789 = vperm.xlu0 %2788, %v40
  %v2790 = vpop.permute.xlu0 %2789
  %2792 = vset.pattern.permute.xlu0 2
  %2793 = vperm.xlu0 %2792, %v41
  %v2794 = vpop.permute.xlu0 %2793
  %2796 = vset.pattern.permute.xlu0 2
  %2797 = vperm.xlu0 %2796, %v42
  %v2798 = vpop.permute.xlu0 %2797
  %2800 = vset.pattern.permute.xlu0 2
  %2801 = vperm.xlu0 %2800, %v43
  %v2802 = vpop.permute.xlu0 %2801
  %v2804 = vlaneseq
  %v2805 = vshrl.u32 %v2804, 7
  %v2806 = vsub.s32 2, %v2805
  %v2807 = vrot.slane %v44, %v2806
  %v2808 = vmul.f32 %v2722, %v2807
  %v2809 = vmul.f32 %v2726, %v2807
  %v2810 = vmul.f32 %v2730, %v2807
  %v2811 = vmul.f32 %v2734, %v2807
  %v2812 = vmul.f32 %v2738, %v2807
  %v2813 = vmul.f32 %v2742, %v2807
  %v2814 = vmul.f32 %v2746, %v2807
  %v2815 = vmul.f32 %v2750, %v2807
  %v2816 = vmul.f32 %v2754, %v2807
  %v2817 = vmul.f32 %v2758, %v2807
  %v2818 = vmul.f32 %v2762, %v2807
  %v2819 = vmul.f32 %v2766, %v2807
  %v2820 = vmul.f32 %v2770, %v2807
  %v2821 = vmul.f32 %v2774, %v2807
  %v2822 = vmul.f32 %v2778, %v2807
  %v2823 = vmul.f32 %v2782, %v2807
  %v2824 = vmul.f32 %v2786, %v2807
  %v2825 = vmul.f32 %v2790, %v2807
  %v2826 = vmul.f32 %v2794, %v2807
  %v2827 = vmul.f32 %v2798, %v2807
  %v2828 = vmul.f32 %v2802, %v2807
  %v2829 = vadd.f32 %v2617, %v2808
  %v2830 = vadd.f32 %v2622, %v2809
  %v2831 = vadd.f32 %v2627, %v2810
  %v2832 = vadd.f32 %v2632, %v2811
  %v2833 = vadd.f32 %v2637, %v2812
  %v2834 = vadd.f32 %v2642, %v2813
  %v2835 = vadd.f32 %v2647, %v2814
  %v2836 = vadd.f32 %v2652, %v2815
  %v2837 = vadd.f32 %v2657, %v2816
  %v2838 = vadd.f32 %v2662, %v2817
  %v2839 = vadd.f32 %v2667, %v2818
  %v2840 = vadd.f32 %v2672, %v2819
  %v2841 = vadd.f32 %v2677, %v2820
  %v2842 = vadd.f32 %v2682, %v2821
  %v2843 = vadd.f32 %v2687, %v2822
  %v2844 = vadd.f32 %v2692, %v2823
  %v2845 = vadd.f32 %v2697, %v2824
  %v2846 = vadd.f32 %v2702, %v2825
  %v2847 = vadd.f32 %v2707, %v2826
  %v2848 = vadd.f32 %v2712, %v2827
  %v2849 = vadd.f32 %v2717, %v2828
  %v2850 = vld [vmem:[%s3] sm:$0xff]
  %v2851 = vld [vmem:[%s3 + $0x8] sm:$0xff]
  %v2852 = vld [vmem:[%s3 + $0x10] sm:$0xff]
  %v2853 = vld [vmem:[%s3 + $0x18] sm:$0xff]
  %v2854 = vld [vmem:[%s3 + $0x20] sm:$0xff]
  %v2855 = vld [vmem:[%s3 + $0x28] sm:$0xff]
  %v2856 = vld [vmem:[%s3 + $0x30] sm:$0xff]
  %v2857 = vld [vmem:[%s3 + $0x38] sm:$0xff]
  %v2858 = vld [vmem:[%s3 + $0x40] sm:$0xff]
  %v2859 = vld [vmem:[%s3 + $0x48] sm:$0xff]
  %v2860 = vld [vmem:[%s3 + $0x50] sm:$0xff]
  %v2861 = vld [vmem:[%s3 + $0x58] sm:$0xff]
  %v2862 = vld [vmem:[%s3 + $0x60] sm:$0xff]
  %v2863 = vld [vmem:[%s3 + $0x68] sm:$0xff]
  %v2864 = vld [vmem:[%s3 + $0x70] sm:$0xff]
  %v2865 = vld [vmem:[%s3 + $0x78] sm:$0xff]
  %v2866 = vlaneseq
  %v2867 = vshrl.u32 %v2866, 7
  %v2868 = vsub.s32 3, %v2867
  %v2869 = vrot.slane %v44, %v2868
  %2870 = vmatprep.subr.mxu0 0.0
  %2871 = vmatpush1.msra.mxu0 %v2850
  %2872 = vmatprep.subr.mxu0 0.0
  %2873 = vmatpush1.msra.mxu0 %v2851
  %2874 = vmatprep.subr.mxu0 0.0
  %2875 = vmatpush1.msra.mxu0 %v2852
  %2876 = vmatprep.subr.mxu0 0.0
  %2877 = vmatpush1.msra.mxu0 %v2853
  %2878 = vmatprep.subr.mxu0 0.0
  %2879 = vmatpush1.msra.mxu0 %v2854
  %2880 = vmatprep.subr.mxu0 0.0
  %2881 = vmatpush1.msra.mxu0 %v2855
  %2882 = vmatprep.subr.mxu0 0.0
  %2883 = vmatpush1.msra.mxu0 %v2856
  %2884 = vmatprep.subr.mxu0 0.0
  %2885 = vmatpush1.msra.mxu0 %v2857
  %2886 = vmatprep.subr.mxu0 0.0
  %2887 = vmatpush1.msra.mxu0 %v2858
  %2888 = vmatprep.subr.mxu0 0.0
  %2889 = vmatpush1.msra.mxu0 %v2859
  %2890 = vmatprep.subr.mxu0 0.0
  %2891 = vmatpush1.msra.mxu0 %v2860
  %2892 = vmatprep.subr.mxu0 0.0
  %2893 = vmatpush1.msra.mxu0 %v2861
  %2894 = vmatprep.subr.mxu0 0.0
  %2895 = vmatpush1.msra.mxu0 %v2862
  %2896 = vmatprep.subr.mxu0 0.0
  %2897 = vmatpush1.msra.mxu0 %v2863
  %2898 = vmatprep.subr.mxu0 0.0
  %2899 = vmatpush1.msra.mxu0 %v2864
  %2900 = vmatprep.subr.mxu0 0.0
  %2901 = vmatpush1.msra.mxu0 %v2865
  %2902 = vmatprep.subr.mxu0 0.0
  %2903 = vmatpush1.msra.mxu0 0.0
  %2904 = vmatprep.subr.mxu0 0.0
  %2905 = vmatpush1.msra.mxu0 0.0
  %2906 = vmatprep.subr.mxu0 0.0
  %2907 = vmatpush1.msra.mxu0 0.0
  %2908 = vmatprep.subr.mxu0 0.0
  %2909 = vmatpush1.msra.mxu0 0.0
  %2910 = vmatprep.subr.mxu0 0.0
  %2911 = vmatpush1.msra.mxu0 0.0
  %2912 = vmatprep.subr.mxu0 0.0
  %2913 = vmatpush1.msra.mxu0 0.0
  %2914 = vmatprep.subr.mxu0 0.0
  %2915 = vmatpush1.msra.mxu0 0.0
  %2916 = vmatprep.subr.mxu0 0.0
  %2917 = vmatpush1.msra.mxu0 0.0
  %2918 = vmatprep.subr.mxu0 0.0
  %2919 = vmatpush1.msra.mxu0 0.0
  %2920 = vmatprep.subr.mxu0 0.0
  %2921 = vmatpush1.msra.mxu0 0.0
  %2922 = vmatprep.subr.mxu0 0.0
  %2923 = vmatpush1.msra.mxu0 0.0
  %2924 = vmatprep.subr.mxu0 0.0
  %2925 = vmatpush1.msra.mxu0 0.0
  %2926 = vmatprep.subr.mxu0 0.0
  %2927 = vmatpush1.msra.mxu0 0.0
  %2928 = vmatprep.subr.mxu0 0.0
  %2929 = vmatpush1.msra.mxu0 0.0
  %2930 = vmatprep.subr.mxu0 0.0
  %2931 = vmatpush1.msra.mxu0 0.0
  %2932 = vmatprep.subr.mxu0 0.0
  %2933 = vmatpush1.msra.mxu0 0.0
  %2934 = vmatprep.mubr.f32.mxu0 0.0
  %2935 = vmatmul.mubr.f32.gmra.mrb[0].mxu0 %v2829
  %v2936 = vpop.f32.mrb[0].mxu0
  %v2937 = vadd.f32 %v2869, %v2936
  %v2938 = vpop.f32.mrb[0].mxu0
  %2939 = vmatprep.mubr.f32.mxu0 0.0
  %2940 = vmatmul.mubr.f32.gmra.mrb[0].mxu0 %v2830
  %v2941 = vpop.f32.mrb[0].mxu0
  %v2942 = vadd.f32 %v2869, %v2941
  %v2943 = vpop.f32.mrb[0].mxu0
  %2944 = vmatprep.mubr.f32.mxu0 0.0
  %2945 = vmatmul.mubr.f32.gmra.mrb[0].mxu0 %v2831
  %v2946 = vpop.f32.mrb[0].mxu0
  %v2947 = vadd.f32 %v2869, %v2946
  %v2948 = vpop.f32.mrb[0].mxu0
  %2949 = vmatprep.mubr.f32.mxu0 0.0
  %2950 = vmatmul.mubr.f32.gmra.mrb[0].mxu0 %v2832
  %v2951 = vpop.f32.mrb[0].mxu0
  %v2952 = vadd.f32 %v2869, %v2951
  %v2953 = vpop.f32.mrb[0].mxu0
  %2954 = vmatprep.mubr.f32.mxu0 0.0
  %2955 = vmatmul.mubr.f32.gmra.mrb[0].mxu0 %v2833
  %v2956 = vpop.f32.mrb[0].mxu0
  %v2957 = vadd.f32 %v2869, %v2956
  %v2958 = vpop.f32.mrb[0].mxu0
  %2959 = vmatprep.mubr.f32.mxu0 0.0
  %2960 = vmatmul.mubr.f32.gmra.mrb[0].mxu0 %v2834
  %v2961 = vpop.f32.mrb[0].mxu0
  %v2962 = vadd.f32 %v2869, %v2961
  %v2963 = vpop.f32.mrb[0].mxu0
  %2964 = vmatprep.mubr.f32.mxu0 0.0
  %2965 = vmatmul.mubr.f32.gmra.mrb[0].mxu0 %v2835
  %v2966 = vpop.f32.mrb[0].mxu0
  %v2967 = vadd.f32 %v2869, %v2966
  %v2968 = vpop.f32.mrb[0].mxu0
  %2969 = vmatprep.mubr.f32.mxu0 0.0
  %2970 = vmatmul.mubr.f32.gmra.mrb[0].mxu0 %v2836
  %v2971 = vpop.f32.mrb[0].mxu0
  %v2972 = vadd.f32 %v2869, %v2971
  %v2973 = vpop.f32.mrb[0].mxu0
  %2974 = vmatprep.mubr.f32.mxu0 0.0
  %2975 = vmatmul.mubr.f32.gmra.mrb[0].mxu0 %v2837
  %v2976 = vpop.f32.mrb[0].mxu0
  %v2977 = vadd.f32 %v2869, %v2976
  %v2978 = vpop.f32.mrb[0].mxu0
  %2979 = vmatprep.mubr.f32.mxu0 0.0
  %2980 = vmatmul.mubr.f32.gmra.mrb[0].mxu0 %v2838
  %v2981 = vpop.f32.mrb[0].mxu0
  %v2982 = vadd.f32 %v2869, %v2981
  %v2983 = vpop.f32.mrb[0].mxu0
  %2984 = vmatprep.mubr.f32.mxu0 0.0
  %2985 = vmatmul.mubr.f32.gmra.mrb[0].mxu0 %v2839
  %v2986 = vpop.f32.mrb[0].mxu0
  %v2987 = vadd.f32 %v2869, %v2986
  %v2988 = vpop.f32.mrb[0].mxu0
  %2989 = vmatprep.mubr.f32.mxu0 0.0
  %2990 = vmatmul.mubr.f32.gmra.mrb[0].mxu0 %v2840
  %v2991 = vpop.f32.mrb[0].mxu0
  %v2992 = vadd.f32 %v2869, %v2991
  %v2993 = vpop.f32.mrb[0].mxu0
  %2994 = vmatprep.mubr.f32.mxu0 0.0
  %2995 = vmatmul.mubr.f32.gmra.mrb[0].mxu0 %v2841
  %v2996 = vpop.f32.mrb[0].mxu0
  %v2997 = vadd.f32 %v2869, %v2996
  %v2998 = vpop.f32.mrb[0].mxu0
  %2999 = vmatprep.mubr.f32.mxu0 0.0
  %3000 = vmatmul.mubr.f32.gmra.mrb[0].mxu0 %v2842
  %v3001 = vpop.f32.mrb[0].mxu0
  %v3002 = vadd.f32 %v2869, %v3001
  %v3003 = vpop.f32.mrb[0].mxu0
  %3004 = vmatprep.mubr.f32.mxu0 0.0
  %3005 = vmatmul.mubr.f32.gmra.mrb[0].mxu0 %v2843
  %v3006 = vpop.f32.mrb[0].mxu0
  %v3007 = vadd.f32 %v2869, %v3006
  %v3008 = vpop.f32.mrb[0].mxu0
  %3009 = vmatprep.mubr.f32.mxu0 0.0
  %3010 = vmatmul.mubr.f32.gmra.mrb[0].mxu0 %v2844
  %v3011 = vpop.f32.mrb[0].mxu0
  %v3012 = vadd.f32 %v2869, %v3011
  %v3013 = vpop.f32.mrb[0].mxu0
  %3014 = vmatprep.mubr.f32.mxu0 0.0
  %3015 = vmatmul.mubr.f32.gmra.mrb[0].mxu0 %v2845
  %v3016 = vpop.f32.mrb[0].mxu0
  %v3017 = vadd.f32 %v2869, %v3016
  %v3018 = vpop.f32.mrb[0].mxu0
  %3019 = vmatprep.mubr.f32.mxu0 0.0
  %3020 = vmatmul.mubr.f32.gmra.mrb[0].mxu0 %v2846
  %v3021 = vpop.f32.mrb[0].mxu0
  %v3022 = vadd.f32 %v2869, %v3021
  %v3023 = vpop.f32.mrb[0].mxu0
  %3024 = vmatprep.mubr.f32.mxu0 0.0
  %3025 = vmatmul.mubr.f32.gmra.mrb[0].mxu0 %v2847
  %v3026 = vpop.f32.mrb[0].mxu0
  %v3027 = vadd.f32 %v2869, %v3026
  %v3028 = vpop.f32.mrb[0].mxu0
  %3029 = vmatprep.mubr.f32.mxu0 0.0
  %3030 = vmatmul.mubr.f32.gmra.mrb[0].mxu0 %v2848
  %v3031 = vpop.f32.mrb[0].mxu0
  %v3032 = vadd.f32 %v2869, %v3031
  %v3033 = vpop.f32.mrb[0].mxu0
  %3034 = vmatprep.mubr.f32.mxu0 0.0
  %3035 = vmatmul.mubr.f32.gmra.mrb[0].mxu0 %v2849
  %v3036 = vpop.f32.mrb[0].mxu0
  %v3037 = vadd.f32 %v2869, %v3036
  %v3038 = vpop.f32.mrb[0].mxu0
  %3039 = vdwg.mxu0
  %v3040 = vmax.f32 %v2937, 0.0
  %v3041 = vmax.f32 %v2942, 0.0
  %v3042 = vmax.f32 %v2947, 0.0
  %v3043 = vmax.f32 %v2952, 0.0
  %v3044 = vmax.f32 %v2957, 0.0
  %v3045 = vmax.f32 %v2962, 0.0
  %v3046 = vmax.f32 %v2967, 0.0
  %v3047 = vmax.f32 %v2972, 0.0
  %v3048 = vmax.f32 %v2977, 0.0
  %v3049 = vmax.f32 %v2982, 0.0
  %v3050 = vmax.f32 %v2987, 0.0
  %v3051 = vmax.f32 %v2992, 0.0
  %v3052 = vmax.f32 %v2997, 0.0
  %v3053 = vmax.f32 %v3002, 0.0
  %v3054 = vmax.f32 %v3007, 0.0
  %v3055 = vmax.f32 %v3012, 0.0
  %v3056 = vmax.f32 %v3017, 0.0
  %v3057 = vmax.f32 %v3022, 0.0
  %v3058 = vmax.f32 %v3027, 0.0
  %v3059 = vmax.f32 %v3032, 0.0
  %v3060 = vmax.f32 %v3037, 0.0
  %v3061 = vld [vmem:[%s4] sm:$0xff]
  %v3062 = vld [vmem:[%s4 + $0x8] sm:$0xff]
  %v3063 = vld [vmem:[%s4 + $0x10] sm:$0xff]
  %v3064 = vld [vmem:[%s4 + $0x18] sm:$0xff]
  %v3065 = vld [vmem:[%s4 + $0x20] sm:$0xff]
  %v3066 = vld [vmem:[%s4 + $0x28] sm:$0xff]
  %v3067 = vld [vmem:[%s4 + $0x30] sm:$0xff]
  %v3068 = vld [vmem:[%s4 + $0x38] sm:$0xff]
  %v3069 = vld [vmem:[%s4 + $0x40] sm:$0xff]
  %v3070 = vld [vmem:[%s4 + $0x48] sm:$0xff]
  %v3071 = vld [vmem:[%s4 + $0x50] sm:$0xff]
  %v3072 = vld [vmem:[%s4 + $0x58] sm:$0xff]
  %v3073 = vld [vmem:[%s4 + $0x60] sm:$0xff]
  %v3074 = vld [vmem:[%s4 + $0x68] sm:$0xff]
  %v3075 = vld [vmem:[%s4 + $0x70] sm:$0xff]
  %v3076 = vld [vmem:[%s4 + $0x78] sm:$0xff]
  %v3077 = vld [vmem:[%s5] sm:$0x1]
  %v3079 = vlaneseq
  %v3080 = vshrl.u32 %v3079, 7
  %v3081 = vsub.s32 0, %v3080
  %v3082 = vrot.slane %v3077, %v3081
  %3084 = vmatprep.subr.mxu0 0.0
  %3085 = vmatpush1.msra.mxu0 %v3061
  %3086 = vmatprep.subr.mxu0 0.0
  %3087 = vmatpush1.msra.mxu0 %v3062
  %3088 = vmatprep.subr.mxu0 0.0
  %3089 = vmatpush1.msra.mxu0 %v3063
  %3090 = vmatprep.subr.mxu0 0.0
  %3091 = vmatpush1.msra.mxu0 %v3064
  %3092 = vmatprep.subr.mxu0 0.0
  %3093 = vmatpush1.msra.mxu0 %v3065
  %3094 = vmatprep.subr.mxu0 0.0
  %3095 = vmatpush1.msra.mxu0 %v3066
  %3096 = vmatprep.subr.mxu0 0.0
  %3097 = vmatpush1.msra.mxu0 %v3067
  %3098 = vmatprep.subr.mxu0 0.0
  %3099 = vmatpush1.msra.mxu0 %v3068
  %3100 = vmatprep.subr.mxu0 0.0
  %3101 = vmatpush1.msra.mxu0 %v3069
  %3102 = vmatprep.subr.mxu0 0.0
  %3103 = vmatpush1.msra.mxu0 %v3070
  %3104 = vmatprep.subr.mxu0 0.0
  %3105 = vmatpush1.msra.mxu0 %v3071
  %3106 = vmatprep.subr.mxu0 0.0
  %3107 = vmatpush1.msra.mxu0 %v3072
  %3108 = vmatprep.subr.mxu0 0.0
  %3109 = vmatpush1.msra.mxu0 %v3073
  %3110 = vmatprep.subr.mxu0 0.0
  %3111 = vmatpush1.msra.mxu0 %v3074
  %3112 = vmatprep.subr.mxu0 0.0
  %3113 = vmatpush1.msra.mxu0 %v3075
  %3114 = vmatprep.subr.mxu0 0.0
  %3115 = vmatpush1.msra.mxu0 %v3076
  %3116 = vmatprep.subr.mxu0 0.0
  %3117 = vmatpush1.msra.mxu0 0.0
  %3118 = vmatprep.subr.mxu0 0.0
  %3119 = vmatpush1.msra.mxu0 0.0
  %3120 = vmatprep.subr.mxu0 0.0
  %3121 = vmatpush1.msra.mxu0 0.0
  %3122 = vmatprep.subr.mxu0 0.0
  %3123 = vmatpush1.msra.mxu0 0.0
  %3124 = vmatprep.subr.mxu0 0.0
  %3125 = vmatpush1.msra.mxu0 0.0
  %3126 = vmatprep.subr.mxu0 0.0
  %3127 = vmatpush1.msra.mxu0 0.0
  %3128 = vmatprep.subr.mxu0 0.0
  %3129 = vmatpush1.msra.mxu0 0.0
  %3130 = vmatprep.subr.mxu0 0.0
  %3131 = vmatpush1.msra.mxu0 0.0
  %3132 = vmatprep.subr.mxu0 0.0
  %3133 = vmatpush1.msra.mxu0 0.0
  %3134 = vmatprep.subr.mxu0 0.0
  %3135 = vmatpush1.msra.mxu0 0.0
  %3136 = vmatprep.subr.mxu0 0.0
  %3137 = vmatpush1.msra.mxu0 0.0
  %3138 = vmatprep.subr.mxu0 0.0
  %3139 = vmatpush1.msra.mxu0 0.0
  %3140 = vmatprep.subr.mxu0 0.0
  %3141 = vmatpush1.msra.mxu0 0.0
  %3142 = vmatprep.subr.mxu0 0.0
  %3143 = vmatpush1.msra.mxu0 0.0
  %3144 = vmatprep.subr.mxu0 0.0
  %3145 = vmatpush1.msra.mxu0 0.0
  %3146 = vmatprep.subr.mxu0 0.0
  %3147 = vmatpush1.msra.mxu0 0.0
  %3148 = vmatprep.mubr.f32.mxu0 0.0
  %3149 = vmatmul.mubr.f32.gmra.mrb[0].mxu0 %v3040
  %v3150 = vpop.f32.mrb[0].mxu0
  %v3151 = vadd.f32 %v3082, %v3150
  %v3152 = vpop.f32.mrb[0].mxu0
  %3153 = vmatprep.mubr.f32.mxu0 0.0
  %3154 = vmatmul.mubr.f32.gmra.mrb[0].mxu0 %v3041
  %v3155 = vpop.f32.mrb[0].mxu0
  %v3156 = vadd.f32 %v3082, %v3155
  %v3157 = vpop.f32.mrb[0].mxu0
  %3158 = vmatprep.mubr.f32.mxu0 0.0
  %3159 = vmatmul.mubr.f32.gmra.mrb[0].mxu0 %v3042
  %v3160 = vpop.f32.mrb[0].mxu0
  %v3161 = vadd.f32 %v3082, %v3160
  %v3162 = vpop.f32.mrb[0].mxu0
  %3163 = vmatprep.mubr.f32.mxu0 0.0
  %3164 = vmatmul.mubr.f32.gmra.mrb[0].mxu0 %v3043
  %v3165 = vpop.f32.mrb[0].mxu0
  %v3166 = vadd.f32 %v3082, %v3165
  %v3167 = vpop.f32.mrb[0].mxu0
  %3168 = vmatprep.mubr.f32.mxu0 0.0
  %3169 = vmatmul.mubr.f32.gmra.mrb[0].mxu0 %v3044
  %v3170 = vpop.f32.mrb[0].mxu0
  %v3171 = vadd.f32 %v3082, %v3170
  %v3172 = vpop.f32.mrb[0].mxu0
  %3173 = vmatprep.mubr.f32.mxu0 0.0
  %3174 = vmatmul.mubr.f32.gmra.mrb[0].mxu0 %v3045
  %v3175 = vpop.f32.mrb[0].mxu0
  %v3176 = vadd.f32 %v3082, %v3175
  %v3177 = vpop.f32.mrb[0].mxu0
  %3178 = vmatprep.mubr.f32.mxu0 0.0
  %3179 = vmatmul.mubr.f32.gmra.mrb[0].mxu0 %v3046
  %v3180 = vpop.f32.mrb[0].mxu0
  %v3181 = vadd.f32 %v3082, %v3180
  %v3182 = vpop.f32.mrb[0].mxu0
  %3183 = vmatprep.mubr.f32.mxu0 0.0
  %3184 = vmatmul.mubr.f32.gmra.mrb[0].mxu0 %v3047
  %v3185 = vpop.f32.mrb[0].mxu0
  %v3186 = vadd.f32 %v3082, %v3185
  %v3187 = vpop.f32.mrb[0].mxu0
  %3188 = vmatprep.mubr.f32.mxu0 0.0
  %3189 = vmatmul.mubr.f32.gmra.mrb[0].mxu0 %v3048
  %v3190 = vpop.f32.mrb[0].mxu0
  %v3191 = vadd.f32 %v3082, %v3190
  %v3192 = vpop.f32.mrb[0].mxu0
  %3193 = vmatprep.mubr.f32.mxu0 0.0
  %3194 = vmatmul.mubr.f32.gmra.mrb[0].mxu0 %v3049
  %v3195 = vpop.f32.mrb[0].mxu0
  %v3196 = vadd.f32 %v3082, %v3195
  %v3197 = vpop.f32.mrb[0].mxu0
  %3198 = vmatprep.mubr.f32.mxu0 0.0
  %3199 = vmatmul.mubr.f32.gmra.mrb[0].mxu0 %v3050
  %v3200 = vpop.f32.mrb[0].mxu0
  %v3201 = vadd.f32 %v3082, %v3200
  %v3202 = vpop.f32.mrb[0].mxu0
  %3203 = vmatprep.mubr.f32.mxu0 0.0
  %3204 = vmatmul.mubr.f32.gmra.mrb[0].mxu0 %v3051
  %v3205 = vpop.f32.mrb[0].mxu0
  %v3206 = vadd.f32 %v3082, %v3205
  %v3207 = vpop.f32.mrb[0].mxu0
  %3208 = vmatprep.mubr.f32.mxu0 0.0
  %3209 = vmatmul.mubr.f32.gmra.mrb[0].mxu0 %v3052
  %v3210 = vpop.f32.mrb[0].mxu0
  %v3211 = vadd.f32 %v3082, %v3210
  %v3212 = vpop.f32.mrb[0].mxu0
  %3213 = vmatprep.mubr.f32.mxu0 0.0
  %3214 = vmatmul.mubr.f32.gmra.mrb[0].mxu0 %v3053
  %v3215 = vpop.f32.mrb[0].mxu0
  %v3216 = vadd.f32 %v3082, %v3215
  %v3217 = vpop.f32.mrb[0].mxu0
  %3218 = vmatprep.mubr.f32.mxu0 0.0
  %3219 = vmatmul.mubr.f32.gmra.mrb[0].mxu0 %v3054
  %v3220 = vpop.f32.mrb[0].mxu0
  %v3221 = vadd.f32 %v3082, %v3220
  %v3222 = vpop.f32.mrb[0].mxu0
  %3223 = vmatprep.mubr.f32.mxu0 0.0
  %3224 = vmatmul.mubr.f32.gmra.mrb[0].mxu0 %v3055
  %v3225 = vpop.f32.mrb[0].mxu0
  %v3226 = vadd.f32 %v3082, %v3225
  %v3227 = vpop.f32.mrb[0].mxu0
  %3228 = vmatprep.mubr.f32.mxu0 0.0
  %3229 = vmatmul.mubr.f32.gmra.mrb[0].mxu0 %v3056
  %v3230 = vpop.f32.mrb[0].mxu0
  %v3231 = vadd.f32 %v3082, %v3230
  %v3232 = vpop.f32.mrb[0].mxu0
  %3233 = vmatprep.mubr.f32.mxu0 0.0
  %3234 = vmatmul.mubr.f32.gmra.mrb[0].mxu0 %v3057
  %v3235 = vpop.f32.mrb[0].mxu0
  %v3236 = vadd.f32 %v3082, %v3235
  %v3237 = vpop.f32.mrb[0].mxu0
  %3238 = vmatprep.mubr.f32.mxu0 0.0
  %3239 = vmatmul.mubr.f32.gmra.mrb[0].mxu0 %v3058
  %v3240 = vpop.f32.mrb[0].mxu0
  %v3241 = vadd.f32 %v3082, %v3240
  %v3242 = vpop.f32.mrb[0].mxu0
  %3243 = vmatprep.mubr.f32.mxu0 0.0
  %3244 = vmatmul.mubr.f32.gmra.mrb[0].mxu0 %v3059
  %v3245 = vpop.f32.mrb[0].mxu0
  %v3246 = vadd.f32 %v3082, %v3245
  %v3247 = vpop.f32.mrb[0].mxu0
  %3248 = vmatprep.mubr.f32.mxu0 0.0
  %3249 = vmatmul.mubr.f32.gmra.mrb[0].mxu0 %v3060
  %v3250 = vpop.f32.mrb[0].mxu0
  %v3251 = vadd.f32 %v3082, %v3250
  %v3252 = vpop.f32.mrb[0].mxu0
  %3253 = vdwg.mxu0
  %3254 = vst [vmem:[%s6] sm:$0xff] %v3151
  %3255 = vst [vmem:[%s6 + $0x8] sm:$0xff] %v3156
  %3256 = vst [vmem:[%s6 + $0x10] sm:$0xff] %v3161
  %3257 = vst [vmem:[%s6 + $0x18] sm:$0xff] %v3166
  %3258 = vst [vmem:[%s6 + $0x20] sm:$0xff] %v3171
  %3259 = vst [vmem:[%s6 + $0x28] sm:$0xff] %v3176
  %3260 = vst [vmem:[%s6 + $0x30] sm:$0xff] %v3181
  %3261 = vst [vmem:[%s6 + $0x38] sm:$0xff] %v3186
  %3262 = vst [vmem:[%s6 + $0x40] sm:$0xff] %v3191
  %3263 = vst [vmem:[%s6 + $0x48] sm:$0xff] %v3196
  %3264 = vst [vmem:[%s6 + $0x50] sm:$0xff] %v3201
  %3265 = vst [vmem:[%s6 + $0x58] sm:$0xff] %v3206
  %3266 = vst [vmem:[%s6 + $0x60] sm:$0xff] %v3211
  %3267 = vst [vmem:[%s6 + $0x68] sm:$0xff] %v3216
  %3268 = vst [vmem:[%s6 + $0x70] sm:$0xff] %v3221
  %3269 = vst [vmem:[%s6 + $0x78] sm:$0xff] %v3226
  %3270 = vst [vmem:[%s6 + $0x80] sm:$0xff] %v3231
  %3271 = vst [vmem:[%s6 + $0x88] sm:$0xff] %v3236
  %3272 = vst [vmem:[%s6 + $0x90] sm:$0xff] %v3241
  %3273 = vst [vmem:[%s6 + $0x98] sm:$0xff] %v3246
  %3274 = vst [vmem:[%s6 + $0xa0] sm:$0xff] %v3251
  // Predicated region
  $region26: #{base_denoiser_forward.1} parent=0 // pred_check
    _
  $region27: #{base_denoiser_forward.1} parent=0 // pred_check_branch
    %3276 = sbr.rel (0) target = $region29
  $region28: #{base_denoiser_forward.1} parent=0 // pred_region
    _
  $region29: #{base_denoiser_forward.1} parent=0 // pred_fallthru
    _
  // Predicated region
  $region30: #{base_denoiser_forward.1} parent=0 // pred_check
    _
  $region31: #{base_denoiser_forward.1} parent=0 // pred_check_branch
    %3278 = sbr.rel (0) target = $region33
  $region32: #{base_denoiser_forward.1} parent=0 // pred_region
    _
  $region33: #{base_denoiser_forward.1} parent=0 // pred_fallthru
    _

</llo_original>
